<compile_context>
chip_gen: v7x
topology: tpu7x:2x2x1
jax: 0.10.0
libtpu: 0.0.40
codegen_flags: <defaults>
</compile_context>

<pallas_src>
import jax
import jax.numpy as jnp
from jax.experimental import pallas as pl
from jax.experimental.pallas import tpu as pltpu

# ---- module hyper-parameters (from EnhancedStyleClassifier.__init__) ----
BACKBONE_FEATURES = 960     # mobilenet_v3_large feature dim
PADDED_IN = 1024            # 960 zero-padded up to a multiple of 128
FEATURE_DIM = 1024
NUM_STYLES = 12
NUM_GENDERS = 2
HEAD_CAT = 256 + 128 + 256  # fused first-layer width (style | gender | proj)
LOGIT_PAD = 128             # lane-dense slab width for the fused logit heads
GENDER_COL = 64             # gender logits live in cols [64, 66) of the slab
LN_EPS = 1e-5               # nn.LayerNorm default
NORM_EPS = 1e-12            # F.normalize default


def _layernorm(h):
    # LayerNorm with weight=1, bias=0 (as set in _initialize_weights).
    # TODO(synk): thread learned gamma/beta through if loading a trained ckpt.
    mu = jnp.mean(h, axis=-1, keepdims=True)
    var = jnp.mean((h - mu) ** 2, axis=-1, keepdims=True)
    return (h - mu) * jax.lax.rsqrt(var + LN_EPS)


def _head_kernel(
    x_ref,                                  # (TB, 1024) f32
    wfp_ref, bfp_ref,                       # feature_projection Linear (bf16 / f32)
    wh1_ref, bh1_ref,                       # fused style|gender|proj first Linears
    ws2_ref, wg2_ref, bsg_ref,              # fused logit slab (style cols 0:12, gender 64:66)
    wp2_ref, bp2_ref,                       # projection_head second Linear
    feat_ref, proj_ref, sg_ref,
):
    def mm(h_f32, w_ref):
        # bf16 MXU matmul, f32 accumulate.
        return jnp.dot(h_f32.astype(jnp.bfloat16), w_ref[...],
                       preferred_element_type=jnp.float32)

    x = x_ref[...]

    # features = Dropout(ReLU(LayerNorm(Linear(x))))   (Dropout = identity, eval)
    feats = jnp.maximum(_layernorm(mm(x, wfp_ref) + bfp_ref[...]), 0.0)
    feat_ref[...] = feats

    # Fused first layers of the three heads: one [1024, 640] matmul,
    # sliced on 128-lane boundaries.
    h_cat = mm(feats, wh1_ref) + bh1_ref[...]             # (TB, 640) f32
    hs = jnp.maximum(_layernorm(h_cat[:, 0:256]), 0.0)    # style branch
    hg = jnp.maximum(_layernorm(h_cat[:, 256:384]), 0.0)  # gender branch
    hp = jnp.maximum(_layernorm(h_cat[:, 384:640]), 0.0)  # projection branch

    # style_logits / gender_logits -> one lane-dense 128-wide slab
    # (cols 0:12 = style, cols 64:66 = gender; other cols are zero weights).
    sg_ref[...] = mm(hs, ws2_ref) + mm(hg, wg2_ref) + bsg_ref[...]

    # projection_head tail: Linear -> LN, then F.normalize(dim=1)
    p = _layernorm(mm(hp, wp2_ref) + bp2_ref[...])
    nrm = jnp.sqrt(jnp.sum(p * p, axis=-1, keepdims=True))
    # clamp BEFORE reciprocal (F.normalize semantics); EUP reciprocal, not VALU divide
    proj_ref[...] = p * pl.reciprocal(jnp.maximum(nrm, NORM_EPS), approx=False)


def _round_up(n, m):
    return ((n + m - 1) // m) * m


def pack_params(params):
    """One-time packing of module weights into the kernel layout."""
    wfp = jnp.pad(
        params["wfp"], ((0, PADDED_IN - BACKBONE_FEATURES), (0, 0))
    ).astype(jnp.bfloat16)                                              # (1024, 1024)
    bfp = params["bfp"].astype(jnp.float32)                             # (1, 1024)

    wh1 = jnp.concatenate(
        [params["ws1"], params["wg1"], params["wp1"]], axis=1
    ).astype(jnp.bfloat16)                                              # (1024, 640)
    bh1 = jnp.concatenate(
        [params["bs1"], params["bg1"], params["bp1"]], axis=1
    ).astype(jnp.float32)                                               # (1, 640)

    ws2 = jnp.pad(params["ws2"], ((0, 0), (0, LOGIT_PAD - NUM_STYLES))
                  ).astype(jnp.bfloat16)                                # (256, 128)
    wg2 = jnp.pad(
        params["wg2"],
        ((0, 0), (GENDER_COL, LOGIT_PAD - GENDER_COL - NUM_GENDERS)),
    ).astype(jnp.bfloat16)                                              # (128, 128)
    bsg = (
        jnp.pad(params["bs2"], ((0, 0), (0, LOGIT_PAD - NUM_STYLES)))
        + jnp.pad(params["bg2"],
                  ((0, 0), (GENDER_COL, LOGIT_PAD - GENDER_COL - NUM_GENDERS)))
    ).astype(jnp.float32)                                               # (1, 128)

    wp2 = params["wp2"].astype(jnp.bfloat16)                            # (256, 128)
    bp2 = params["bp2"].astype(jnp.float32)                             # (1, 128)

    return dict(wfp=wfp, bfp=bfp, wh1=wh1, bh1=bh1,
                ws2=ws2, wg2=wg2, bsg=bsg, wp2=wp2, bp2=bp2)


@jax.jit
def enhanced_style_classifier_head(backbone_features, packed):
    """Runs the EnhancedStyleClassifier heads on backbone features [B, 960]."""
    b = backbone_features.shape[0]

    # ---- batch tiling: pad B up to a multiple of the tile ----
    tb = min(512, _round_up(b, 8))
    b_pad = _round_up(b, tb)
    grid = (b_pad // tb,)

    # ---- input: zero-pad batch rows and 960 -> 1024 feature columns ----
    x = jnp.pad(
        backbone_features.astype(jnp.float32),
        ((0, b_pad - b), (0, PADDED_IN - BACKBONE_FEATURES)),
    )

    inputs = (
        x,
        packed["wfp"], packed["bfp"],
        packed["wh1"], packed["bh1"],
        packed["ws2"], packed["wg2"], packed["bsg"],
        packed["wp2"], packed["bp2"],
    )

    def batch_spec(cols):
        return pl.BlockSpec((tb, cols), lambda i: (i, 0))

    def const_spec(shape):
        return pl.BlockSpec(shape, lambda i: (0, 0))

    in_specs = [
        batch_spec(PADDED_IN),                                     # x
        const_spec((PADDED_IN, FEATURE_DIM)), const_spec((1, FEATURE_DIM)),
        const_spec((FEATURE_DIM, HEAD_CAT)),  const_spec((1, HEAD_CAT)),
        const_spec((256, LOGIT_PAD)),         const_spec((128, LOGIT_PAD)),
        const_spec((1, LOGIT_PAD)),
        const_spec((256, LOGIT_PAD)),         const_spec((1, LOGIT_PAD)),
    ]
    out_specs = (
        batch_spec(FEATURE_DIM),   # features
        batch_spec(LOGIT_PAD),     # projected_features
        batch_spec(LOGIT_PAD),     # fused style|gender logit slab
    )
    out_shape = (
        jax.ShapeDtypeStruct((b_pad, FEATURE_DIM), jnp.float32),
        jax.ShapeDtypeStruct((b_pad, LOGIT_PAD), jnp.float32),
        jax.ShapeDtypeStruct((b_pad, LOGIT_PAD), jnp.float32),
    )

    # advisory cost hint for XLA scheduling around the custom call
    flops = 2 * b_pad * (
        PADDED_IN * FEATURE_DIM + FEATURE_DIM * HEAD_CAT
        + 256 * LOGIT_PAD + 128 * LOGIT_PAD + 256 * 128
    )
    bytes_accessed = (
        sum(int(a.size) * a.dtype.itemsize for a in inputs)
        + b_pad * (FEATURE_DIM + 2 * LOGIT_PAD) * 4
    )
    cost = pl.CostEstimate(flops=flops, transcendentals=6 * b_pad,
                           bytes_accessed=bytes_accessed)

    feats, proj, sg = pl.pallas_call(
        _head_kernel,
        grid=grid,
        out_shape=out_shape,
        in_specs=in_specs,
        out_specs=out_specs,
        compiler_params=pltpu.CompilerParams(
            dimension_semantics=("parallel",),
            vmem_limit_bytes=32 << 20,
        ),
        cost_estimate=cost,
    )(*inputs)

    return {
        "features": feats[:b],
        "projected_features": proj[:b],
        "style_logits": sg[:b, :NUM_STYLES],
        "gender_logits": sg[:b, GENDER_COL:GENDER_COL + NUM_GENDERS],
    }


def _xavier_uniform(key, fan_in, fan_out):
    # matches nn.init.xavier_uniform_ (symmetric in fan_in/fan_out)
    bound = (6.0 / (fan_in + fan_out)) ** 0.5
    return jax.random.uniform(
        key, (fan_in, fan_out), dtype=jnp.float32, minval=-bound, maxval=bound
    )


def init_params(key):
    dims = {
        "fp": (BACKBONE_FEATURES, FEATURE_DIM),
        "s1": (FEATURE_DIM, 256), "s2": (256, NUM_STYLES),
        "g1": (FEATURE_DIM, 128), "g2": (128, NUM_GENDERS),
        "p1": (FEATURE_DIM, 256), "p2": (256, 128),
    }
    params = {}
    keys = jax.random.split(key, len(dims))
    for k, (name, (fi, fo)) in zip(keys, dims.items()):
        params["w" + name] = _xavier_uniform(k, fi, fo)
        params["b" + name] = jnp.zeros((1, fo), jnp.float32)  # bias init = 0
    return params


if __name__ == "__main__":
    key = jax.random.PRNGKey(0)
    k_x, k_p = jax.random.split(key)
    batch = 2
    # TODO(synk): stand-in for FashionBackbone output (pretrained MobileNetV3 omitted)
    backbone_feats = jax.random.normal(k_x, (batch, BACKBONE_FEATURES), jnp.float32)
    params = init_params(k_p)
    packed = pack_params(params)   # one-time weight packing, outside the jitted path

    out = enhanced_style_classifier_head(backbone_feats, packed)
    jax.block_until_ready(out)

    assert out["features"].shape == (batch, FEATURE_DIM)
    assert out["projected_features"].shape == (batch, 128)
    assert out["style_logits"].shape == (batch, NUM_STYLES)
    assert out["gender_logits"].shape == (batch, NUM_GENDERS)
    assert all(bool(jnp.all(jnp.isfinite(v))) for v in out.values())
    # projected_features must be L2-normalized rows
    norms = jnp.linalg.norm(out["projected_features"], axis=-1)
    assert bool(jnp.all(jnp.abs(norms - 1.0) < 1e-3))
    print("KERNEL_OK")
</pallas_src>

<mosaic_0001>
module attributes {stable_mosaic.version = 11 : i64} {
  func.func @_head_kernel(%arg0: i32, %arg1: memref<8x1024xf32, #tpu.memory_space<vmem>>, %arg2: memref<1024x1024xbf16, #tpu.memory_space<vmem>>, %arg3: memref<1x1024xf32, #tpu.memory_space<vmem>>, %arg4: memref<1024x640xbf16, #tpu.memory_space<vmem>>, %arg5: memref<1x640xf32, #tpu.memory_space<vmem>>, %arg6: memref<256x128xbf16, #tpu.memory_space<vmem>>, %arg7: memref<128x128xbf16, #tpu.memory_space<vmem>>, %arg8: memref<1x128xf32, #tpu.memory_space<vmem>>, %arg9: memref<256x128xbf16, #tpu.memory_space<vmem>>, %arg10: memref<1x128xf32, #tpu.memory_space<vmem>>, %arg11: memref<8x1024xf32, #tpu.memory_space<vmem>>, %arg12: memref<8x128xf32, #tpu.memory_space<vmem>>, %arg13: memref<8x128xf32, #tpu.memory_space<vmem>>) attributes {dimension_semantics = [#tpu.dimension_semantics<parallel>], iteration_bounds = array<i64: 1>, scalar_prefetch = 0 : i64, scratch_operands = 0 : i64, tpu.core_type = #tpu.core_type<tc>, window_params = [{transform_indices = @transform_0, window_bounds = array<i64: 8, 1024>}, {pipeline_mode = #tpu.pipeline_mode<synchronous>, transform_indices = @transform_1, window_bounds = array<i64: 1024, 1024>}, {pipeline_mode = #tpu.pipeline_mode<synchronous>, transform_indices = @transform_2, window_bounds = array<i64: 1, 1024>}, {pipeline_mode = #tpu.pipeline_mode<synchronous>, transform_indices = @transform_3, window_bounds = array<i64: 1024, 640>}, {pipeline_mode = #tpu.pipeline_mode<synchronous>, transform_indices = @transform_4, window_bounds = array<i64: 1, 640>}, {pipeline_mode = #tpu.pipeline_mode<synchronous>, transform_indices = @transform_5, window_bounds = array<i64: 256, 128>}, {pipeline_mode = #tpu.pipeline_mode<synchronous>, transform_indices = @transform_6, window_bounds = array<i64: 128, 128>}, {pipeline_mode = #tpu.pipeline_mode<synchronous>, transform_indices = @transform_7, window_bounds = array<i64: 1, 128>}, {pipeline_mode = #tpu.pipeline_mode<synchronous>, transform_indices = @transform_8, window_bounds = array<i64: 256, 128>}, {pipeline_mode = #tpu.pipeline_mode<synchronous>, transform_indices = @transform_9, window_bounds = array<i64: 1, 128>}, {transform_indices = @transform_10, window_bounds = array<i64: 8, 1024>}, {transform_indices = @transform_11, window_bounds = array<i64: 8, 128>}, {transform_indices = @transform_12, window_bounds = array<i64: 8, 128>}]} {
    %c0 = arith.constant 0 : index
    %c0_0 = arith.constant 0 : index
    %0 = vector.load %arg1[%c0, %c0_0] : memref<8x1024xf32, #tpu.memory_space<vmem>>, vector<8x1024xf32>
    %1 = arith.truncf %0 : vector<8x1024xf32> to vector<8x1024xbf16>
    %c0_1 = arith.constant 0 : index
    %c0_2 = arith.constant 0 : index
    %2 = vector.load %arg2[%c0_1, %c0_2] : memref<1024x1024xbf16, #tpu.memory_space<vmem>>, vector<1024x1024xbf16>
    %cst = arith.constant dense<0.000000e+00> : vector<8x1024xf32>
    %3 = tpu.matmul %1, %2, %cst {dimension_numbers = #tpu.dot_dimension_numbers<[1], [0], [0], [1], [0, 0, 1, 1], [], []>} : vector<8x1024xbf16>, vector<1024x1024xbf16>, vector<8x1024xf32> -> vector<8x1024xf32>
    %c0_3 = arith.constant 0 : index
    %c0_4 = arith.constant 0 : index
    %4 = vector.load %arg3[%c0_3, %c0_4] : memref<1x1024xf32, #tpu.memory_space<vmem>>, vector<1x1024xf32>
    %5 = vector.broadcast %4 : vector<1x1024xf32> to vector<8x1024xf32>
    %6 = arith.addf %3, %5 : vector<8x1024xf32>
    %cst_5 = arith.constant dense<0.000000e+00> : vector<8xf32>
    %7 = vector.multi_reduction <add>, %6, %cst_5 [1] : vector<8x1024xf32> to vector<8xf32>
    %8 = vector.shape_cast %7 : vector<8xf32> to vector<8x1xf32>
    %cst_6 = arith.constant 1.024000e+03 : f32
    %9 = vector.broadcast %cst_6 : f32 to vector<8x1xf32>
    %10 = arith.divf %8, %9 : vector<8x1xf32>
    %11 = vector.broadcast %10 : vector<8x1xf32> to vector<8x1024xf32>
    %12 = arith.subf %6, %11 : vector<8x1024xf32>
    %13 = arith.mulf %12, %12 : vector<8x1024xf32>
    %cst_7 = arith.constant dense<0.000000e+00> : vector<8xf32>
    %14 = vector.multi_reduction <add>, %13, %cst_7 [1] : vector<8x1024xf32> to vector<8xf32>
    %15 = vector.shape_cast %14 : vector<8xf32> to vector<8x1xf32>
    %cst_8 = arith.constant 1.024000e+03 : f32
    %16 = vector.broadcast %cst_8 : f32 to vector<8x1xf32>
    %17 = arith.divf %15, %16 : vector<8x1xf32>
    %18 = vector.broadcast %10 : vector<8x1xf32> to vector<8x1024xf32>
    %19 = arith.subf %6, %18 : vector<8x1024xf32>
    %cst_9 = arith.constant 9.99999974E-6 : f32
    %20 = vector.broadcast %cst_9 : f32 to vector<8x1xf32>
    %21 = arith.addf %17, %20 : vector<8x1xf32>
    %22 = math.rsqrt %21 : vector<8x1xf32>
    %23 = vector.broadcast %22 : vector<8x1xf32> to vector<8x1024xf32>
    %24 = arith.mulf %19, %23 : vector<8x1024xf32>
    %cst_10 = arith.constant 0.000000e+00 : f32
    %25 = vector.broadcast %cst_10 : f32 to vector<8x1024xf32>
    %26 = arith.maximumf %24, %25 : vector<8x1024xf32>
    %c0_11 = arith.constant 0 : index
    %c0_12 = arith.constant 0 : index
    %27 = vector.load %arg11[%c0_11, %c0_12] : memref<8x1024xf32, #tpu.memory_space<vmem>>, vector<8x1024xf32>
    tpu.vector_store %arg11[%c0_11, %c0_12], %26 {strides = array<i32>} : memref<8x1024xf32, #tpu.memory_space<vmem>>, vector<8x1024xf32>,
    %28 = arith.truncf %26 : vector<8x1024xf32> to vector<8x1024xbf16>
    %c0_13 = arith.constant 0 : index
    %c0_14 = arith.constant 0 : index
    %29 = vector.load %arg4[%c0_13, %c0_14] : memref<1024x640xbf16, #tpu.memory_space<vmem>>, vector<1024x640xbf16>
    %cst_15 = arith.constant dense<0.000000e+00> : vector<8x640xf32>
    %30 = tpu.matmul %28, %29, %cst_15 {dimension_numbers = #tpu.dot_dimension_numbers<[1], [0], [0], [1], [0, 0, 1, 1], [], []>} : vector<8x1024xbf16>, vector<1024x640xbf16>, vector<8x640xf32> -> vector<8x640xf32>
    %c0_16 = arith.constant 0 : index
    %c0_17 = arith.constant 0 : index
    %31 = vector.load %arg5[%c0_16, %c0_17] : memref<1x640xf32, #tpu.memory_space<vmem>>, vector<1x640xf32>
    %32 = vector.broadcast %31 : vector<1x640xf32> to vector<8x640xf32>
    %33 = arith.addf %30, %32 : vector<8x640xf32>
    %34 = vector.extract_strided_slice %33 {offsets = [0, 0], sizes = [8, 256], strides = [1, 1]} : vector<8x640xf32> to vector<8x256xf32>
    %cst_18 = arith.constant dense<0.000000e+00> : vector<8xf32>
    %35 = vector.multi_reduction <add>, %34, %cst_18 [1] : vector<8x256xf32> to vector<8xf32>
    %36 = vector.shape_cast %35 : vector<8xf32> to vector<8x1xf32>
    %cst_19 = arith.constant 2.560000e+02 : f32
    %37 = vector.broadcast %cst_19 : f32 to vector<8x1xf32>
    %38 = arith.divf %36, %37 : vector<8x1xf32>
    %39 = vector.broadcast %38 : vector<8x1xf32> to vector<8x256xf32>
    %40 = arith.subf %34, %39 : vector<8x256xf32>
    %41 = arith.mulf %40, %40 : vector<8x256xf32>
    %cst_20 = arith.constant dense<0.000000e+00> : vector<8xf32>
    %42 = vector.multi_reduction <add>, %41, %cst_20 [1] : vector<8x256xf32> to vector<8xf32>
    %43 = vector.shape_cast %42 : vector<8xf32> to vector<8x1xf32>
    %cst_21 = arith.constant 2.560000e+02 : f32
    %44 = vector.broadcast %cst_21 : f32 to vector<8x1xf32>
    %45 = arith.divf %43, %44 : vector<8x1xf32>
    %46 = vector.broadcast %38 : vector<8x1xf32> to vector<8x256xf32>
    %47 = arith.subf %34, %46 : vector<8x256xf32>
    %cst_22 = arith.constant 9.99999974E-6 : f32
    %48 = vector.broadcast %cst_22 : f32 to vector<8x1xf32>
    %49 = arith.addf %45, %48 : vector<8x1xf32>
    %50 = math.rsqrt %49 : vector<8x1xf32>
    %51 = vector.broadcast %50 : vector<8x1xf32> to vector<8x256xf32>
    %52 = arith.mulf %47, %51 : vector<8x256xf32>
    %cst_23 = arith.constant 0.000000e+00 : f32
    %53 = vector.broadcast %cst_23 : f32 to vector<8x256xf32>
    %54 = arith.maximumf %52, %53 : vector<8x256xf32>
    %55 = vector.extract_strided_slice %33 {offsets = [0, 256], sizes = [8, 128], strides = [1, 1]} : vector<8x640xf32> to vector<8x128xf32>
    %cst_24 = arith.constant dense<0.000000e+00> : vector<8xf32>
    %56 = vector.multi_reduction <add>, %55, %cst_24 [1] : vector<8x128xf32> to vector<8xf32>
    %57 = vector.shape_cast %56 : vector<8xf32> to vector<8x1xf32>
    %cst_25 = arith.constant 1.280000e+02 : f32
    %58 = vector.broadcast %cst_25 : f32 to vector<8x1xf32>
    %59 = arith.divf %57, %58 : vector<8x1xf32>
    %60 = vector.broadcast %59 : vector<8x1xf32> to vector<8x128xf32>
    %61 = arith.subf %55, %60 : vector<8x128xf32>
    %62 = arith.mulf %61, %61 : vector<8x128xf32>
    %cst_26 = arith.constant dense<0.000000e+00> : vector<8xf32>
    %63 = vector.multi_reduction <add>, %62, %cst_26 [1] : vector<8x128xf32> to vector<8xf32>
    %64 = vector.shape_cast %63 : vector<8xf32> to vector<8x1xf32>
    %cst_27 = arith.constant 1.280000e+02 : f32
    %65 = vector.broadcast %cst_27 : f32 to vector<8x1xf32>
    %66 = arith.divf %64, %65 : vector<8x1xf32>
    %67 = vector.broadcast %59 : vector<8x1xf32> to vector<8x128xf32>
    %68 = arith.subf %55, %67 : vector<8x128xf32>
    %cst_28 = arith.constant 9.99999974E-6 : f32
    %69 = vector.broadcast %cst_28 : f32 to vector<8x1xf32>
    %70 = arith.addf %66, %69 : vector<8x1xf32>
    %71 = math.rsqrt %70 : vector<8x1xf32>
    %72 = vector.broadcast %71 : vector<8x1xf32> to vector<8x128xf32>
    %73 = arith.mulf %68, %72 : vector<8x128xf32>
    %cst_29 = arith.constant 0.000000e+00 : f32
    %74 = vector.broadcast %cst_29 : f32 to vector<8x128xf32>
    %75 = arith.maximumf %73, %74 : vector<8x128xf32>
    %76 = vector.extract_strided_slice %33 {offsets = [0, 384], sizes = [8, 256], strides = [1, 1]} : vector<8x640xf32> to vector<8x256xf32>
    %cst_30 = arith.constant dense<0.000000e+00> : vector<8xf32>
    %77 = vector.multi_reduction <add>, %76, %cst_30 [1] : vector<8x256xf32> to vector<8xf32>
    %78 = vector.shape_cast %77 : vector<8xf32> to vector<8x1xf32>
    %cst_31 = arith.constant 2.560000e+02 : f32
    %79 = vector.broadcast %cst_31 : f32 to vector<8x1xf32>
    %80 = arith.divf %78, %79 : vector<8x1xf32>
    %81 = vector.broadcast %80 : vector<8x1xf32> to vector<8x256xf32>
    %82 = arith.subf %76, %81 : vector<8x256xf32>
    %83 = arith.mulf %82, %82 : vector<8x256xf32>
    %cst_32 = arith.constant dense<0.000000e+00> : vector<8xf32>
    %84 = vector.multi_reduction <add>, %83, %cst_32 [1] : vector<8x256xf32> to vector<8xf32>
    %85 = vector.shape_cast %84 : vector<8xf32> to vector<8x1xf32>
    %cst_33 = arith.constant 2.560000e+02 : f32
    %86 = vector.broadcast %cst_33 : f32 to vector<8x1xf32>
    %87 = arith.divf %85, %86 : vector<8x1xf32>
    %88 = vector.broadcast %80 : vector<8x1xf32> to vector<8x256xf32>
    %89 = arith.subf %76, %88 : vector<8x256xf32>
    %cst_34 = arith.constant 9.99999974E-6 : f32
    %90 = vector.broadcast %cst_34 : f32 to vector<8x1xf32>
    %91 = arith.addf %87, %90 : vector<8x1xf32>
    %92 = math.rsqrt %91 : vector<8x1xf32>
    %93 = vector.broadcast %92 : vector<8x1xf32> to vector<8x256xf32>
    %94 = arith.mulf %89, %93 : vector<8x256xf32>
    %cst_35 = arith.constant 0.000000e+00 : f32
    %95 = vector.broadcast %cst_35 : f32 to vector<8x256xf32>
    %96 = arith.maximumf %94, %95 : vector<8x256xf32>
    %97 = arith.truncf %54 : vector<8x256xf32> to vector<8x256xbf16>
    %c0_36 = arith.constant 0 : index
    %c0_37 = arith.constant 0 : index
    %98 = vector.load %arg6[%c0_36, %c0_37] : memref<256x128xbf16, #tpu.memory_space<vmem>>, vector<256x128xbf16>
    %cst_38 = arith.constant dense<0.000000e+00> : vector<8x128xf32>
    %99 = tpu.matmul %97, %98, %cst_38 {dimension_numbers = #tpu.dot_dimension_numbers<[1], [0], [0], [1], [0, 0, 1, 1], [], []>} : vector<8x256xbf16>, vector<256x128xbf16>, vector<8x128xf32> -> vector<8x128xf32>
    %100 = arith.truncf %75 : vector<8x128xf32> to vector<8x128xbf16>
    %c0_39 = arith.constant 0 : index
    %c0_40 = arith.constant 0 : index
    %101 = vector.load %arg7[%c0_39, %c0_40] : memref<128x128xbf16, #tpu.memory_space<vmem>>, vector<128x128xbf16>
    %cst_41 = arith.constant dense<0.000000e+00> : vector<8x128xf32>
    %102 = tpu.matmul %100, %101, %cst_41 {dimension_numbers = #tpu.dot_dimension_numbers<[1], [0], [0], [1], [0, 0, 1, 1], [], []>} : vector<8x128xbf16>, vector<128x128xbf16>, vector<8x128xf32> -> vector<8x128xf32>
    %103 = arith.addf %99, %102 : vector<8x128xf32>
    %c0_42 = arith.constant 0 : index
    %c0_43 = arith.constant 0 : index
    %104 = vector.load %arg8[%c0_42, %c0_43] : memref<1x128xf32, #tpu.memory_space<vmem>>, vector<1x128xf32>
    %105 = vector.broadcast %104 : vector<1x128xf32> to vector<8x128xf32>
    %106 = arith.addf %103, %105 : vector<8x128xf32>
    %c0_44 = arith.constant 0 : index
    %c0_45 = arith.constant 0 : index
    %107 = vector.load %arg13[%c0_44, %c0_45] : memref<8x128xf32, #tpu.memory_space<vmem>>, vector<8x128xf32>
    tpu.vector_store %arg13[%c0_44, %c0_45], %106 {strides = array<i32>} : memref<8x128xf32, #tpu.memory_space<vmem>>, vector<8x128xf32>,
    %108 = arith.truncf %96 : vector<8x256xf32> to vector<8x256xbf16>
    %c0_46 = arith.constant 0 : index
    %c0_47 = arith.constant 0 : index
    %109 = vector.load %arg9[%c0_46, %c0_47] : memref<256x128xbf16, #tpu.memory_space<vmem>>, vector<256x128xbf16>
    %cst_48 = arith.constant dense<0.000000e+00> : vector<8x128xf32>
    %110 = tpu.matmul %108, %109, %cst_48 {dimension_numbers = #tpu.dot_dimension_numbers<[1], [0], [0], [1], [0, 0, 1, 1], [], []>} : vector<8x256xbf16>, vector<256x128xbf16>, vector<8x128xf32> -> vector<8x128xf32>
    %c0_49 = arith.constant 0 : index
    %c0_50 = arith.constant 0 : index
    %111 = vector.load %arg10[%c0_49, %c0_50] : memref<1x128xf32, #tpu.memory_space<vmem>>, vector<1x128xf32>
    %112 = vector.broadcast %111 : vector<1x128xf32> to vector<8x128xf32>
    %113 = arith.addf %110, %112 : vector<8x128xf32>
    %cst_51 = arith.constant dense<0.000000e+00> : vector<8xf32>
    %114 = vector.multi_reduction <add>, %113, %cst_51 [1] : vector<8x128xf32> to vector<8xf32>
    %115 = vector.shape_cast %114 : vector<8xf32> to vector<8x1xf32>
    %cst_52 = arith.constant 1.280000e+02 : f32
    %116 = vector.broadcast %cst_52 : f32 to vector<8x1xf32>
    %117 = arith.divf %115, %116 : vector<8x1xf32>
    %118 = vector.broadcast %117 : vector<8x1xf32> to vector<8x128xf32>
    %119 = arith.subf %113, %118 : vector<8x128xf32>
    %120 = arith.mulf %119, %119 : vector<8x128xf32>
    %cst_53 = arith.constant dense<0.000000e+00> : vector<8xf32>
    %121 = vector.multi_reduction <add>, %120, %cst_53 [1] : vector<8x128xf32> to vector<8xf32>
    %122 = vector.shape_cast %121 : vector<8xf32> to vector<8x1xf32>
    %cst_54 = arith.constant 1.280000e+02 : f32
    %123 = vector.broadcast %cst_54 : f32 to vector<8x1xf32>
    %124 = arith.divf %122, %123 : vector<8x1xf32>
    %125 = vector.broadcast %117 : vector<8x1xf32> to vector<8x128xf32>
    %126 = arith.subf %113, %125 : vector<8x128xf32>
    %cst_55 = arith.constant 9.99999974E-6 : f32
    %127 = vector.broadcast %cst_55 : f32 to vector<8x1xf32>
    %128 = arith.addf %124, %127 : vector<8x1xf32>
    %129 = math.rsqrt %128 : vector<8x1xf32>
    %130 = vector.broadcast %129 : vector<8x1xf32> to vector<8x128xf32>
    %131 = arith.mulf %126, %130 : vector<8x128xf32>
    %132 = arith.mulf %131, %131 : vector<8x128xf32>
    %cst_56 = arith.constant dense<0.000000e+00> : vector<8xf32>
    %133 = vector.multi_reduction <add>, %132, %cst_56 [1] : vector<8x128xf32> to vector<8xf32>
    %134 = vector.shape_cast %133 : vector<8xf32> to vector<8x1xf32>
    %135 = math.sqrt %134 : vector<8x1xf32>
    %cst_57 = arith.constant 9.99999996E-13 : f32
    %136 = vector.broadcast %cst_57 : f32 to vector<8x1xf32>
    %137 = arith.maximumf %135, %136 : vector<8x1xf32>
    %138 = tpu.reciprocal %137 : vector<8x1xf32> -> vector<8x1xf32>
    %139 = vector.broadcast %138 : vector<8x1xf32> to vector<8x128xf32>
    %140 = arith.mulf %131, %139 : vector<8x128xf32>
    %c0_58 = arith.constant 0 : index
    %c0_59 = arith.constant 0 : index
    %141 = vector.load %arg12[%c0_58, %c0_59] : memref<8x128xf32, #tpu.memory_space<vmem>>, vector<8x128xf32>
    tpu.vector_store %arg12[%c0_58, %c0_59], %140 {strides = array<i32>} : memref<8x128xf32, #tpu.memory_space<vmem>>, vector<8x128xf32>,
    return
  }
  func.func @transform_0(%arg0: i32) -> (i32, i32) {
    %c0_i32 = arith.constant 0 : i32
    %c0_i32_0 = arith.constant 0 : i32
    return %arg0, %c0_i32 : i32, i32
  }
  func.func @transform_1(%arg0: i32) -> (i32, i32) {
    %c0_i32 = arith.constant 0 : i32
    %c0_i32_0 = arith.constant 0 : i32
    %c0_i32_1 = arith.constant 0 : i32
    return %c0_i32, %c0_i32_0 : i32, i32
  }
  func.func @transform_2(%arg0: i32) -> (i32, i32) {
    %c0_i32 = arith.constant 0 : i32
    %c0_i32_0 = arith.constant 0 : i32
    %c0_i32_1 = arith.constant 0 : i32
    return %c0_i32, %c0_i32_0 : i32, i32
  }
  func.func @transform_3(%arg0: i32) -> (i32, i32) {
    %c0_i32 = arith.constant 0 : i32
    %c0_i32_0 = arith.constant 0 : i32
    %c0_i32_1 = arith.constant 0 : i32
    return %c0_i32, %c0_i32_0 : i32, i32
  }
  func.func @transform_4(%arg0: i32) -> (i32, i32) {
    %c0_i32 = arith.constant 0 : i32
    %c0_i32_0 = arith.constant 0 : i32
    %c0_i32_1 = arith.constant 0 : i32
    return %c0_i32, %c0_i32_0 : i32, i32
  }
  func.func @transform_5(%arg0: i32) -> (i32, i32) {
    %c0_i32 = arith.constant 0 : i32
    %c0_i32_0 = arith.constant 0 : i32
    %c0_i32_1 = arith.constant 0 : i32
    return %c0_i32, %c0_i32_0 : i32, i32
  }
  func.func @transform_6(%arg0: i32) -> (i32, i32) {
    %c0_i32 = arith.constant 0 : i32
    %c0_i32_0 = arith.constant 0 : i32
    %c0_i32_1 = arith.constant 0 : i32
    return %c0_i32, %c0_i32_0 : i32, i32
  }
  func.func @transform_7(%arg0: i32) -> (i32, i32) {
    %c0_i32 = arith.constant 0 : i32
    %c0_i32_0 = arith.constant 0 : i32
    %c0_i32_1 = arith.constant 0 : i32
    return %c0_i32, %c0_i32_0 : i32, i32
  }
  func.func @transform_8(%arg0: i32) -> (i32, i32) {
    %c0_i32 = arith.constant 0 : i32
    %c0_i32_0 = arith.constant 0 : i32
    %c0_i32_1 = arith.constant 0 : i32
    return %c0_i32, %c0_i32_0 : i32, i32
  }
  func.func @transform_9(%arg0: i32) -> (i32, i32) {
    %c0_i32 = arith.constant 0 : i32
    %c0_i32_0 = arith.constant 0 : i32
    %c0_i32_1 = arith.constant 0 : i32
    return %c0_i32, %c0_i32_0 : i32, i32
  }
  func.func @transform_10(%arg0: i32) -> (i32, i32) {
    %c0_i32 = arith.constant 0 : i32
    %c0_i32_0 = arith.constant 0 : i32
    return %arg0, %c0_i32 : i32, i32
  }
  func.func @transform_11(%arg0: i32) -> (i32, i32) {
    %c0_i32 = arith.constant 0 : i32
    %c0_i32_0 = arith.constant 0 : i32
    return %arg0, %c0_i32 : i32, i32
  }
  func.func @transform_12(%arg0: i32) -> (i32, i32) {
    %c0_i32 = arith.constant 0 : i32
    %c0_i32_0 = arith.constant 0 : i32
    return %arg0, %c0_i32 : i32, i32
  }
}

</mosaic_0001>

<llo_original>
// kernel: enhanced_style_classifier_head.1
$region0: #{enhanced_style_classifier_head.1}
  #allocation0 [shape = 'u32[]', space=smem, size = 0x4, offset = 0x4, fixed_abs, tag = 'smem constant byte address 0x4 - core index']
  #allocation1 [shape = 'u32[144,128]{1,0:T(1,128)}', space=vmem, size = 0x12000, scoped, tag = 'internal scratch']
  %s0 = inlined_call_operand.vmem [shape: f32[8,1024], index: 0, kind: input, shape index: {}]
  %s1 = inlined_call_operand.hbm [shape: bf16[1024,1024], index: 1, kind: input, shape index: {}]
  %s2 = inlined_call_operand.hbm [shape: f32[1,1024], index: 2, kind: input, shape index: {}]
  %s3 = inlined_call_operand.hbm [shape: bf16[1024,640], index: 3, kind: input, shape index: {}]
  %s4 = inlined_call_operand.hbm [shape: f32[1,640], index: 4, kind: input, shape index: {}]
  %s5 = inlined_call_operand.hbm [shape: bf16[256,128], index: 5, kind: input, shape index: {}]
  %s6 = inlined_call_operand.hbm [shape: bf16[128,128], index: 6, kind: input, shape index: {}]
  %s7 = inlined_call_operand.hbm [shape: f32[1,128], index: 7, kind: input, shape index: {}]
  %s8 = inlined_call_operand.hbm [shape: bf16[256,128], index: 8, kind: input, shape index: {}]
  %s9 = inlined_call_operand.hbm [shape: f32[1,128], index: 9, kind: input, shape index: {}]
  %s10 = inlined_call_operand.vmem [shape: f32[8,1024], index: 10, kind: output, shape index: {0}]
  %s11 = inlined_call_operand.vmem [shape: f32[8,128], index: 11, kind: output, shape index: {1}]
  %s12 = inlined_call_operand.vmem [shape: f32[8,128], index: 12, kind: output, shape index: {2}]
  %13 = xla_tuple %s10, %s11, %s12
  %s14 = sld [smem:[#allocation0]]
  $region102: #{enhanced_style_classifier_head.1} parent=0
    _
  %s16 = ssub.s32 1, %s14
  %s17 = scalar_select 0, %s16, %s14
  $region1: #{enhanced_style_classifier_head.1} parent=0
    #allocation2 [shape = 'u8[2097152]{0}', space=vmem, size = 0x200000, scoped, tag = 'input window, operand 1, single buffered']
    #allocation3 [shape = 's32[1]{0}', space=sflag, size = 0x4, scoped, tag = 'scoped memory for enhanced_style_classifier_head.1']
    #allocation4 [shape = 'u8[4096]{0}', space=vmem, size = 0x1000, scoped, tag = 'input window, operand 2, single buffered']
    #allocation5 [shape = 's32[1]{0}', space=sflag, size = 0x4, scoped, tag = 'scoped memory for enhanced_style_classifier_head.1']
    #allocation6 [shape = 'u8[1310720]{0}', space=vmem, size = 0x140000, scoped, tag = 'input window, operand 3, single buffered']
    #allocation7 [shape = 'u8[2560]{0}', space=vmem, size = 0xc00, scoped, tag = 'input window, operand 4, single buffered']
    #allocation8 [shape = 's32[1]{0}', space=sflag, size = 0x4, scoped, tag = 'scoped memory for enhanced_style_classifier_head.1']
    #allocation9 [shape = 'u8[65536]{0}', space=vmem, size = 0x10000, scoped, tag = 'input window, operand 5, single buffered']
    #allocation10 [shape = 'u8[32768]{0}', space=vmem, size = 0x8000, scoped, tag = 'input window, operand 6, single buffered']
    #allocation11 [shape = 's32[1]{0}', space=sflag, size = 0x4, scoped, tag = 'scoped memory for enhanced_style_classifier_head.1']
    #allocation12 [shape = 'u8[512]{0}', space=vmem, size = 0x400, scoped, tag = 'input window, operand 7, single buffered']
    #allocation13 [shape = 'u8[65536]{0}', space=vmem, size = 0x10000, scoped, tag = 'input window, operand 8, single buffered']
    #allocation14 [shape = 's32[1]{0}', space=sflag, size = 0x4, scoped, tag = 'scoped memory for enhanced_style_classifier_head.1']
    #allocation15 [shape = 'u8[512]{0}', space=vmem, size = 0x400, scoped, tag = 'input window, operand 9, single buffered']
    %18 = vsyncpa [#allocation3], 0
    %19 = vsyncpa [#allocation5], 0
    %20 = vsyncpa [#allocation8], 0
    %21 = vsyncpa [#allocation11], 0
    %22 = vsyncpa [#allocation14], 0
    // Predicated region
    $region2: #{enhanced_style_classifier_head.1} parent=1 // pred_check
      _
    $region3: #{enhanced_style_classifier_head.1} parent=1 // pred_check_branch
      %24 = sbr.rel (0) target = $region5
    $region4: #{enhanced_style_classifier_head.1} parent=1 // pred_region
      _
    $region5: #{enhanced_style_classifier_head.1} parent=1 // pred_fallthru
      _
    // Predicated region
    $region6: #{enhanced_style_classifier_head.1} parent=1 // pred_check
      _
    $region7: #{enhanced_style_classifier_head.1} parent=1 // pred_check_branch
      %26 = sbr.rel (0) target = $region9
    $region8: #{enhanced_style_classifier_head.1} parent=1 // pred_region
      %s28 = ssub.s32 65536, 65536
      %29 = vsyncadd [#allocation3], %s28
      %s30 = sshll.u32 [#allocation2], 4
      %s31 = int_to_ptr.vmem [resolvable:$true] %s30
      %36 = dma.hbm_to_vmem [thread:$0]  %s1, 65536, %s31, [#allocation3], 512, 512, 32
    $region9: #{enhanced_style_classifier_head.1} parent=1 // pred_fallthru
      _
    // Predicated region
    $region10: #{enhanced_style_classifier_head.1} parent=1 // pred_check
      _
    $region11: #{enhanced_style_classifier_head.1} parent=1 // pred_check_branch
      %38 = sbr.rel (0) target = $region13
    $region12: #{enhanced_style_classifier_head.1} parent=1 // pred_region
      %s40 = ssub.s32 128, 128
      %41 = vsyncadd [#allocation5], %s40
      %s43 = sshll.u32 [#allocation4], 4
      %s44 = int_to_ptr.vmem [resolvable:$true] %s43
      %46 = dma.hbm_to_vmem [thread:$0]  %s2, 128, %s44, [#allocation5]
    $region13: #{enhanced_style_classifier_head.1} parent=1 // pred_fallthru
      _
    // Predicated region
    $region14: #{enhanced_style_classifier_head.1} parent=1 // pred_check
      _
    $region15: #{enhanced_style_classifier_head.1} parent=1 // pred_check_branch
      %48 = sbr.rel (0) target = $region17
    $region16: #{enhanced_style_classifier_head.1} parent=1 // pred_region
      %s50 = ssub.s32 40960, 40960
      %51 = vsyncadd [#allocation5], %s50
      %s52 = sshll.u32 [#allocation6], 4
      %s53 = int_to_ptr.vmem [resolvable:$true] %s52
      %58 = dma.hbm_to_vmem [thread:$0]  %s3, 40960, %s53, [#allocation5], 320, 320, 20
    $region17: #{enhanced_style_classifier_head.1} parent=1 // pred_fallthru
      _
    // Predicated region
    $region18: #{enhanced_style_classifier_head.1} parent=1 // pred_check
      _
    $region19: #{enhanced_style_classifier_head.1} parent=1 // pred_check_branch
      %60 = sbr.rel (0) target = $region21
    $region20: #{enhanced_style_classifier_head.1} parent=1 // pred_region
      %s62 = ssub.s32 80, 80
      %63 = vsyncadd [#allocation8], %s62
      %s65 = sshll.u32 [#allocation7], 4
      %s66 = int_to_ptr.vmem [resolvable:$true] %s65
      %68 = dma.hbm_to_vmem [thread:$0]  %s4, 80, %s66, [#allocation8]
    $region21: #{enhanced_style_classifier_head.1} parent=1 // pred_fallthru
      _
    // Predicated region
    $region22: #{enhanced_style_classifier_head.1} parent=1 // pred_check
      _
    $region23: #{enhanced_style_classifier_head.1} parent=1 // pred_check_branch
      %70 = sbr.rel (0) target = $region25
    $region24: #{enhanced_style_classifier_head.1} parent=1 // pred_region
      %s72 = ssub.s32 2048, 2048
      %73 = vsyncadd [#allocation8], %s72
      %s74 = sshll.u32 [#allocation9], 4
      %s75 = int_to_ptr.vmem [resolvable:$true] %s74
      %80 = dma.hbm_to_vmem [thread:$0]  %s5, 2048, %s75, [#allocation8], 64, 64, 4
    $region25: #{enhanced_style_classifier_head.1} parent=1 // pred_fallthru
      _
    // Predicated region
    $region26: #{enhanced_style_classifier_head.1} parent=1 // pred_check
      _
    $region27: #{enhanced_style_classifier_head.1} parent=1 // pred_check_branch
      %82 = sbr.rel (0) target = $region29
    $region28: #{enhanced_style_classifier_head.1} parent=1 // pred_region
      %s84 = ssub.s32 1024, 1024
      %85 = vsyncadd [#allocation11], %s84
      %s86 = sshll.u32 [#allocation10], 4
      %s87 = int_to_ptr.vmem [resolvable:$true] %s86
      %92 = dma.hbm_to_vmem [thread:$0]  %s6, 1024, %s87, [#allocation11], 64, 64, 4
    $region29: #{enhanced_style_classifier_head.1} parent=1 // pred_fallthru
      _
    // Predicated region
    $region30: #{enhanced_style_classifier_head.1} parent=1 // pred_check
      _
    $region31: #{enhanced_style_classifier_head.1} parent=1 // pred_check_branch
      %94 = sbr.rel (0) target = $region33
    $region32: #{enhanced_style_classifier_head.1} parent=1 // pred_region
      %s96 = ssub.s32 16, 16
      %97 = vsyncadd [#allocation11], %s96
      %s99 = sshll.u32 [#allocation12], 4
      %s100 = int_to_ptr.vmem [resolvable:$true] %s99
      %102 = dma.hbm_to_vmem [thread:$0]  %s7, 16, %s100, [#allocation11]
    $region33: #{enhanced_style_classifier_head.1} parent=1 // pred_fallthru
      _
    // Predicated region
    $region34: #{enhanced_style_classifier_head.1} parent=1 // pred_check
      _
    $region35: #{enhanced_style_classifier_head.1} parent=1 // pred_check_branch
      %104 = sbr.rel (0) target = $region37
    $region36: #{enhanced_style_classifier_head.1} parent=1 // pred_region
      %s106 = ssub.s32 2048, 2048
      %107 = vsyncadd [#allocation14], %s106
      %s108 = sshll.u32 [#allocation13], 4
      %s109 = int_to_ptr.vmem [resolvable:$true] %s108
      %114 = dma.hbm_to_vmem [thread:$0]  %s8, 2048, %s109, [#allocation14], 64, 64, 4
    $region37: #{enhanced_style_classifier_head.1} parent=1 // pred_fallthru
      _
    // Predicated region
    $region38: #{enhanced_style_classifier_head.1} parent=1 // pred_check
      _
    $region39: #{enhanced_style_classifier_head.1} parent=1 // pred_check_branch
      %116 = sbr.rel (0) target = $region41
    $region40: #{enhanced_style_classifier_head.1} parent=1 // pred_region
      %s118 = ssub.s32 16, 16
      %119 = vsyncadd [#allocation14], %s118
      %s121 = sshll.u32 [#allocation15], 4
      %s122 = int_to_ptr.vmem [resolvable:$true] %s121
      %124 = dma.hbm_to_vmem [thread:$0]  %s9, 16, %s122, [#allocation14]
    $region41: #{enhanced_style_classifier_head.1} parent=1 // pred_fallthru
      _
    // Predicated region
    $region42: #{enhanced_style_classifier_head.1} parent=1 // pred_check
      _
    $region43: #{enhanced_style_classifier_head.1} parent=1 // pred_check_branch
      %126 = sbr.rel (0) target = $region45
    $region44: #{enhanced_style_classifier_head.1} parent=1 // pred_region
      %127 = dma.done [#allocation3], 65536
    $region45: #{enhanced_style_classifier_head.1} parent=1 // pred_fallthru
      _
    // Predicated region
    $region46: #{enhanced_style_classifier_head.1} parent=1 // pred_check
      _
    $region47: #{enhanced_style_classifier_head.1} parent=1 // pred_check_branch
      %129 = sbr.rel (0) target = $region49
    $region48: #{enhanced_style_classifier_head.1} parent=1 // pred_region
      %130 = dma.done [#allocation5], 128
    $region49: #{enhanced_style_classifier_head.1} parent=1 // pred_fallthru
      _
    // Predicated region
    $region50: #{enhanced_style_classifier_head.1} parent=1 // pred_check
      _
    $region51: #{enhanced_style_classifier_head.1} parent=1 // pred_check_branch
      %132 = sbr.rel (0) target = $region53
    $region52: #{enhanced_style_classifier_head.1} parent=1 // pred_region
      %133 = dma.done [#allocation5], 40960
    $region53: #{enhanced_style_classifier_head.1} parent=1 // pred_fallthru
      _
    // Predicated region
    $region54: #{enhanced_style_classifier_head.1} parent=1 // pred_check
      _
    $region55: #{enhanced_style_classifier_head.1} parent=1 // pred_check_branch
      %135 = sbr.rel (0) target = $region57
    $region56: #{enhanced_style_classifier_head.1} parent=1 // pred_region
      %136 = dma.done [#allocation8], 80
    $region57: #{enhanced_style_classifier_head.1} parent=1 // pred_fallthru
      _
    // Predicated region
    $region58: #{enhanced_style_classifier_head.1} parent=1 // pred_check
      _
    $region59: #{enhanced_style_classifier_head.1} parent=1 // pred_check_branch
      %138 = sbr.rel (0) target = $region61
    $region60: #{enhanced_style_classifier_head.1} parent=1 // pred_region
      %139 = dma.done [#allocation8], 2048
    $region61: #{enhanced_style_classifier_head.1} parent=1 // pred_fallthru
      _
    // Predicated region
    $region62: #{enhanced_style_classifier_head.1} parent=1 // pred_check
      _
    $region63: #{enhanced_style_classifier_head.1} parent=1 // pred_check_branch
      %141 = sbr.rel (0) target = $region65
    $region64: #{enhanced_style_classifier_head.1} parent=1 // pred_region
      %142 = dma.done [#allocation11], 1024
    $region65: #{enhanced_style_classifier_head.1} parent=1 // pred_fallthru
      _
    // Predicated region
    $region66: #{enhanced_style_classifier_head.1} parent=1 // pred_check
      _
    $region67: #{enhanced_style_classifier_head.1} parent=1 // pred_check_branch
      %144 = sbr.rel (0) target = $region69
    $region68: #{enhanced_style_classifier_head.1} parent=1 // pred_region
      %145 = dma.done [#allocation11], 16
    $region69: #{enhanced_style_classifier_head.1} parent=1 // pred_fallthru
      _
    // Predicated region
    $region70: #{enhanced_style_classifier_head.1} parent=1 // pred_check
      _
    $region71: #{enhanced_style_classifier_head.1} parent=1 // pred_check_branch
      %147 = sbr.rel (0) target = $region73
    $region72: #{enhanced_style_classifier_head.1} parent=1 // pred_region
      %148 = dma.done [#allocation14], 2048
    $region73: #{enhanced_style_classifier_head.1} parent=1 // pred_fallthru
      _
    // Predicated region
    $region74: #{enhanced_style_classifier_head.1} parent=1 // pred_check
      _
    $region75: #{enhanced_style_classifier_head.1} parent=1 // pred_check_branch
      %150 = sbr.rel (0) target = $region77
    $region76: #{enhanced_style_classifier_head.1} parent=1 // pred_region
      %151 = dma.done [#allocation14], 16
    $region77: #{enhanced_style_classifier_head.1} parent=1 // pred_fallthru
      _
    %v153 = vld [vmem:[%s0] sm:$0xff]
    %v154 = vld [vmem:[%s0 + $0x8] sm:$0xff]
    %v155 = vld [vmem:[%s0 + $0x10] sm:$0xff]
    %v156 = vld [vmem:[%s0 + $0x18] sm:$0xff]
    %v157 = vld [vmem:[%s0 + $0x20] sm:$0xff]
    %v158 = vld [vmem:[%s0 + $0x28] sm:$0xff]
    %v159 = vld [vmem:[%s0 + $0x30] sm:$0xff]
    %v160 = vld [vmem:[%s0 + $0x38] sm:$0xff]
    %v161 = vpack.c.bf16 %v153, %v153
    %v162 = vpack.c.bf16 %v154, %v154
    %v163 = vpack.c.bf16 %v155, %v155
    %v164 = vpack.c.bf16 %v156, %v156
    %v165 = vpack.c.bf16 %v157, %v157
    %v166 = vpack.c.bf16 %v158, %v158
    %v167 = vpack.c.bf16 %v159, %v159
    %v168 = vpack.c.bf16 %v160, %v160
    %v169 = vld [vmem:[#allocation2] sm:$0xff]
    %v170 = vld [vmem:[#allocation2 + $0x8] sm:$0xff]
    %v171 = vld [vmem:[#allocation2 + $0x10] sm:$0xff]
    %v172 = vld [vmem:[#allocation2 + $0x18] sm:$0xff]
    %v173 = vld [vmem:[#allocation2 + $0x20] sm:$0xff]
    %v174 = vld [vmem:[#allocation2 + $0x28] sm:$0xff]
    %v175 = vld [vmem:[#allocation2 + $0x30] sm:$0xff]
    %v176 = vld [vmem:[#allocation2 + $0x38] sm:$0xff]
    %v177 = vld [vmem:[#allocation2 + $0x40] sm:$0xff]
    %v178 = vld [vmem:[#allocation2 + $0x48] sm:$0xff]
    %v179 = vld [vmem:[#allocation2 + $0x50] sm:$0xff]
    %v180 = vld [vmem:[#allocation2 + $0x58] sm:$0xff]
    %v181 = vld [vmem:[#allocation2 + $0x60] sm:$0xff]
    %v182 = vld [vmem:[#allocation2 + $0x68] sm:$0xff]
    %v183 = vld [vmem:[#allocation2 + $0x70] sm:$0xff]
    %v184 = vld [vmem:[#allocation2 + $0x78] sm:$0xff]
    %v185 = vld [vmem:[#allocation2 + $0x80] sm:$0xff]
    %v186 = vld [vmem:[#allocation2 + $0x88] sm:$0xff]
    %v187 = vld [vmem:[#allocation2 + $0x90] sm:$0xff]
    %v188 = vld [vmem:[#allocation2 + $0x98] sm:$0xff]
    %v189 = vld [vmem:[#allocation2 + $0xa0] sm:$0xff]
    %v190 = vld [vmem:[#allocation2 + $0xa8] sm:$0xff]
    %v191 = vld [vmem:[#allocation2 + $0xb0] sm:$0xff]
    %v192 = vld [vmem:[#allocation2 + $0xb8] sm:$0xff]
    %v193 = vld [vmem:[#allocation2 + $0xc0] sm:$0xff]
    %v194 = vld [vmem:[#allocation2 + $0xc8] sm:$0xff]
    %v195 = vld [vmem:[#allocation2 + $0xd0] sm:$0xff]
    %v196 = vld [vmem:[#allocation2 + $0xd8] sm:$0xff]
    %v197 = vld [vmem:[#allocation2 + $0xe0] sm:$0xff]
    %v198 = vld [vmem:[#allocation2 + $0xe8] sm:$0xff]
    %v199 = vld [vmem:[#allocation2 + $0xf0] sm:$0xff]
    %v200 = vld [vmem:[#allocation2 + $0xf8] sm:$0xff]
    %v201 = vld [vmem:[#allocation2 + $0x100] sm:$0xff]
    %v202 = vld [vmem:[#allocation2 + $0x108] sm:$0xff]
    %v203 = vld [vmem:[#allocation2 + $0x110] sm:$0xff]
    %v204 = vld [vmem:[#allocation2 + $0x118] sm:$0xff]
    %v205 = vld [vmem:[#allocation2 + $0x120] sm:$0xff]
    %v206 = vld [vmem:[#allocation2 + $0x128] sm:$0xff]
    %v207 = vld [vmem:[#allocation2 + $0x130] sm:$0xff]
    %v208 = vld [vmem:[#allocation2 + $0x138] sm:$0xff]
    %v209 = vld [vmem:[#allocation2 + $0x140] sm:$0xff]
    %v210 = vld [vmem:[#allocation2 + $0x148] sm:$0xff]
    %v211 = vld [vmem:[#allocation2 + $0x150] sm:$0xff]
    %v212 = vld [vmem:[#allocation2 + $0x158] sm:$0xff]
    %v213 = vld [vmem:[#allocation2 + $0x160] sm:$0xff]
    %v214 = vld [vmem:[#allocation2 + $0x168] sm:$0xff]
    %v215 = vld [vmem:[#allocation2 + $0x170] sm:$0xff]
    %v216 = vld [vmem:[#allocation2 + $0x178] sm:$0xff]
    %v217 = vld [vmem:[#allocation2 + $0x180] sm:$0xff]
    %v218 = vld [vmem:[#allocation2 + $0x188] sm:$0xff]
    %v219 = vld [vmem:[#allocation2 + $0x190] sm:$0xff]
    %v220 = vld [vmem:[#allocation2 + $0x198] sm:$0xff]
    %v221 = vld [vmem:[#allocation2 + $0x1a0] sm:$0xff]
    %v222 = vld [vmem:[#allocation2 + $0x1a8] sm:$0xff]
    %v223 = vld [vmem:[#allocation2 + $0x1b0] sm:$0xff]
    %v224 = vld [vmem:[#allocation2 + $0x1b8] sm:$0xff]
    %v225 = vld [vmem:[#allocation2 + $0x1c0] sm:$0xff]
    %v226 = vld [vmem:[#allocation2 + $0x1c8] sm:$0xff]
    %v227 = vld [vmem:[#allocation2 + $0x1d0] sm:$0xff]
    %v228 = vld [vmem:[#allocation2 + $0x1d8] sm:$0xff]
    %v229 = vld [vmem:[#allocation2 + $0x1e0] sm:$0xff]
    %v230 = vld [vmem:[#allocation2 + $0x1e8] sm:$0xff]
    %v231 = vld [vmem:[#allocation2 + $0x1f0] sm:$0xff]
    %v232 = vld [vmem:[#allocation2 + $0x1f8] sm:$0xff]
    %v233 = vld [vmem:[#allocation2 + $0x200] sm:$0xff]
    %v234 = vld [vmem:[#allocation2 + $0x208] sm:$0xff]
    %v235 = vld [vmem:[#allocation2 + $0x210] sm:$0xff]
    %v236 = vld [vmem:[#allocation2 + $0x218] sm:$0xff]
    %v237 = vld [vmem:[#allocation2 + $0x220] sm:$0xff]
    %v238 = vld [vmem:[#allocation2 + $0x228] sm:$0xff]
    %v239 = vld [vmem:[#allocation2 + $0x230] sm:$0xff]
    %v240 = vld [vmem:[#allocation2 + $0x238] sm:$0xff]
    %v241 = vld [vmem:[#allocation2 + $0x240] sm:$0xff]
    %v242 = vld [vmem:[#allocation2 + $0x248] sm:$0xff]
    %v243 = vld [vmem:[#allocation2 + $0x250] sm:$0xff]
    %v244 = vld [vmem:[#allocation2 + $0x258] sm:$0xff]
    %v245 = vld [vmem:[#allocation2 + $0x260] sm:$0xff]
    %v246 = vld [vmem:[#allocation2 + $0x268] sm:$0xff]
    %v247 = vld [vmem:[#allocation2 + $0x270] sm:$0xff]
    %v248 = vld [vmem:[#allocation2 + $0x278] sm:$0xff]
    %v249 = vld [vmem:[#allocation2 + $0x280] sm:$0xff]
    %v250 = vld [vmem:[#allocation2 + $0x288] sm:$0xff]
    %v251 = vld [vmem:[#allocation2 + $0x290] sm:$0xff]
    %v252 = vld [vmem:[#allocation2 + $0x298] sm:$0xff]
    %v253 = vld [vmem:[#allocation2 + $0x2a0] sm:$0xff]
    %v254 = vld [vmem:[#allocation2 + $0x2a8] sm:$0xff]
    %v255 = vld [vmem:[#allocation2 + $0x2b0] sm:$0xff]
    %v256 = vld [vmem:[#allocation2 + $0x2b8] sm:$0xff]
    %v257 = vld [vmem:[#allocation2 + $0x2c0] sm:$0xff]
    %v258 = vld [vmem:[#allocation2 + $0x2c8] sm:$0xff]
    %v259 = vld [vmem:[#allocation2 + $0x2d0] sm:$0xff]
    %v260 = vld [vmem:[#allocation2 + $0x2d8] sm:$0xff]
    %v261 = vld [vmem:[#allocation2 + $0x2e0] sm:$0xff]
    %v262 = vld [vmem:[#allocation2 + $0x2e8] sm:$0xff]
    %v263 = vld [vmem:[#allocation2 + $0x2f0] sm:$0xff]
    %v264 = vld [vmem:[#allocation2 + $0x2f8] sm:$0xff]
    %v265 = vld [vmem:[#allocation2 + $0x300] sm:$0xff]
    %v266 = vld [vmem:[#allocation2 + $0x308] sm:$0xff]
    %v267 = vld [vmem:[#allocation2 + $0x310] sm:$0xff]
    %v268 = vld [vmem:[#allocation2 + $0x318] sm:$0xff]
    %v269 = vld [vmem:[#allocation2 + $0x320] sm:$0xff]
    %v270 = vld [vmem:[#allocation2 + $0x328] sm:$0xff]
    %v271 = vld [vmem:[#allocation2 + $0x330] sm:$0xff]
    %v272 = vld [vmem:[#allocation2 + $0x338] sm:$0xff]
    %v273 = vld [vmem:[#allocation2 + $0x340] sm:$0xff]
    %v274 = vld [vmem:[#allocation2 + $0x348] sm:$0xff]
    %v275 = vld [vmem:[#allocation2 + $0x350] sm:$0xff]
    %v276 = vld [vmem:[#allocation2 + $0x358] sm:$0xff]
    %v277 = vld [vmem:[#allocation2 + $0x360] sm:$0xff]
    %v278 = vld [vmem:[#allocation2 + $0x368] sm:$0xff]
    %v279 = vld [vmem:[#allocation2 + $0x370] sm:$0xff]
    %v280 = vld [vmem:[#allocation2 + $0x378] sm:$0xff]
    %v281 = vld [vmem:[#allocation2 + $0x380] sm:$0xff]
    %v282 = vld [vmem:[#allocation2 + $0x388] sm:$0xff]
    %v283 = vld [vmem:[#allocation2 + $0x390] sm:$0xff]
    %v284 = vld [vmem:[#allocation2 + $0x398] sm:$0xff]
    %v285 = vld [vmem:[#allocation2 + $0x3a0] sm:$0xff]
    %v286 = vld [vmem:[#allocation2 + $0x3a8] sm:$0xff]
    %v287 = vld [vmem:[#allocation2 + $0x3b0] sm:$0xff]
    %v288 = vld [vmem:[#allocation2 + $0x3b8] sm:$0xff]
    %v289 = vld [vmem:[#allocation2 + $0x3c0] sm:$0xff]
    %v290 = vld [vmem:[#allocation2 + $0x3c8] sm:$0xff]
    %v291 = vld [vmem:[#allocation2 + $0x3d0] sm:$0xff]
    %v292 = vld [vmem:[#allocation2 + $0x3d8] sm:$0xff]
    %v293 = vld [vmem:[#allocation2 + $0x3e0] sm:$0xff]
    %v294 = vld [vmem:[#allocation2 + $0x3e8] sm:$0xff]
    %v295 = vld [vmem:[#allocation2 + $0x3f0] sm:$0xff]
    %v296 = vld [vmem:[#allocation2 + $0x3f8] sm:$0xff]
    %v297 = vld [vmem:[#allocation2 + $0x400] sm:$0xff]
    %v298 = vld [vmem:[#allocation2 + $0x408] sm:$0xff]
    %v299 = vld [vmem:[#allocation2 + $0x410] sm:$0xff]
    %v300 = vld [vmem:[#allocation2 + $0x418] sm:$0xff]
    %v301 = vld [vmem:[#allocation2 + $0x420] sm:$0xff]
    %v302 = vld [vmem:[#allocation2 + $0x428] sm:$0xff]
    %v303 = vld [vmem:[#allocation2 + $0x430] sm:$0xff]
    %v304 = vld [vmem:[#allocation2 + $0x438] sm:$0xff]
    %v305 = vld [vmem:[#allocation2 + $0x440] sm:$0xff]
    %v306 = vld [vmem:[#allocation2 + $0x448] sm:$0xff]
    %v307 = vld [vmem:[#allocation2 + $0x450] sm:$0xff]
    %v308 = vld [vmem:[#allocation2 + $0x458] sm:$0xff]
    %v309 = vld [vmem:[#allocation2 + $0x460] sm:$0xff]
    %v310 = vld [vmem:[#allocation2 + $0x468] sm:$0xff]
    %v311 = vld [vmem:[#allocation2 + $0x470] sm:$0xff]
    %v312 = vld [vmem:[#allocation2 + $0x478] sm:$0xff]
    %v313 = vld [vmem:[#allocation2 + $0x480] sm:$0xff]
    %v314 = vld [vmem:[#allocation2 + $0x488] sm:$0xff]
    %v315 = vld [vmem:[#allocation2 + $0x490] sm:$0xff]
    %v316 = vld [vmem:[#allocation2 + $0x498] sm:$0xff]
    %v317 = vld [vmem:[#allocation2 + $0x4a0] sm:$0xff]
    %v318 = vld [vmem:[#allocation2 + $0x4a8] sm:$0xff]
    %v319 = vld [vmem:[#allocation2 + $0x4b0] sm:$0xff]
    %v320 = vld [vmem:[#allocation2 + $0x4b8] sm:$0xff]
    %v321 = vld [vmem:[#allocation2 + $0x4c0] sm:$0xff]
    %v322 = vld [vmem:[#allocation2 + $0x4c8] sm:$0xff]
    %v323 = vld [vmem:[#allocation2 + $0x4d0] sm:$0xff]
    %v324 = vld [vmem:[#allocation2 + $0x4d8] sm:$0xff]
    %v325 = vld [vmem:[#allocation2 + $0x4e0] sm:$0xff]
    %v326 = vld [vmem:[#allocation2 + $0x4e8] sm:$0xff]
    %v327 = vld [vmem:[#allocation2 + $0x4f0] sm:$0xff]
    %v328 = vld [vmem:[#allocation2 + $0x4f8] sm:$0xff]
    %v329 = vld [vmem:[#allocation2 + $0x500] sm:$0xff]
    %v330 = vld [vmem:[#allocation2 + $0x508] sm:$0xff]
    %v331 = vld [vmem:[#allocation2 + $0x510] sm:$0xff]
    %v332 = vld [vmem:[#allocation2 + $0x518] sm:$0xff]
    %v333 = vld [vmem:[#allocation2 + $0x520] sm:$0xff]
    %v334 = vld [vmem:[#allocation2 + $0x528] sm:$0xff]
    %v335 = vld [vmem:[#allocation2 + $0x530] sm:$0xff]
    %v336 = vld [vmem:[#allocation2 + $0x538] sm:$0xff]
    %v337 = vld [vmem:[#allocation2 + $0x540] sm:$0xff]
    %v338 = vld [vmem:[#allocation2 + $0x548] sm:$0xff]
    %v339 = vld [vmem:[#allocation2 + $0x550] sm:$0xff]
    %v340 = vld [vmem:[#allocation2 + $0x558] sm:$0xff]
    %v341 = vld [vmem:[#allocation2 + $0x560] sm:$0xff]
    %v342 = vld [vmem:[#allocation2 + $0x568] sm:$0xff]
    %v343 = vld [vmem:[#allocation2 + $0x570] sm:$0xff]
    %v344 = vld [vmem:[#allocation2 + $0x578] sm:$0xff]
    %v345 = vld [vmem:[#allocation2 + $0x580] sm:$0xff]
    %v346 = vld [vmem:[#allocation2 + $0x588] sm:$0xff]
    %v347 = vld [vmem:[#allocation2 + $0x590] sm:$0xff]
    %v348 = vld [vmem:[#allocation2 + $0x598] sm:$0xff]
    %v349 = vld [vmem:[#allocation2 + $0x5a0] sm:$0xff]
    %v350 = vld [vmem:[#allocation2 + $0x5a8] sm:$0xff]
    %v351 = vld [vmem:[#allocation2 + $0x5b0] sm:$0xff]
    %v352 = vld [vmem:[#allocation2 + $0x5b8] sm:$0xff]
    %v353 = vld [vmem:[#allocation2 + $0x5c0] sm:$0xff]
    %v354 = vld [vmem:[#allocation2 + $0x5c8] sm:$0xff]
    %v355 = vld [vmem:[#allocation2 + $0x5d0] sm:$0xff]
    %v356 = vld [vmem:[#allocation2 + $0x5d8] sm:$0xff]
    %v357 = vld [vmem:[#allocation2 + $0x5e0] sm:$0xff]
    %v358 = vld [vmem:[#allocation2 + $0x5e8] sm:$0xff]
    %v359 = vld [vmem:[#allocation2 + $0x5f0] sm:$0xff]
    %v360 = vld [vmem:[#allocation2 + $0x5f8] sm:$0xff]
    %v361 = vld [vmem:[#allocation2 + $0x600] sm:$0xff]
    %v362 = vld [vmem:[#allocation2 + $0x608] sm:$0xff]
    %v363 = vld [vmem:[#allocation2 + $0x610] sm:$0xff]
    %v364 = vld [vmem:[#allocation2 + $0x618] sm:$0xff]
    %v365 = vld [vmem:[#allocation2 + $0x620] sm:$0xff]
    %v366 = vld [vmem:[#allocation2 + $0x628] sm:$0xff]
    %v367 = vld [vmem:[#allocation2 + $0x630] sm:$0xff]
    %v368 = vld [vmem:[#allocation2 + $0x638] sm:$0xff]
    %v369 = vld [vmem:[#allocation2 + $0x640] sm:$0xff]
    %v370 = vld [vmem:[#allocation2 + $0x648] sm:$0xff]
    %v371 = vld [vmem:[#allocation2 + $0x650] sm:$0xff]
    %v372 = vld [vmem:[#allocation2 + $0x658] sm:$0xff]
    %v373 = vld [vmem:[#allocation2 + $0x660] sm:$0xff]
    %v374 = vld [vmem:[#allocation2 + $0x668] sm:$0xff]
    %v375 = vld [vmem:[#allocation2 + $0x670] sm:$0xff]
    %v376 = vld [vmem:[#allocation2 + $0x678] sm:$0xff]
    %v377 = vld [vmem:[#allocation2 + $0x680] sm:$0xff]
    %v378 = vld [vmem:[#allocation2 + $0x688] sm:$0xff]
    %v379 = vld [vmem:[#allocation2 + $0x690] sm:$0xff]
    %v380 = vld [vmem:[#allocation2 + $0x698] sm:$0xff]
    %v381 = vld [vmem:[#allocation2 + $0x6a0] sm:$0xff]
    %v382 = vld [vmem:[#allocation2 + $0x6a8] sm:$0xff]
    %v383 = vld [vmem:[#allocation2 + $0x6b0] sm:$0xff]
    %v384 = vld [vmem:[#allocation2 + $0x6b8] sm:$0xff]
    %v385 = vld [vmem:[#allocation2 + $0x6c0] sm:$0xff]
    %v386 = vld [vmem:[#allocation2 + $0x6c8] sm:$0xff]
    %v387 = vld [vmem:[#allocation2 + $0x6d0] sm:$0xff]
    %v388 = vld [vmem:[#allocation2 + $0x6d8] sm:$0xff]
    %v389 = vld [vmem:[#allocation2 + $0x6e0] sm:$0xff]
    %v390 = vld [vmem:[#allocation2 + $0x6e8] sm:$0xff]
    %v391 = vld [vmem:[#allocation2 + $0x6f0] sm:$0xff]
    %v392 = vld [vmem:[#allocation2 + $0x6f8] sm:$0xff]
    %v393 = vld [vmem:[#allocation2 + $0x700] sm:$0xff]
    %v394 = vld [vmem:[#allocation2 + $0x708] sm:$0xff]
    %v395 = vld [vmem:[#allocation2 + $0x710] sm:$0xff]
    %v396 = vld [vmem:[#allocation2 + $0x718] sm:$0xff]
    %v397 = vld [vmem:[#allocation2 + $0x720] sm:$0xff]
    %v398 = vld [vmem:[#allocation2 + $0x728] sm:$0xff]
    %v399 = vld [vmem:[#allocation2 + $0x730] sm:$0xff]
    %v400 = vld [vmem:[#allocation2 + $0x738] sm:$0xff]
    %v401 = vld [vmem:[#allocation2 + $0x740] sm:$0xff]
    %v402 = vld [vmem:[#allocation2 + $0x748] sm:$0xff]
    %v403 = vld [vmem:[#allocation2 + $0x750] sm:$0xff]
    %v404 = vld [vmem:[#allocation2 + $0x758] sm:$0xff]
    %v405 = vld [vmem:[#allocation2 + $0x760] sm:$0xff]
    %v406 = vld [vmem:[#allocation2 + $0x768] sm:$0xff]
    %v407 = vld [vmem:[#allocation2 + $0x770] sm:$0xff]
    %v408 = vld [vmem:[#allocation2 + $0x778] sm:$0xff]
    %v409 = vld [vmem:[#allocation2 + $0x780] sm:$0xff]
    %v410 = vld [vmem:[#allocation2 + $0x788] sm:$0xff]
    %v411 = vld [vmem:[#allocation2 + $0x790] sm:$0xff]
    %v412 = vld [vmem:[#allocation2 + $0x798] sm:$0xff]
    %v413 = vld [vmem:[#allocation2 + $0x7a0] sm:$0xff]
    %v414 = vld [vmem:[#allocation2 + $0x7a8] sm:$0xff]
    %v415 = vld [vmem:[#allocation2 + $0x7b0] sm:$0xff]
    %v416 = vld [vmem:[#allocation2 + $0x7b8] sm:$0xff]
    %v417 = vld [vmem:[#allocation2 + $0x7c0] sm:$0xff]
    %v418 = vld [vmem:[#allocation2 + $0x7c8] sm:$0xff]
    %v419 = vld [vmem:[#allocation2 + $0x7d0] sm:$0xff]
    %v420 = vld [vmem:[#allocation2 + $0x7d8] sm:$0xff]
    %v421 = vld [vmem:[#allocation2 + $0x7e0] sm:$0xff]
    %v422 = vld [vmem:[#allocation2 + $0x7e8] sm:$0xff]
    %v423 = vld [vmem:[#allocation2 + $0x7f0] sm:$0xff]
    %v424 = vld [vmem:[#allocation2 + $0x7f8] sm:$0xff]
    %v425 = vld [vmem:[#allocation2 + $0x800] sm:$0xff]
    %v426 = vld [vmem:[#allocation2 + $0x808] sm:$0xff]
    %v427 = vld [vmem:[#allocation2 + $0x810] sm:$0xff]
    %v428 = vld [vmem:[#allocation2 + $0x818] sm:$0xff]
    %v429 = vld [vmem:[#allocation2 + $0x820] sm:$0xff]
    %v430 = vld [vmem:[#allocation2 + $0x828] sm:$0xff]
    %v431 = vld [vmem:[#allocation2 + $0x830] sm:$0xff]
    %v432 = vld [vmem:[#allocation2 + $0x838] sm:$0xff]
    %v433 = vld [vmem:[#allocation2 + $0x840] sm:$0xff]
    %v434 = vld [vmem:[#allocation2 + $0x848] sm:$0xff]
    %v435 = vld [vmem:[#allocation2 + $0x850] sm:$0xff]
    %v436 = vld [vmem:[#allocation2 + $0x858] sm:$0xff]
    %v437 = vld [vmem:[#allocation2 + $0x860] sm:$0xff]
    %v438 = vld [vmem:[#allocation2 + $0x868] sm:$0xff]
    %v439 = vld [vmem:[#allocation2 + $0x870] sm:$0xff]
    %v440 = vld [vmem:[#allocation2 + $0x878] sm:$0xff]
    %v441 = vld [vmem:[#allocation2 + $0x880] sm:$0xff]
    %v442 = vld [vmem:[#allocation2 + $0x888] sm:$0xff]
    %v443 = vld [vmem:[#allocation2 + $0x890] sm:$0xff]
    %v444 = vld [vmem:[#allocation2 + $0x898] sm:$0xff]
    %v445 = vld [vmem:[#allocation2 + $0x8a0] sm:$0xff]
    %v446 = vld [vmem:[#allocation2 + $0x8a8] sm:$0xff]
    %v447 = vld [vmem:[#allocation2 + $0x8b0] sm:$0xff]
    %v448 = vld [vmem:[#allocation2 + $0x8b8] sm:$0xff]
    %v449 = vld [vmem:[#allocation2 + $0x8c0] sm:$0xff]
    %v450 = vld [vmem:[#allocation2 + $0x8c8] sm:$0xff]
    %v451 = vld [vmem:[#allocation2 + $0x8d0] sm:$0xff]
    %v452 = vld [vmem:[#allocation2 + $0x8d8] sm:$0xff]
    %v453 = vld [vmem:[#allocation2 + $0x8e0] sm:$0xff]
    %v454 = vld [vmem:[#allocation2 + $0x8e8] sm:$0xff]
    %v455 = vld [vmem:[#allocation2 + $0x8f0] sm:$0xff]
    %v456 = vld [vmem:[#allocation2 + $0x8f8] sm:$0xff]
    %v457 = vld [vmem:[#allocation2 + $0x900] sm:$0xff]
    %v458 = vld [vmem:[#allocation2 + $0x908] sm:$0xff]
    %v459 = vld [vmem:[#allocation2 + $0x910] sm:$0xff]
    %v460 = vld [vmem:[#allocation2 + $0x918] sm:$0xff]
    %v461 = vld [vmem:[#allocation2 + $0x920] sm:$0xff]
    %v462 = vld [vmem:[#allocation2 + $0x928] sm:$0xff]
    %v463 = vld [vmem:[#allocation2 + $0x930] sm:$0xff]
    %v464 = vld [vmem:[#allocation2 + $0x938] sm:$0xff]
    %v465 = vld [vmem:[#allocation2 + $0x940] sm:$0xff]
    %v466 = vld [vmem:[#allocation2 + $0x948] sm:$0xff]
    %v467 = vld [vmem:[#allocation2 + $0x950] sm:$0xff]
    %v468 = vld [vmem:[#allocation2 + $0x958] sm:$0xff]
    %v469 = vld [vmem:[#allocation2 + $0x960] sm:$0xff]
    %v470 = vld [vmem:[#allocation2 + $0x968] sm:$0xff]
    %v471 = vld [vmem:[#allocation2 + $0x970] sm:$0xff]
    %v472 = vld [vmem:[#allocation2 + $0x978] sm:$0xff]
    %v473 = vld [vmem:[#allocation2 + $0x980] sm:$0xff]
    %v474 = vld [vmem:[#allocation2 + $0x988] sm:$0xff]
    %v475 = vld [vmem:[#allocation2 + $0x990] sm:$0xff]
    %v476 = vld [vmem:[#allocation2 + $0x998] sm:$0xff]
    %v477 = vld [vmem:[#allocation2 + $0x9a0] sm:$0xff]
    %v478 = vld [vmem:[#allocation2 + $0x9a8] sm:$0xff]
    %v479 = vld [vmem:[#allocation2 + $0x9b0] sm:$0xff]
    %v480 = vld [vmem:[#allocation2 + $0x9b8] sm:$0xff]
    %v481 = vld [vmem:[#allocation2 + $0x9c0] sm:$0xff]
    %v482 = vld [vmem:[#allocation2 + $0x9c8] sm:$0xff]
    %v483 = vld [vmem:[#allocation2 + $0x9d0] sm:$0xff]
    %v484 = vld [vmem:[#allocation2 + $0x9d8] sm:$0xff]
    %v485 = vld [vmem:[#allocation2 + $0x9e0] sm:$0xff]
    %v486 = vld [vmem:[#allocation2 + $0x9e8] sm:$0xff]
    %v487 = vld [vmem:[#allocation2 + $0x9f0] sm:$0xff]
    %v488 = vld [vmem:[#allocation2 + $0x9f8] sm:$0xff]
    %v489 = vld [vmem:[#allocation2 + $0xa00] sm:$0xff]
    %v490 = vld [vmem:[#allocation2 + $0xa08] sm:$0xff]
    %v491 = vld [vmem:[#allocation2 + $0xa10] sm:$0xff]
    %v492 = vld [vmem:[#allocation2 + $0xa18] sm:$0xff]
    %v493 = vld [vmem:[#allocation2 + $0xa20] sm:$0xff]
    %v494 = vld [vmem:[#allocation2 + $0xa28] sm:$0xff]
    %v495 = vld [vmem:[#allocation2 + $0xa30] sm:$0xff]
    %v496 = vld [vmem:[#allocation2 + $0xa38] sm:$0xff]
    %v497 = vld [vmem:[#allocation2 + $0xa40] sm:$0xff]
    %v498 = vld [vmem:[#allocation2 + $0xa48] sm:$0xff]
    %v499 = vld [vmem:[#allocation2 + $0xa50] sm:$0xff]
    %v500 = vld [vmem:[#allocation2 + $0xa58] sm:$0xff]
    %v501 = vld [vmem:[#allocation2 + $0xa60] sm:$0xff]
    %v502 = vld [vmem:[#allocation2 + $0xa68] sm:$0xff]
    %v503 = vld [vmem:[#allocation2 + $0xa70] sm:$0xff]
    %v504 = vld [vmem:[#allocation2 + $0xa78] sm:$0xff]
    %v505 = vld [vmem:[#allocation2 + $0xa80] sm:$0xff]
    %v506 = vld [vmem:[#allocation2 + $0xa88] sm:$0xff]
    %v507 = vld [vmem:[#allocation2 + $0xa90] sm:$0xff]
    %v508 = vld [vmem:[#allocation2 + $0xa98] sm:$0xff]
    %v509 = vld [vmem:[#allocation2 + $0xaa0] sm:$0xff]
    %v510 = vld [vmem:[#allocation2 + $0xaa8] sm:$0xff]
    %v511 = vld [vmem:[#allocation2 + $0xab0] sm:$0xff]
    %v512 = vld [vmem:[#allocation2 + $0xab8] sm:$0xff]
    %v513 = vld [vmem:[#allocation2 + $0xac0] sm:$0xff]
    %v514 = vld [vmem:[#allocation2 + $0xac8] sm:$0xff]
    %v515 = vld [vmem:[#allocation2 + $0xad0] sm:$0xff]
    %v516 = vld [vmem:[#allocation2 + $0xad8] sm:$0xff]
    %v517 = vld [vmem:[#allocation2 + $0xae0] sm:$0xff]
    %v518 = vld [vmem:[#allocation2 + $0xae8] sm:$0xff]
    %v519 = vld [vmem:[#allocation2 + $0xaf0] sm:$0xff]
    %v520 = vld [vmem:[#allocation2 + $0xaf8] sm:$0xff]
    %v521 = vld [vmem:[#allocation2 + $0xb00] sm:$0xff]
    %v522 = vld [vmem:[#allocation2 + $0xb08] sm:$0xff]
    %v523 = vld [vmem:[#allocation2 + $0xb10] sm:$0xff]
    %v524 = vld [vmem:[#allocation2 + $0xb18] sm:$0xff]
    %v525 = vld [vmem:[#allocation2 + $0xb20] sm:$0xff]
    %v526 = vld [vmem:[#allocation2 + $0xb28] sm:$0xff]
    %v527 = vld [vmem:[#allocation2 + $0xb30] sm:$0xff]
    %v528 = vld [vmem:[#allocation2 + $0xb38] sm:$0xff]
    %v529 = vld [vmem:[#allocation2 + $0xb40] sm:$0xff]
    %v530 = vld [vmem:[#allocation2 + $0xb48] sm:$0xff]
    %v531 = vld [vmem:[#allocation2 + $0xb50] sm:$0xff]
    %v532 = vld [vmem:[#allocation2 + $0xb58] sm:$0xff]
    %v533 = vld [vmem:[#allocation2 + $0xb60] sm:$0xff]
    %v534 = vld [vmem:[#allocation2 + $0xb68] sm:$0xff]
    %v535 = vld [vmem:[#allocation2 + $0xb70] sm:$0xff]
    %v536 = vld [vmem:[#allocation2 + $0xb78] sm:$0xff]
    %v537 = vld [vmem:[#allocation2 + $0xb80] sm:$0xff]
    %v538 = vld [vmem:[#allocation2 + $0xb88] sm:$0xff]
    %v539 = vld [vmem:[#allocation2 + $0xb90] sm:$0xff]
    %v540 = vld [vmem:[#allocation2 + $0xb98] sm:$0xff]
    %v541 = vld [vmem:[#allocation2 + $0xba0] sm:$0xff]
    %v542 = vld [vmem:[#allocation2 + $0xba8] sm:$0xff]
    %v543 = vld [vmem:[#allocation2 + $0xbb0] sm:$0xff]
    %v544 = vld [vmem:[#allocation2 + $0xbb8] sm:$0xff]
    %v545 = vld [vmem:[#allocation2 + $0xbc0] sm:$0xff]
    %v546 = vld [vmem:[#allocation2 + $0xbc8] sm:$0xff]
    %v547 = vld [vmem:[#allocation2 + $0xbd0] sm:$0xff]
    %v548 = vld [vmem:[#allocation2 + $0xbd8] sm:$0xff]
    %v549 = vld [vmem:[#allocation2 + $0xbe0] sm:$0xff]
    %v550 = vld [vmem:[#allocation2 + $0xbe8] sm:$0xff]
    %v551 = vld [vmem:[#allocation2 + $0xbf0] sm:$0xff]
    %v552 = vld [vmem:[#allocation2 + $0xbf8] sm:$0xff]
    %v553 = vld [vmem:[#allocation2 + $0xc00] sm:$0xff]
    %v554 = vld [vmem:[#allocation2 + $0xc08] sm:$0xff]
    %v555 = vld [vmem:[#allocation2 + $0xc10] sm:$0xff]
    %v556 = vld [vmem:[#allocation2 + $0xc18] sm:$0xff]
    %v557 = vld [vmem:[#allocation2 + $0xc20] sm:$0xff]
    %v558 = vld [vmem:[#allocation2 + $0xc28] sm:$0xff]
    %v559 = vld [vmem:[#allocation2 + $0xc30] sm:$0xff]
    %v560 = vld [vmem:[#allocation2 + $0xc38] sm:$0xff]
    %v561 = vld [vmem:[#allocation2 + $0xc40] sm:$0xff]
    %v562 = vld [vmem:[#allocation2 + $0xc48] sm:$0xff]
    %v563 = vld [vmem:[#allocation2 + $0xc50] sm:$0xff]
    %v564 = vld [vmem:[#allocation2 + $0xc58] sm:$0xff]
    %v565 = vld [vmem:[#allocation2 + $0xc60] sm:$0xff]
    %v566 = vld [vmem:[#allocation2 + $0xc68] sm:$0xff]
    %v567 = vld [vmem:[#allocation2 + $0xc70] sm:$0xff]
    %v568 = vld [vmem:[#allocation2 + $0xc78] sm:$0xff]
    %v569 = vld [vmem:[#allocation2 + $0xc80] sm:$0xff]
    %v570 = vld [vmem:[#allocation2 + $0xc88] sm:$0xff]
    %v571 = vld [vmem:[#allocation2 + $0xc90] sm:$0xff]
    %v572 = vld [vmem:[#allocation2 + $0xc98] sm:$0xff]
    %v573 = vld [vmem:[#allocation2 + $0xca0] sm:$0xff]
    %v574 = vld [vmem:[#allocation2 + $0xca8] sm:$0xff]
    %v575 = vld [vmem:[#allocation2 + $0xcb0] sm:$0xff]
    %v576 = vld [vmem:[#allocation2 + $0xcb8] sm:$0xff]
    %v577 = vld [vmem:[#allocation2 + $0xcc0] sm:$0xff]
    %v578 = vld [vmem:[#allocation2 + $0xcc8] sm:$0xff]
    %v579 = vld [vmem:[#allocation2 + $0xcd0] sm:$0xff]
    %v580 = vld [vmem:[#allocation2 + $0xcd8] sm:$0xff]
    %v581 = vld [vmem:[#allocation2 + $0xce0] sm:$0xff]
    %v582 = vld [vmem:[#allocation2 + $0xce8] sm:$0xff]
    %v583 = vld [vmem:[#allocation2 + $0xcf0] sm:$0xff]
    %v584 = vld [vmem:[#allocation2 + $0xcf8] sm:$0xff]
    %v585 = vld [vmem:[#allocation2 + $0xd00] sm:$0xff]
    %v586 = vld [vmem:[#allocation2 + $0xd08] sm:$0xff]
    %v587 = vld [vmem:[#allocation2 + $0xd10] sm:$0xff]
    %v588 = vld [vmem:[#allocation2 + $0xd18] sm:$0xff]
    %v589 = vld [vmem:[#allocation2 + $0xd20] sm:$0xff]
    %v590 = vld [vmem:[#allocation2 + $0xd28] sm:$0xff]
    %v591 = vld [vmem:[#allocation2 + $0xd30] sm:$0xff]
    %v592 = vld [vmem:[#allocation2 + $0xd38] sm:$0xff]
    %v593 = vld [vmem:[#allocation2 + $0xd40] sm:$0xff]
    %v594 = vld [vmem:[#allocation2 + $0xd48] sm:$0xff]
    %v595 = vld [vmem:[#allocation2 + $0xd50] sm:$0xff]
    %v596 = vld [vmem:[#allocation2 + $0xd58] sm:$0xff]
    %v597 = vld [vmem:[#allocation2 + $0xd60] sm:$0xff]
    %v598 = vld [vmem:[#allocation2 + $0xd68] sm:$0xff]
    %v599 = vld [vmem:[#allocation2 + $0xd70] sm:$0xff]
    %v600 = vld [vmem:[#allocation2 + $0xd78] sm:$0xff]
    %v601 = vld [vmem:[#allocation2 + $0xd80] sm:$0xff]
    %v602 = vld [vmem:[#allocation2 + $0xd88] sm:$0xff]
    %v603 = vld [vmem:[#allocation2 + $0xd90] sm:$0xff]
    %v604 = vld [vmem:[#allocation2 + $0xd98] sm:$0xff]
    %v605 = vld [vmem:[#allocation2 + $0xda0] sm:$0xff]
    %v606 = vld [vmem:[#allocation2 + $0xda8] sm:$0xff]
    %v607 = vld [vmem:[#allocation2 + $0xdb0] sm:$0xff]
    %v608 = vld [vmem:[#allocation2 + $0xdb8] sm:$0xff]
    %v609 = vld [vmem:[#allocation2 + $0xdc0] sm:$0xff]
    %v610 = vld [vmem:[#allocation2 + $0xdc8] sm:$0xff]
    %v611 = vld [vmem:[#allocation2 + $0xdd0] sm:$0xff]
    %v612 = vld [vmem:[#allocation2 + $0xdd8] sm:$0xff]
    %v613 = vld [vmem:[#allocation2 + $0xde0] sm:$0xff]
    %v614 = vld [vmem:[#allocation2 + $0xde8] sm:$0xff]
    %v615 = vld [vmem:[#allocation2 + $0xdf0] sm:$0xff]
    %v616 = vld [vmem:[#allocation2 + $0xdf8] sm:$0xff]
    %v617 = vld [vmem:[#allocation2 + $0xe00] sm:$0xff]
    %v618 = vld [vmem:[#allocation2 + $0xe08] sm:$0xff]
    %v619 = vld [vmem:[#allocation2 + $0xe10] sm:$0xff]
    %v620 = vld [vmem:[#allocation2 + $0xe18] sm:$0xff]
    %v621 = vld [vmem:[#allocation2 + $0xe20] sm:$0xff]
    %v622 = vld [vmem:[#allocation2 + $0xe28] sm:$0xff]
    %v623 = vld [vmem:[#allocation2 + $0xe30] sm:$0xff]
    %v624 = vld [vmem:[#allocation2 + $0xe38] sm:$0xff]
    %v625 = vld [vmem:[#allocation2 + $0xe40] sm:$0xff]
    %v626 = vld [vmem:[#allocation2 + $0xe48] sm:$0xff]
    %v627 = vld [vmem:[#allocation2 + $0xe50] sm:$0xff]
    %v628 = vld [vmem:[#allocation2 + $0xe58] sm:$0xff]
    %v629 = vld [vmem:[#allocation2 + $0xe60] sm:$0xff]
    %v630 = vld [vmem:[#allocation2 + $0xe68] sm:$0xff]
    %v631 = vld [vmem:[#allocation2 + $0xe70] sm:$0xff]
    %v632 = vld [vmem:[#allocation2 + $0xe78] sm:$0xff]
    %v633 = vld [vmem:[#allocation2 + $0xe80] sm:$0xff]
    %v634 = vld [vmem:[#allocation2 + $0xe88] sm:$0xff]
    %v635 = vld [vmem:[#allocation2 + $0xe90] sm:$0xff]
    %v636 = vld [vmem:[#allocation2 + $0xe98] sm:$0xff]
    %v637 = vld [vmem:[#allocation2 + $0xea0] sm:$0xff]
    %v638 = vld [vmem:[#allocation2 + $0xea8] sm:$0xff]
    %v639 = vld [vmem:[#allocation2 + $0xeb0] sm:$0xff]
    %v640 = vld [vmem:[#allocation2 + $0xeb8] sm:$0xff]
    %v641 = vld [vmem:[#allocation2 + $0xec0] sm:$0xff]
    %v642 = vld [vmem:[#allocation2 + $0xec8] sm:$0xff]
    %v643 = vld [vmem:[#allocation2 + $0xed0] sm:$0xff]
    %v644 = vld [vmem:[#allocation2 + $0xed8] sm:$0xff]
    %v645 = vld [vmem:[#allocation2 + $0xee0] sm:$0xff]
    %v646 = vld [vmem:[#allocation2 + $0xee8] sm:$0xff]
    %v647 = vld [vmem:[#allocation2 + $0xef0] sm:$0xff]
    %v648 = vld [vmem:[#allocation2 + $0xef8] sm:$0xff]
    %v649 = vld [vmem:[#allocation2 + $0xf00] sm:$0xff]
    %v650 = vld [vmem:[#allocation2 + $0xf08] sm:$0xff]
    %v651 = vld [vmem:[#allocation2 + $0xf10] sm:$0xff]
    %v652 = vld [vmem:[#allocation2 + $0xf18] sm:$0xff]
    %v653 = vld [vmem:[#allocation2 + $0xf20] sm:$0xff]
    %v654 = vld [vmem:[#allocation2 + $0xf28] sm:$0xff]
    %v655 = vld [vmem:[#allocation2 + $0xf30] sm:$0xff]
    %v656 = vld [vmem:[#allocation2 + $0xf38] sm:$0xff]
    %v657 = vld [vmem:[#allocation2 + $0xf40] sm:$0xff]
    %v658 = vld [vmem:[#allocation2 + $0xf48] sm:$0xff]
    %v659 = vld [vmem:[#allocation2 + $0xf50] sm:$0xff]
    %v660 = vld [vmem:[#allocation2 + $0xf58] sm:$0xff]
    %v661 = vld [vmem:[#allocation2 + $0xf60] sm:$0xff]
    %v662 = vld [vmem:[#allocation2 + $0xf68] sm:$0xff]
    %v663 = vld [vmem:[#allocation2 + $0xf70] sm:$0xff]
    %v664 = vld [vmem:[#allocation2 + $0xf78] sm:$0xff]
    %v665 = vld [vmem:[#allocation2 + $0xf80] sm:$0xff]
    %v666 = vld [vmem:[#allocation2 + $0xf88] sm:$0xff]
    %v667 = vld [vmem:[#allocation2 + $0xf90] sm:$0xff]
    %v668 = vld [vmem:[#allocation2 + $0xf98] sm:$0xff]
    %v669 = vld [vmem:[#allocation2 + $0xfa0] sm:$0xff]
    %v670 = vld [vmem:[#allocation2 + $0xfa8] sm:$0xff]
    %v671 = vld [vmem:[#allocation2 + $0xfb0] sm:$0xff]
    %v672 = vld [vmem:[#allocation2 + $0xfb8] sm:$0xff]
    %v673 = vld [vmem:[#allocation2 + $0xfc0] sm:$0xff]
    %v674 = vld [vmem:[#allocation2 + $0xfc8] sm:$0xff]
    %v675 = vld [vmem:[#allocation2 + $0xfd0] sm:$0xff]
    %v676 = vld [vmem:[#allocation2 + $0xfd8] sm:$0xff]
    %v677 = vld [vmem:[#allocation2 + $0xfe0] sm:$0xff]
    %v678 = vld [vmem:[#allocation2 + $0xfe8] sm:$0xff]
    %v679 = vld [vmem:[#allocation2 + $0xff0] sm:$0xff]
    %v680 = vld [vmem:[#allocation2 + $0xff8] sm:$0xff]
    %v681 = vld [vmem:[#allocation4] sm:$0xff]
    %v683 = vlaneseq
    %v684 = vshrl.u32 %v683, 7
    %v685 = vsub.s32 0, %v684
    %v686 = vrot.slane %v681, %v685
    %v687 = vlaneseq
    %v688 = vshrl.u32 %v687, 7
    %v689 = vsub.s32 1, %v688
    %v690 = vrot.slane %v681, %v689
    %v691 = vlaneseq
    %v692 = vshrl.u32 %v691, 7
    %v693 = vsub.s32 2, %v692
    %v694 = vrot.slane %v681, %v693
    %v695 = vlaneseq
    %v696 = vshrl.u32 %v695, 7
    %v697 = vsub.s32 3, %v696
    %v698 = vrot.slane %v681, %v697
    %v699 = vlaneseq
    %v700 = vshrl.u32 %v699, 7
    %v701 = vsub.s32 4, %v700
    %v702 = vrot.slane %v681, %v701
    %v703 = vlaneseq
    %v704 = vshrl.u32 %v703, 7
    %v705 = vsub.s32 5, %v704
    %v706 = vrot.slane %v681, %v705
    %v707 = vlaneseq
    %v708 = vshrl.u32 %v707, 7
    %v709 = vsub.s32 6, %v708
    %v710 = vrot.slane %v681, %v709
    %v711 = vlaneseq
    %v712 = vshrl.u32 %v711, 7
    %v713 = vsub.s32 7, %v712
    %v714 = vrot.slane %v681, %v713
    %v1235 = vunpack.c.l.b16 %v169
    %v1236 = vunpack.c.h.b16 %v169
    %v1237 = vunpack.c.l.b16 %v170
    %v1238 = vunpack.c.h.b16 %v170
    %v1239 = vunpack.c.l.b16 %v171
    %v1240 = vunpack.c.h.b16 %v171
    %v1241 = vunpack.c.l.b16 %v172
    %v1242 = vunpack.c.h.b16 %v172
    %v1243 = vunpack.c.l.b16 %v173
    %v1244 = vunpack.c.h.b16 %v173
    %v1245 = vunpack.c.l.b16 %v174
    %v1246 = vunpack.c.h.b16 %v174
    %v1247 = vunpack.c.l.b16 %v175
    %v1248 = vunpack.c.h.b16 %v175
    %v1249 = vunpack.c.l.b16 %v176
    %v1250 = vunpack.c.h.b16 %v176
    %v1251 = vunpack.c.l.b16 %v177
    %v1252 = vunpack.c.h.b16 %v177
    %v1253 = vunpack.c.l.b16 %v178
    %v1254 = vunpack.c.h.b16 %v178
    %v1255 = vunpack.c.l.b16 %v179
    %v1256 = vunpack.c.h.b16 %v179
    %v1257 = vunpack.c.l.b16 %v180
    %v1258 = vunpack.c.h.b16 %v180
    %v1259 = vunpack.c.l.b16 %v181
    %v1260 = vunpack.c.h.b16 %v181
    %v1261 = vunpack.c.l.b16 %v182
    %v1262 = vunpack.c.h.b16 %v182
    %v1263 = vunpack.c.l.b16 %v183
    %v1264 = vunpack.c.h.b16 %v183
    %v1265 = vunpack.c.l.b16 %v184
    %v1266 = vunpack.c.h.b16 %v184
    %v1267 = vunpack.c.l.b16 %v185
    %v1268 = vunpack.c.h.b16 %v185
    %v1269 = vunpack.c.l.b16 %v186
    %v1270 = vunpack.c.h.b16 %v186
    %v1271 = vunpack.c.l.b16 %v187
    %v1272 = vunpack.c.h.b16 %v187
    %v1273 = vunpack.c.l.b16 %v188
    %v1274 = vunpack.c.h.b16 %v188
    %v1275 = vunpack.c.l.b16 %v189
    %v1276 = vunpack.c.h.b16 %v189
    %v1277 = vunpack.c.l.b16 %v190
    %v1278 = vunpack.c.h.b16 %v190
    %v1279 = vunpack.c.l.b16 %v191
    %v1280 = vunpack.c.h.b16 %v191
    %v1281 = vunpack.c.l.b16 %v192
    %v1282 = vunpack.c.h.b16 %v192
    %v1283 = vunpack.c.l.b16 %v193
    %v1284 = vunpack.c.h.b16 %v193
    %v1285 = vunpack.c.l.b16 %v194
    %v1286 = vunpack.c.h.b16 %v194
    %v1287 = vunpack.c.l.b16 %v195
    %v1288 = vunpack.c.h.b16 %v195
    %v1289 = vunpack.c.l.b16 %v196
    %v1290 = vunpack.c.h.b16 %v196
    %v1291 = vunpack.c.l.b16 %v197
    %v1292 = vunpack.c.h.b16 %v197
    %v1293 = vunpack.c.l.b16 %v198
    %v1294 = vunpack.c.h.b16 %v198
    %v1295 = vunpack.c.l.b16 %v199
    %v1296 = vunpack.c.h.b16 %v199
    %v1297 = vunpack.c.l.b16 %v200
    %v1298 = vunpack.c.h.b16 %v200
    %v1299 = vunpack.c.l.b16 %v201
    %v1300 = vunpack.c.h.b16 %v201
    %v1301 = vunpack.c.l.b16 %v202
    %v1302 = vunpack.c.h.b16 %v202
    %v1303 = vunpack.c.l.b16 %v203
    %v1304 = vunpack.c.h.b16 %v203
    %v1305 = vunpack.c.l.b16 %v204
    %v1306 = vunpack.c.h.b16 %v204
    %v1307 = vunpack.c.l.b16 %v205
    %v1308 = vunpack.c.h.b16 %v205
    %v1309 = vunpack.c.l.b16 %v206
    %v1310 = vunpack.c.h.b16 %v206
    %v1311 = vunpack.c.l.b16 %v207
    %v1312 = vunpack.c.h.b16 %v207
    %v1313 = vunpack.c.l.b16 %v208
    %v1314 = vunpack.c.h.b16 %v208
    %v1315 = vunpack.c.l.b16 %v209
    %v1316 = vunpack.c.h.b16 %v209
    %v1317 = vunpack.c.l.b16 %v210
    %v1318 = vunpack.c.h.b16 %v210
    %v1319 = vunpack.c.l.b16 %v211
    %v1320 = vunpack.c.h.b16 %v211
    %v1321 = vunpack.c.l.b16 %v212
    %v1322 = vunpack.c.h.b16 %v212
    %v1323 = vunpack.c.l.b16 %v213
    %v1324 = vunpack.c.h.b16 %v213
    %v1325 = vunpack.c.l.b16 %v214
    %v1326 = vunpack.c.h.b16 %v214
    %v1327 = vunpack.c.l.b16 %v215
    %v1328 = vunpack.c.h.b16 %v215
    %v1329 = vunpack.c.l.b16 %v216
    %v1330 = vunpack.c.h.b16 %v216
    %v1331 = vunpack.c.l.b16 %v217
    %v1332 = vunpack.c.h.b16 %v217
    %v1333 = vunpack.c.l.b16 %v218
    %v1334 = vunpack.c.h.b16 %v218
    %v1335 = vunpack.c.l.b16 %v219
    %v1336 = vunpack.c.h.b16 %v219
    %v1337 = vunpack.c.l.b16 %v220
    %v1338 = vunpack.c.h.b16 %v220
    %v1339 = vunpack.c.l.b16 %v221
    %v1340 = vunpack.c.h.b16 %v221
    %v1341 = vunpack.c.l.b16 %v222
    %v1342 = vunpack.c.h.b16 %v222
    %v1343 = vunpack.c.l.b16 %v223
    %v1344 = vunpack.c.h.b16 %v223
    %v1345 = vunpack.c.l.b16 %v224
    %v1346 = vunpack.c.h.b16 %v224
    %v1347 = vunpack.c.l.b16 %v225
    %v1348 = vunpack.c.h.b16 %v225
    %v1349 = vunpack.c.l.b16 %v226
    %v1350 = vunpack.c.h.b16 %v226
    %v1351 = vunpack.c.l.b16 %v227
    %v1352 = vunpack.c.h.b16 %v227
    %v1353 = vunpack.c.l.b16 %v228
    %v1354 = vunpack.c.h.b16 %v228
    %v1355 = vunpack.c.l.b16 %v229
    %v1356 = vunpack.c.h.b16 %v229
    %v1357 = vunpack.c.l.b16 %v230
    %v1358 = vunpack.c.h.b16 %v230
    %v1359 = vunpack.c.l.b16 %v231
    %v1360 = vunpack.c.h.b16 %v231
    %v1361 = vunpack.c.l.b16 %v232
    %v1362 = vunpack.c.h.b16 %v232
    %v1363 = vunpack.c.l.b16 %v233
    %v1364 = vunpack.c.h.b16 %v233
    %v1365 = vunpack.c.l.b16 %v234
    %v1366 = vunpack.c.h.b16 %v234
    %v1367 = vunpack.c.l.b16 %v235
    %v1368 = vunpack.c.h.b16 %v235
    %v1369 = vunpack.c.l.b16 %v236
    %v1370 = vunpack.c.h.b16 %v236
    %v1371 = vunpack.c.l.b16 %v237
    %v1372 = vunpack.c.h.b16 %v237
    %v1373 = vunpack.c.l.b16 %v238
    %v1374 = vunpack.c.h.b16 %v238
    %v1375 = vunpack.c.l.b16 %v239
    %v1376 = vunpack.c.h.b16 %v239
    %v1377 = vunpack.c.l.b16 %v240
    %v1378 = vunpack.c.h.b16 %v240
    %v1379 = vunpack.c.l.b16 %v241
    %v1380 = vunpack.c.h.b16 %v241
    %v1381 = vunpack.c.l.b16 %v242
    %v1382 = vunpack.c.h.b16 %v242
    %v1383 = vunpack.c.l.b16 %v243
    %v1384 = vunpack.c.h.b16 %v243
    %v1385 = vunpack.c.l.b16 %v244
    %v1386 = vunpack.c.h.b16 %v244
    %v1387 = vunpack.c.l.b16 %v245
    %v1388 = vunpack.c.h.b16 %v245
    %v1389 = vunpack.c.l.b16 %v246
    %v1390 = vunpack.c.h.b16 %v246
    %v1391 = vunpack.c.l.b16 %v247
    %v1392 = vunpack.c.h.b16 %v247
    %v1393 = vunpack.c.l.b16 %v248
    %v1394 = vunpack.c.h.b16 %v248
    %v1395 = vunpack.c.l.b16 %v249
    %v1396 = vunpack.c.h.b16 %v249
    %v1397 = vunpack.c.l.b16 %v250
    %v1398 = vunpack.c.h.b16 %v250
    %v1399 = vunpack.c.l.b16 %v251
    %v1400 = vunpack.c.h.b16 %v251
    %v1401 = vunpack.c.l.b16 %v252
    %v1402 = vunpack.c.h.b16 %v252
    %v1403 = vunpack.c.l.b16 %v253
    %v1404 = vunpack.c.h.b16 %v253
    %v1405 = vunpack.c.l.b16 %v254
    %v1406 = vunpack.c.h.b16 %v254
    %v1407 = vunpack.c.l.b16 %v255
    %v1408 = vunpack.c.h.b16 %v255
    %v1409 = vunpack.c.l.b16 %v256
    %v1410 = vunpack.c.h.b16 %v256
    %v1411 = vunpack.c.l.b16 %v257
    %v1412 = vunpack.c.h.b16 %v257
    %v1413 = vunpack.c.l.b16 %v258
    %v1414 = vunpack.c.h.b16 %v258
    %v1415 = vunpack.c.l.b16 %v259
    %v1416 = vunpack.c.h.b16 %v259
    %v1417 = vunpack.c.l.b16 %v260
    %v1418 = vunpack.c.h.b16 %v260
    %v1419 = vunpack.c.l.b16 %v261
    %v1420 = vunpack.c.h.b16 %v261
    %v1421 = vunpack.c.l.b16 %v262
    %v1422 = vunpack.c.h.b16 %v262
    %v1423 = vunpack.c.l.b16 %v263
    %v1424 = vunpack.c.h.b16 %v263
    %v1425 = vunpack.c.l.b16 %v264
    %v1426 = vunpack.c.h.b16 %v264
    %v1427 = vunpack.c.l.b16 %v265
    %v1428 = vunpack.c.h.b16 %v265
    %v1429 = vunpack.c.l.b16 %v266
    %v1430 = vunpack.c.h.b16 %v266
    %v1431 = vunpack.c.l.b16 %v267
    %v1432 = vunpack.c.h.b16 %v267
    %v1433 = vunpack.c.l.b16 %v268
    %v1434 = vunpack.c.h.b16 %v268
    %v1435 = vunpack.c.l.b16 %v269
    %v1436 = vunpack.c.h.b16 %v269
    %v1437 = vunpack.c.l.b16 %v270
    %v1438 = vunpack.c.h.b16 %v270
    %v1439 = vunpack.c.l.b16 %v271
    %v1440 = vunpack.c.h.b16 %v271
    %v1441 = vunpack.c.l.b16 %v272
    %v1442 = vunpack.c.h.b16 %v272
    %v1443 = vunpack.c.l.b16 %v273
    %v1444 = vunpack.c.h.b16 %v273
    %v1445 = vunpack.c.l.b16 %v274
    %v1446 = vunpack.c.h.b16 %v274
    %v1447 = vunpack.c.l.b16 %v275
    %v1448 = vunpack.c.h.b16 %v275
    %v1449 = vunpack.c.l.b16 %v276
    %v1450 = vunpack.c.h.b16 %v276
    %v1451 = vunpack.c.l.b16 %v277
    %v1452 = vunpack.c.h.b16 %v277
    %v1453 = vunpack.c.l.b16 %v278
    %v1454 = vunpack.c.h.b16 %v278
    %v1455 = vunpack.c.l.b16 %v279
    %v1456 = vunpack.c.h.b16 %v279
    %v1457 = vunpack.c.l.b16 %v280
    %v1458 = vunpack.c.h.b16 %v280
    %v1459 = vunpack.c.l.b16 %v281
    %v1460 = vunpack.c.h.b16 %v281
    %v1461 = vunpack.c.l.b16 %v282
    %v1462 = vunpack.c.h.b16 %v282
    %v1463 = vunpack.c.l.b16 %v283
    %v1464 = vunpack.c.h.b16 %v283
    %v1465 = vunpack.c.l.b16 %v284
    %v1466 = vunpack.c.h.b16 %v284
    %v1467 = vunpack.c.l.b16 %v285
    %v1468 = vunpack.c.h.b16 %v285
    %v1469 = vunpack.c.l.b16 %v286
    %v1470 = vunpack.c.h.b16 %v286
    %v1471 = vunpack.c.l.b16 %v287
    %v1472 = vunpack.c.h.b16 %v287
    %v1473 = vunpack.c.l.b16 %v288
    %v1474 = vunpack.c.h.b16 %v288
    %v1475 = vunpack.c.l.b16 %v289
    %v1476 = vunpack.c.h.b16 %v289
    %v1477 = vunpack.c.l.b16 %v290
    %v1478 = vunpack.c.h.b16 %v290
    %v1479 = vunpack.c.l.b16 %v291
    %v1480 = vunpack.c.h.b16 %v291
    %v1481 = vunpack.c.l.b16 %v292
    %v1482 = vunpack.c.h.b16 %v292
    %v1483 = vunpack.c.l.b16 %v293
    %v1484 = vunpack.c.h.b16 %v293
    %v1485 = vunpack.c.l.b16 %v294
    %v1486 = vunpack.c.h.b16 %v294
    %v1487 = vunpack.c.l.b16 %v295
    %v1488 = vunpack.c.h.b16 %v295
    %v1489 = vunpack.c.l.b16 %v296
    %v1490 = vunpack.c.h.b16 %v296
    %v1491 = vunpack.c.l.b16 %v297
    %v1492 = vunpack.c.h.b16 %v297
    %v1493 = vunpack.c.l.b16 %v298
    %v1494 = vunpack.c.h.b16 %v298
    %v1495 = vunpack.c.l.b16 %v299
    %v1496 = vunpack.c.h.b16 %v299
    %v1497 = vunpack.c.l.b16 %v300
    %v1498 = vunpack.c.h.b16 %v300
    %v1499 = vunpack.c.l.b16 %v301
    %v1500 = vunpack.c.h.b16 %v301
    %v1501 = vunpack.c.l.b16 %v302
    %v1502 = vunpack.c.h.b16 %v302
    %v1503 = vunpack.c.l.b16 %v303
    %v1504 = vunpack.c.h.b16 %v303
    %v1505 = vunpack.c.l.b16 %v304
    %v1506 = vunpack.c.h.b16 %v304
    %v1507 = vunpack.c.l.b16 %v305
    %v1508 = vunpack.c.h.b16 %v305
    %v1509 = vunpack.c.l.b16 %v306
    %v1510 = vunpack.c.h.b16 %v306
    %v1511 = vunpack.c.l.b16 %v307
    %v1512 = vunpack.c.h.b16 %v307
    %v1513 = vunpack.c.l.b16 %v308
    %v1514 = vunpack.c.h.b16 %v308
    %v1515 = vunpack.c.l.b16 %v309
    %v1516 = vunpack.c.h.b16 %v309
    %v1517 = vunpack.c.l.b16 %v310
    %v1518 = vunpack.c.h.b16 %v310
    %v1519 = vunpack.c.l.b16 %v311
    %v1520 = vunpack.c.h.b16 %v311
    %v1521 = vunpack.c.l.b16 %v312
    %v1522 = vunpack.c.h.b16 %v312
    %v1523 = vunpack.c.l.b16 %v313
    %v1524 = vunpack.c.h.b16 %v313
    %v1525 = vunpack.c.l.b16 %v314
    %v1526 = vunpack.c.h.b16 %v314
    %v1527 = vunpack.c.l.b16 %v315
    %v1528 = vunpack.c.h.b16 %v315
    %v1529 = vunpack.c.l.b16 %v316
    %v1530 = vunpack.c.h.b16 %v316
    %v1531 = vunpack.c.l.b16 %v317
    %v1532 = vunpack.c.h.b16 %v317
    %v1533 = vunpack.c.l.b16 %v318
    %v1534 = vunpack.c.h.b16 %v318
    %v1535 = vunpack.c.l.b16 %v319
    %v1536 = vunpack.c.h.b16 %v319
    %v1537 = vunpack.c.l.b16 %v320
    %v1538 = vunpack.c.h.b16 %v320
    %v1539 = vunpack.c.l.b16 %v321
    %v1540 = vunpack.c.h.b16 %v321
    %v1541 = vunpack.c.l.b16 %v322
    %v1542 = vunpack.c.h.b16 %v322
    %v1543 = vunpack.c.l.b16 %v323
    %v1544 = vunpack.c.h.b16 %v323
    %v1545 = vunpack.c.l.b16 %v324
    %v1546 = vunpack.c.h.b16 %v324
    %v1547 = vunpack.c.l.b16 %v325
    %v1548 = vunpack.c.h.b16 %v325
    %v1549 = vunpack.c.l.b16 %v326
    %v1550 = vunpack.c.h.b16 %v326
    %v1551 = vunpack.c.l.b16 %v327
    %v1552 = vunpack.c.h.b16 %v327
    %v1553 = vunpack.c.l.b16 %v328
    %v1554 = vunpack.c.h.b16 %v328
    %v1555 = vunpack.c.l.b16 %v329
    %v1556 = vunpack.c.h.b16 %v329
    %v1557 = vunpack.c.l.b16 %v330
    %v1558 = vunpack.c.h.b16 %v330
    %v1559 = vunpack.c.l.b16 %v331
    %v1560 = vunpack.c.h.b16 %v331
    %v1561 = vunpack.c.l.b16 %v332
    %v1562 = vunpack.c.h.b16 %v332
    %v1563 = vunpack.c.l.b16 %v333
    %v1564 = vunpack.c.h.b16 %v333
    %v1565 = vunpack.c.l.b16 %v334
    %v1566 = vunpack.c.h.b16 %v334
    %v1567 = vunpack.c.l.b16 %v335
    %v1568 = vunpack.c.h.b16 %v335
    %v1569 = vunpack.c.l.b16 %v336
    %v1570 = vunpack.c.h.b16 %v336
    %v1571 = vunpack.c.l.b16 %v337
    %v1572 = vunpack.c.h.b16 %v337
    %v1573 = vunpack.c.l.b16 %v338
    %v1574 = vunpack.c.h.b16 %v338
    %v1575 = vunpack.c.l.b16 %v339
    %v1576 = vunpack.c.h.b16 %v339
    %v1577 = vunpack.c.l.b16 %v340
    %v1578 = vunpack.c.h.b16 %v340
    %v1579 = vunpack.c.l.b16 %v341
    %v1580 = vunpack.c.h.b16 %v341
    %v1581 = vunpack.c.l.b16 %v342
    %v1582 = vunpack.c.h.b16 %v342
    %v1583 = vunpack.c.l.b16 %v343
    %v1584 = vunpack.c.h.b16 %v343
    %v1585 = vunpack.c.l.b16 %v344
    %v1586 = vunpack.c.h.b16 %v344
    %v1587 = vunpack.c.l.b16 %v345
    %v1588 = vunpack.c.h.b16 %v345
    %v1589 = vunpack.c.l.b16 %v346
    %v1590 = vunpack.c.h.b16 %v346
    %v1591 = vunpack.c.l.b16 %v347
    %v1592 = vunpack.c.h.b16 %v347
    %v1593 = vunpack.c.l.b16 %v348
    %v1594 = vunpack.c.h.b16 %v348
    %v1595 = vunpack.c.l.b16 %v349
    %v1596 = vunpack.c.h.b16 %v349
    %v1597 = vunpack.c.l.b16 %v350
    %v1598 = vunpack.c.h.b16 %v350
    %v1599 = vunpack.c.l.b16 %v351
    %v1600 = vunpack.c.h.b16 %v351
    %v1601 = vunpack.c.l.b16 %v352
    %v1602 = vunpack.c.h.b16 %v352
    %v1603 = vunpack.c.l.b16 %v353
    %v1604 = vunpack.c.h.b16 %v353
    %v1605 = vunpack.c.l.b16 %v354
    %v1606 = vunpack.c.h.b16 %v354
    %v1607 = vunpack.c.l.b16 %v355
    %v1608 = vunpack.c.h.b16 %v355
    %v1609 = vunpack.c.l.b16 %v356
    %v1610 = vunpack.c.h.b16 %v356
    %v1611 = vunpack.c.l.b16 %v357
    %v1612 = vunpack.c.h.b16 %v357
    %v1613 = vunpack.c.l.b16 %v358
    %v1614 = vunpack.c.h.b16 %v358
    %v1615 = vunpack.c.l.b16 %v359
    %v1616 = vunpack.c.h.b16 %v359
    %v1617 = vunpack.c.l.b16 %v360
    %v1618 = vunpack.c.h.b16 %v360
    %v1619 = vunpack.c.l.b16 %v361
    %v1620 = vunpack.c.h.b16 %v361
    %v1621 = vunpack.c.l.b16 %v362
    %v1622 = vunpack.c.h.b16 %v362
    %v1623 = vunpack.c.l.b16 %v363
    %v1624 = vunpack.c.h.b16 %v363
    %v1625 = vunpack.c.l.b16 %v364
    %v1626 = vunpack.c.h.b16 %v364
    %v1627 = vunpack.c.l.b16 %v365
    %v1628 = vunpack.c.h.b16 %v365
    %v1629 = vunpack.c.l.b16 %v366
    %v1630 = vunpack.c.h.b16 %v366
    %v1631 = vunpack.c.l.b16 %v367
    %v1632 = vunpack.c.h.b16 %v367
    %v1633 = vunpack.c.l.b16 %v368
    %v1634 = vunpack.c.h.b16 %v368
    %v1635 = vunpack.c.l.b16 %v369
    %v1636 = vunpack.c.h.b16 %v369
    %v1637 = vunpack.c.l.b16 %v370
    %v1638 = vunpack.c.h.b16 %v370
    %v1639 = vunpack.c.l.b16 %v371
    %v1640 = vunpack.c.h.b16 %v371
    %v1641 = vunpack.c.l.b16 %v372
    %v1642 = vunpack.c.h.b16 %v372
    %v1643 = vunpack.c.l.b16 %v373
    %v1644 = vunpack.c.h.b16 %v373
    %v1645 = vunpack.c.l.b16 %v374
    %v1646 = vunpack.c.h.b16 %v374
    %v1647 = vunpack.c.l.b16 %v375
    %v1648 = vunpack.c.h.b16 %v375
    %v1649 = vunpack.c.l.b16 %v376
    %v1650 = vunpack.c.h.b16 %v376
    %v1651 = vunpack.c.l.b16 %v377
    %v1652 = vunpack.c.h.b16 %v377
    %v1653 = vunpack.c.l.b16 %v378
    %v1654 = vunpack.c.h.b16 %v378
    %v1655 = vunpack.c.l.b16 %v379
    %v1656 = vunpack.c.h.b16 %v379
    %v1657 = vunpack.c.l.b16 %v380
    %v1658 = vunpack.c.h.b16 %v380
    %v1659 = vunpack.c.l.b16 %v381
    %v1660 = vunpack.c.h.b16 %v381
    %v1661 = vunpack.c.l.b16 %v382
    %v1662 = vunpack.c.h.b16 %v382
    %v1663 = vunpack.c.l.b16 %v383
    %v1664 = vunpack.c.h.b16 %v383
    %v1665 = vunpack.c.l.b16 %v384
    %v1666 = vunpack.c.h.b16 %v384
    %v1667 = vunpack.c.l.b16 %v385
    %v1668 = vunpack.c.h.b16 %v385
    %v1669 = vunpack.c.l.b16 %v386
    %v1670 = vunpack.c.h.b16 %v386
    %v1671 = vunpack.c.l.b16 %v387
    %v1672 = vunpack.c.h.b16 %v387
    %v1673 = vunpack.c.l.b16 %v388
    %v1674 = vunpack.c.h.b16 %v388
    %v1675 = vunpack.c.l.b16 %v389
    %v1676 = vunpack.c.h.b16 %v389
    %v1677 = vunpack.c.l.b16 %v390
    %v1678 = vunpack.c.h.b16 %v390
    %v1679 = vunpack.c.l.b16 %v391
    %v1680 = vunpack.c.h.b16 %v391
    %v1681 = vunpack.c.l.b16 %v392
    %v1682 = vunpack.c.h.b16 %v392
    %v1683 = vunpack.c.l.b16 %v393
    %v1684 = vunpack.c.h.b16 %v393
    %v1685 = vunpack.c.l.b16 %v394
    %v1686 = vunpack.c.h.b16 %v394
    %v1687 = vunpack.c.l.b16 %v395
    %v1688 = vunpack.c.h.b16 %v395
    %v1689 = vunpack.c.l.b16 %v396
    %v1690 = vunpack.c.h.b16 %v396
    %v1691 = vunpack.c.l.b16 %v397
    %v1692 = vunpack.c.h.b16 %v397
    %v1693 = vunpack.c.l.b16 %v398
    %v1694 = vunpack.c.h.b16 %v398
    %v1695 = vunpack.c.l.b16 %v399
    %v1696 = vunpack.c.h.b16 %v399
    %v1697 = vunpack.c.l.b16 %v400
    %v1698 = vunpack.c.h.b16 %v400
    %v1699 = vunpack.c.l.b16 %v401
    %v1700 = vunpack.c.h.b16 %v401
    %v1701 = vunpack.c.l.b16 %v402
    %v1702 = vunpack.c.h.b16 %v402
    %v1703 = vunpack.c.l.b16 %v403
    %v1704 = vunpack.c.h.b16 %v403
    %v1705 = vunpack.c.l.b16 %v404
    %v1706 = vunpack.c.h.b16 %v404
    %v1707 = vunpack.c.l.b16 %v405
    %v1708 = vunpack.c.h.b16 %v405
    %v1709 = vunpack.c.l.b16 %v406
    %v1710 = vunpack.c.h.b16 %v406
    %v1711 = vunpack.c.l.b16 %v407
    %v1712 = vunpack.c.h.b16 %v407
    %v1713 = vunpack.c.l.b16 %v408
    %v1714 = vunpack.c.h.b16 %v408
    %v1715 = vunpack.c.l.b16 %v409
    %v1716 = vunpack.c.h.b16 %v409
    %v1717 = vunpack.c.l.b16 %v410
    %v1718 = vunpack.c.h.b16 %v410
    %v1719 = vunpack.c.l.b16 %v411
    %v1720 = vunpack.c.h.b16 %v411
    %v1721 = vunpack.c.l.b16 %v412
    %v1722 = vunpack.c.h.b16 %v412
    %v1723 = vunpack.c.l.b16 %v413
    %v1724 = vunpack.c.h.b16 %v413
    %v1725 = vunpack.c.l.b16 %v414
    %v1726 = vunpack.c.h.b16 %v414
    %v1727 = vunpack.c.l.b16 %v415
    %v1728 = vunpack.c.h.b16 %v415
    %v1729 = vunpack.c.l.b16 %v416
    %v1730 = vunpack.c.h.b16 %v416
    %v1731 = vunpack.c.l.b16 %v417
    %v1732 = vunpack.c.h.b16 %v417
    %v1733 = vunpack.c.l.b16 %v418
    %v1734 = vunpack.c.h.b16 %v418
    %v1735 = vunpack.c.l.b16 %v419
    %v1736 = vunpack.c.h.b16 %v419
    %v1737 = vunpack.c.l.b16 %v420
    %v1738 = vunpack.c.h.b16 %v420
    %v1739 = vunpack.c.l.b16 %v421
    %v1740 = vunpack.c.h.b16 %v421
    %v1741 = vunpack.c.l.b16 %v422
    %v1742 = vunpack.c.h.b16 %v422
    %v1743 = vunpack.c.l.b16 %v423
    %v1744 = vunpack.c.h.b16 %v423
    %v1745 = vunpack.c.l.b16 %v424
    %v1746 = vunpack.c.h.b16 %v424
    %v1747 = vunpack.c.l.b16 %v425
    %v1748 = vunpack.c.h.b16 %v425
    %v1749 = vunpack.c.l.b16 %v426
    %v1750 = vunpack.c.h.b16 %v426
    %v1751 = vunpack.c.l.b16 %v427
    %v1752 = vunpack.c.h.b16 %v427
    %v1753 = vunpack.c.l.b16 %v428
    %v1754 = vunpack.c.h.b16 %v428
    %v1755 = vunpack.c.l.b16 %v429
    %v1756 = vunpack.c.h.b16 %v429
    %v1757 = vunpack.c.l.b16 %v430
    %v1758 = vunpack.c.h.b16 %v430
    %v1759 = vunpack.c.l.b16 %v431
    %v1760 = vunpack.c.h.b16 %v431
    %v1761 = vunpack.c.l.b16 %v432
    %v1762 = vunpack.c.h.b16 %v432
    %v1763 = vunpack.c.l.b16 %v433
    %v1764 = vunpack.c.h.b16 %v433
    %v1765 = vunpack.c.l.b16 %v434
    %v1766 = vunpack.c.h.b16 %v434
    %v1767 = vunpack.c.l.b16 %v435
    %v1768 = vunpack.c.h.b16 %v435
    %v1769 = vunpack.c.l.b16 %v436
    %v1770 = vunpack.c.h.b16 %v436
    %v1771 = vunpack.c.l.b16 %v437
    %v1772 = vunpack.c.h.b16 %v437
    %v1773 = vunpack.c.l.b16 %v438
    %v1774 = vunpack.c.h.b16 %v438
    %v1775 = vunpack.c.l.b16 %v439
    %v1776 = vunpack.c.h.b16 %v439
    %v1777 = vunpack.c.l.b16 %v440
    %v1778 = vunpack.c.h.b16 %v440
    %v1779 = vunpack.c.l.b16 %v441
    %v1780 = vunpack.c.h.b16 %v441
    %v1781 = vunpack.c.l.b16 %v442
    %v1782 = vunpack.c.h.b16 %v442
    %v1783 = vunpack.c.l.b16 %v443
    %v1784 = vunpack.c.h.b16 %v443
    %v1785 = vunpack.c.l.b16 %v444
    %v1786 = vunpack.c.h.b16 %v444
    %v1787 = vunpack.c.l.b16 %v445
    %v1788 = vunpack.c.h.b16 %v445
    %v1789 = vunpack.c.l.b16 %v446
    %v1790 = vunpack.c.h.b16 %v446
    %v1791 = vunpack.c.l.b16 %v447
    %v1792 = vunpack.c.h.b16 %v447
    %v1793 = vunpack.c.l.b16 %v448
    %v1794 = vunpack.c.h.b16 %v448
    %v1795 = vunpack.c.l.b16 %v449
    %v1796 = vunpack.c.h.b16 %v449
    %v1797 = vunpack.c.l.b16 %v450
    %v1798 = vunpack.c.h.b16 %v450
    %v1799 = vunpack.c.l.b16 %v451
    %v1800 = vunpack.c.h.b16 %v451
    %v1801 = vunpack.c.l.b16 %v452
    %v1802 = vunpack.c.h.b16 %v452
    %v1803 = vunpack.c.l.b16 %v453
    %v1804 = vunpack.c.h.b16 %v453
    %v1805 = vunpack.c.l.b16 %v454
    %v1806 = vunpack.c.h.b16 %v454
    %v1807 = vunpack.c.l.b16 %v455
    %v1808 = vunpack.c.h.b16 %v455
    %v1809 = vunpack.c.l.b16 %v456
    %v1810 = vunpack.c.h.b16 %v456
    %v1811 = vunpack.c.l.b16 %v457
    %v1812 = vunpack.c.h.b16 %v457
    %v1813 = vunpack.c.l.b16 %v458
    %v1814 = vunpack.c.h.b16 %v458
    %v1815 = vunpack.c.l.b16 %v459
    %v1816 = vunpack.c.h.b16 %v459
    %v1817 = vunpack.c.l.b16 %v460
    %v1818 = vunpack.c.h.b16 %v460
    %v1819 = vunpack.c.l.b16 %v461
    %v1820 = vunpack.c.h.b16 %v461
    %v1821 = vunpack.c.l.b16 %v462
    %v1822 = vunpack.c.h.b16 %v462
    %v1823 = vunpack.c.l.b16 %v463
    %v1824 = vunpack.c.h.b16 %v463
    %v1825 = vunpack.c.l.b16 %v464
    %v1826 = vunpack.c.h.b16 %v464
    %v1827 = vunpack.c.l.b16 %v465
    %v1828 = vunpack.c.h.b16 %v465
    %v1829 = vunpack.c.l.b16 %v466
    %v1830 = vunpack.c.h.b16 %v466
    %v1831 = vunpack.c.l.b16 %v467
    %v1832 = vunpack.c.h.b16 %v467
    %v1833 = vunpack.c.l.b16 %v468
    %v1834 = vunpack.c.h.b16 %v468
    %v1835 = vunpack.c.l.b16 %v469
    %v1836 = vunpack.c.h.b16 %v469
    %v1837 = vunpack.c.l.b16 %v470
    %v1838 = vunpack.c.h.b16 %v470
    %v1839 = vunpack.c.l.b16 %v471
    %v1840 = vunpack.c.h.b16 %v471
    %v1841 = vunpack.c.l.b16 %v472
    %v1842 = vunpack.c.h.b16 %v472
    %v1843 = vunpack.c.l.b16 %v473
    %v1844 = vunpack.c.h.b16 %v473
    %v1845 = vunpack.c.l.b16 %v474
    %v1846 = vunpack.c.h.b16 %v474
    %v1847 = vunpack.c.l.b16 %v475
    %v1848 = vunpack.c.h.b16 %v475
    %v1849 = vunpack.c.l.b16 %v476
    %v1850 = vunpack.c.h.b16 %v476
    %v1851 = vunpack.c.l.b16 %v477
    %v1852 = vunpack.c.h.b16 %v477
    %v1853 = vunpack.c.l.b16 %v478
    %v1854 = vunpack.c.h.b16 %v478
    %v1855 = vunpack.c.l.b16 %v479
    %v1856 = vunpack.c.h.b16 %v479
    %v1857 = vunpack.c.l.b16 %v480
    %v1858 = vunpack.c.h.b16 %v480
    %v1859 = vunpack.c.l.b16 %v481
    %v1860 = vunpack.c.h.b16 %v481
    %v1861 = vunpack.c.l.b16 %v482
    %v1862 = vunpack.c.h.b16 %v482
    %v1863 = vunpack.c.l.b16 %v483
    %v1864 = vunpack.c.h.b16 %v483
    %v1865 = vunpack.c.l.b16 %v484
    %v1866 = vunpack.c.h.b16 %v484
    %v1867 = vunpack.c.l.b16 %v485
    %v1868 = vunpack.c.h.b16 %v485
    %v1869 = vunpack.c.l.b16 %v486
    %v1870 = vunpack.c.h.b16 %v486
    %v1871 = vunpack.c.l.b16 %v487
    %v1872 = vunpack.c.h.b16 %v487
    %v1873 = vunpack.c.l.b16 %v488
    %v1874 = vunpack.c.h.b16 %v488
    %v1875 = vunpack.c.l.b16 %v489
    %v1876 = vunpack.c.h.b16 %v489
    %v1877 = vunpack.c.l.b16 %v490
    %v1878 = vunpack.c.h.b16 %v490
    %v1879 = vunpack.c.l.b16 %v491
    %v1880 = vunpack.c.h.b16 %v491
    %v1881 = vunpack.c.l.b16 %v492
    %v1882 = vunpack.c.h.b16 %v492
    %v1883 = vunpack.c.l.b16 %v493
    %v1884 = vunpack.c.h.b16 %v493
    %v1885 = vunpack.c.l.b16 %v494
    %v1886 = vunpack.c.h.b16 %v494
    %v1887 = vunpack.c.l.b16 %v495
    %v1888 = vunpack.c.h.b16 %v495
    %v1889 = vunpack.c.l.b16 %v496
    %v1890 = vunpack.c.h.b16 %v496
    %v1891 = vunpack.c.l.b16 %v497
    %v1892 = vunpack.c.h.b16 %v497
    %v1893 = vunpack.c.l.b16 %v498
    %v1894 = vunpack.c.h.b16 %v498
    %v1895 = vunpack.c.l.b16 %v499
    %v1896 = vunpack.c.h.b16 %v499
    %v1897 = vunpack.c.l.b16 %v500
    %v1898 = vunpack.c.h.b16 %v500
    %v1899 = vunpack.c.l.b16 %v501
    %v1900 = vunpack.c.h.b16 %v501
    %v1901 = vunpack.c.l.b16 %v502
    %v1902 = vunpack.c.h.b16 %v502
    %v1903 = vunpack.c.l.b16 %v503
    %v1904 = vunpack.c.h.b16 %v503
    %v1905 = vunpack.c.l.b16 %v504
    %v1906 = vunpack.c.h.b16 %v504
    %v1907 = vunpack.c.l.b16 %v505
    %v1908 = vunpack.c.h.b16 %v505
    %v1909 = vunpack.c.l.b16 %v506
    %v1910 = vunpack.c.h.b16 %v506
    %v1911 = vunpack.c.l.b16 %v507
    %v1912 = vunpack.c.h.b16 %v507
    %v1913 = vunpack.c.l.b16 %v508
    %v1914 = vunpack.c.h.b16 %v508
    %v1915 = vunpack.c.l.b16 %v509
    %v1916 = vunpack.c.h.b16 %v509
    %v1917 = vunpack.c.l.b16 %v510
    %v1918 = vunpack.c.h.b16 %v510
    %v1919 = vunpack.c.l.b16 %v511
    %v1920 = vunpack.c.h.b16 %v511
    %v1921 = vunpack.c.l.b16 %v512
    %v1922 = vunpack.c.h.b16 %v512
    %v1923 = vunpack.c.l.b16 %v513
    %v1924 = vunpack.c.h.b16 %v513
    %v1925 = vunpack.c.l.b16 %v514
    %v1926 = vunpack.c.h.b16 %v514
    %v1927 = vunpack.c.l.b16 %v515
    %v1928 = vunpack.c.h.b16 %v515
    %v1929 = vunpack.c.l.b16 %v516
    %v1930 = vunpack.c.h.b16 %v516
    %v1931 = vunpack.c.l.b16 %v517
    %v1932 = vunpack.c.h.b16 %v517
    %v1933 = vunpack.c.l.b16 %v518
    %v1934 = vunpack.c.h.b16 %v518
    %v1935 = vunpack.c.l.b16 %v519
    %v1936 = vunpack.c.h.b16 %v519
    %v1937 = vunpack.c.l.b16 %v520
    %v1938 = vunpack.c.h.b16 %v520
    %v1939 = vunpack.c.l.b16 %v521
    %v1940 = vunpack.c.h.b16 %v521
    %v1941 = vunpack.c.l.b16 %v522
    %v1942 = vunpack.c.h.b16 %v522
    %v1943 = vunpack.c.l.b16 %v523
    %v1944 = vunpack.c.h.b16 %v523
    %v1945 = vunpack.c.l.b16 %v524
    %v1946 = vunpack.c.h.b16 %v524
    %v1947 = vunpack.c.l.b16 %v525
    %v1948 = vunpack.c.h.b16 %v525
    %v1949 = vunpack.c.l.b16 %v526
    %v1950 = vunpack.c.h.b16 %v526
    %v1951 = vunpack.c.l.b16 %v527
    %v1952 = vunpack.c.h.b16 %v527
    %v1953 = vunpack.c.l.b16 %v528
    %v1954 = vunpack.c.h.b16 %v528
    %v1955 = vunpack.c.l.b16 %v529
    %v1956 = vunpack.c.h.b16 %v529
    %v1957 = vunpack.c.l.b16 %v530
    %v1958 = vunpack.c.h.b16 %v530
    %v1959 = vunpack.c.l.b16 %v531
    %v1960 = vunpack.c.h.b16 %v531
    %v1961 = vunpack.c.l.b16 %v532
    %v1962 = vunpack.c.h.b16 %v532
    %v1963 = vunpack.c.l.b16 %v533
    %v1964 = vunpack.c.h.b16 %v533
    %v1965 = vunpack.c.l.b16 %v534
    %v1966 = vunpack.c.h.b16 %v534
    %v1967 = vunpack.c.l.b16 %v535
    %v1968 = vunpack.c.h.b16 %v535
    %v1969 = vunpack.c.l.b16 %v536
    %v1970 = vunpack.c.h.b16 %v536
    %v1971 = vunpack.c.l.b16 %v537
    %v1972 = vunpack.c.h.b16 %v537
    %v1973 = vunpack.c.l.b16 %v538
    %v1974 = vunpack.c.h.b16 %v538
    %v1975 = vunpack.c.l.b16 %v539
    %v1976 = vunpack.c.h.b16 %v539
    %v1977 = vunpack.c.l.b16 %v540
    %v1978 = vunpack.c.h.b16 %v540
    %v1979 = vunpack.c.l.b16 %v541
    %v1980 = vunpack.c.h.b16 %v541
    %v1981 = vunpack.c.l.b16 %v542
    %v1982 = vunpack.c.h.b16 %v542
    %v1983 = vunpack.c.l.b16 %v543
    %v1984 = vunpack.c.h.b16 %v543
    %v1985 = vunpack.c.l.b16 %v544
    %v1986 = vunpack.c.h.b16 %v544
    %v1987 = vunpack.c.l.b16 %v545
    %v1988 = vunpack.c.h.b16 %v545
    %v1989 = vunpack.c.l.b16 %v546
    %v1990 = vunpack.c.h.b16 %v546
    %v1991 = vunpack.c.l.b16 %v547
    %v1992 = vunpack.c.h.b16 %v547
    %v1993 = vunpack.c.l.b16 %v548
    %v1994 = vunpack.c.h.b16 %v548
    %v1995 = vunpack.c.l.b16 %v549
    %v1996 = vunpack.c.h.b16 %v549
    %v1997 = vunpack.c.l.b16 %v550
    %v1998 = vunpack.c.h.b16 %v550
    %v1999 = vunpack.c.l.b16 %v551
    %v2000 = vunpack.c.h.b16 %v551
    %v2001 = vunpack.c.l.b16 %v552
    %v2002 = vunpack.c.h.b16 %v552
    %v2003 = vunpack.c.l.b16 %v553
    %v2004 = vunpack.c.h.b16 %v553
    %v2005 = vunpack.c.l.b16 %v554
    %v2006 = vunpack.c.h.b16 %v554
    %v2007 = vunpack.c.l.b16 %v555
    %v2008 = vunpack.c.h.b16 %v555
    %v2009 = vunpack.c.l.b16 %v556
    %v2010 = vunpack.c.h.b16 %v556
    %v2011 = vunpack.c.l.b16 %v557
    %v2012 = vunpack.c.h.b16 %v557
    %v2013 = vunpack.c.l.b16 %v558
    %v2014 = vunpack.c.h.b16 %v558
    %v2015 = vunpack.c.l.b16 %v559
    %v2016 = vunpack.c.h.b16 %v559
    %v2017 = vunpack.c.l.b16 %v560
    %v2018 = vunpack.c.h.b16 %v560
    %v2019 = vunpack.c.l.b16 %v561
    %v2020 = vunpack.c.h.b16 %v561
    %v2021 = vunpack.c.l.b16 %v562
    %v2022 = vunpack.c.h.b16 %v562
    %v2023 = vunpack.c.l.b16 %v563
    %v2024 = vunpack.c.h.b16 %v563
    %v2025 = vunpack.c.l.b16 %v564
    %v2026 = vunpack.c.h.b16 %v564
    %v2027 = vunpack.c.l.b16 %v565
    %v2028 = vunpack.c.h.b16 %v565
    %v2029 = vunpack.c.l.b16 %v566
    %v2030 = vunpack.c.h.b16 %v566
    %v2031 = vunpack.c.l.b16 %v567
    %v2032 = vunpack.c.h.b16 %v567
    %v2033 = vunpack.c.l.b16 %v568
    %v2034 = vunpack.c.h.b16 %v568
    %v2035 = vunpack.c.l.b16 %v569
    %v2036 = vunpack.c.h.b16 %v569
    %v2037 = vunpack.c.l.b16 %v570
    %v2038 = vunpack.c.h.b16 %v570
    %v2039 = vunpack.c.l.b16 %v571
    %v2040 = vunpack.c.h.b16 %v571
    %v2041 = vunpack.c.l.b16 %v572
    %v2042 = vunpack.c.h.b16 %v572
    %v2043 = vunpack.c.l.b16 %v573
    %v2044 = vunpack.c.h.b16 %v573
    %v2045 = vunpack.c.l.b16 %v574
    %v2046 = vunpack.c.h.b16 %v574
    %v2047 = vunpack.c.l.b16 %v575
    %v2048 = vunpack.c.h.b16 %v575
    %v2049 = vunpack.c.l.b16 %v576
    %v2050 = vunpack.c.h.b16 %v576
    %v2051 = vunpack.c.l.b16 %v577
    %v2052 = vunpack.c.h.b16 %v577
    %v2053 = vunpack.c.l.b16 %v578
    %v2054 = vunpack.c.h.b16 %v578
    %v2055 = vunpack.c.l.b16 %v579
    %v2056 = vunpack.c.h.b16 %v579
    %v2057 = vunpack.c.l.b16 %v580
    %v2058 = vunpack.c.h.b16 %v580
    %v2059 = vunpack.c.l.b16 %v581
    %v2060 = vunpack.c.h.b16 %v581
    %v2061 = vunpack.c.l.b16 %v582
    %v2062 = vunpack.c.h.b16 %v582
    %v2063 = vunpack.c.l.b16 %v583
    %v2064 = vunpack.c.h.b16 %v583
    %v2065 = vunpack.c.l.b16 %v584
    %v2066 = vunpack.c.h.b16 %v584
    %v2067 = vunpack.c.l.b16 %v585
    %v2068 = vunpack.c.h.b16 %v585
    %v2069 = vunpack.c.l.b16 %v586
    %v2070 = vunpack.c.h.b16 %v586
    %v2071 = vunpack.c.l.b16 %v587
    %v2072 = vunpack.c.h.b16 %v587
    %v2073 = vunpack.c.l.b16 %v588
    %v2074 = vunpack.c.h.b16 %v588
    %v2075 = vunpack.c.l.b16 %v589
    %v2076 = vunpack.c.h.b16 %v589
    %v2077 = vunpack.c.l.b16 %v590
    %v2078 = vunpack.c.h.b16 %v590
    %v2079 = vunpack.c.l.b16 %v591
    %v2080 = vunpack.c.h.b16 %v591
    %v2081 = vunpack.c.l.b16 %v592
    %v2082 = vunpack.c.h.b16 %v592
    %v2083 = vunpack.c.l.b16 %v593
    %v2084 = vunpack.c.h.b16 %v593
    %v2085 = vunpack.c.l.b16 %v594
    %v2086 = vunpack.c.h.b16 %v594
    %v2087 = vunpack.c.l.b16 %v595
    %v2088 = vunpack.c.h.b16 %v595
    %v2089 = vunpack.c.l.b16 %v596
    %v2090 = vunpack.c.h.b16 %v596
    %v2091 = vunpack.c.l.b16 %v597
    %v2092 = vunpack.c.h.b16 %v597
    %v2093 = vunpack.c.l.b16 %v598
    %v2094 = vunpack.c.h.b16 %v598
    %v2095 = vunpack.c.l.b16 %v599
    %v2096 = vunpack.c.h.b16 %v599
    %v2097 = vunpack.c.l.b16 %v600
    %v2098 = vunpack.c.h.b16 %v600
    %v2099 = vunpack.c.l.b16 %v601
    %v2100 = vunpack.c.h.b16 %v601
    %v2101 = vunpack.c.l.b16 %v602
    %v2102 = vunpack.c.h.b16 %v602
    %v2103 = vunpack.c.l.b16 %v603
    %v2104 = vunpack.c.h.b16 %v603
    %v2105 = vunpack.c.l.b16 %v604
    %v2106 = vunpack.c.h.b16 %v604
    %v2107 = vunpack.c.l.b16 %v605
    %v2108 = vunpack.c.h.b16 %v605
    %v2109 = vunpack.c.l.b16 %v606
    %v2110 = vunpack.c.h.b16 %v606
    %v2111 = vunpack.c.l.b16 %v607
    %v2112 = vunpack.c.h.b16 %v607
    %v2113 = vunpack.c.l.b16 %v608
    %v2114 = vunpack.c.h.b16 %v608
    %v2115 = vunpack.c.l.b16 %v609
    %v2116 = vunpack.c.h.b16 %v609
    %v2117 = vunpack.c.l.b16 %v610
    %v2118 = vunpack.c.h.b16 %v610
    %v2119 = vunpack.c.l.b16 %v611
    %v2120 = vunpack.c.h.b16 %v611
    %v2121 = vunpack.c.l.b16 %v612
    %v2122 = vunpack.c.h.b16 %v612
    %v2123 = vunpack.c.l.b16 %v613
    %v2124 = vunpack.c.h.b16 %v613
    %v2125 = vunpack.c.l.b16 %v614
    %v2126 = vunpack.c.h.b16 %v614
    %v2127 = vunpack.c.l.b16 %v615
    %v2128 = vunpack.c.h.b16 %v615
    %v2129 = vunpack.c.l.b16 %v616
    %v2130 = vunpack.c.h.b16 %v616
    %v2131 = vunpack.c.l.b16 %v617
    %v2132 = vunpack.c.h.b16 %v617
    %v2133 = vunpack.c.l.b16 %v618
    %v2134 = vunpack.c.h.b16 %v618
    %v2135 = vunpack.c.l.b16 %v619
    %v2136 = vunpack.c.h.b16 %v619
    %v2137 = vunpack.c.l.b16 %v620
    %v2138 = vunpack.c.h.b16 %v620
    %v2139 = vunpack.c.l.b16 %v621
    %v2140 = vunpack.c.h.b16 %v621
    %v2141 = vunpack.c.l.b16 %v622
    %v2142 = vunpack.c.h.b16 %v622
    %v2143 = vunpack.c.l.b16 %v623
    %v2144 = vunpack.c.h.b16 %v623
    %v2145 = vunpack.c.l.b16 %v624
    %v2146 = vunpack.c.h.b16 %v624
    %v2147 = vunpack.c.l.b16 %v625
    %v2148 = vunpack.c.h.b16 %v625
    %v2149 = vunpack.c.l.b16 %v626
    %v2150 = vunpack.c.h.b16 %v626
    %v2151 = vunpack.c.l.b16 %v627
    %v2152 = vunpack.c.h.b16 %v627
    %v2153 = vunpack.c.l.b16 %v628
    %v2154 = vunpack.c.h.b16 %v628
    %v2155 = vunpack.c.l.b16 %v629
    %v2156 = vunpack.c.h.b16 %v629
    %v2157 = vunpack.c.l.b16 %v630
    %v2158 = vunpack.c.h.b16 %v630
    %v2159 = vunpack.c.l.b16 %v631
    %v2160 = vunpack.c.h.b16 %v631
    %v2161 = vunpack.c.l.b16 %v632
    %v2162 = vunpack.c.h.b16 %v632
    %v2163 = vunpack.c.l.b16 %v633
    %v2164 = vunpack.c.h.b16 %v633
    %v2165 = vunpack.c.l.b16 %v634
    %v2166 = vunpack.c.h.b16 %v634
    %v2167 = vunpack.c.l.b16 %v635
    %v2168 = vunpack.c.h.b16 %v635
    %v2169 = vunpack.c.l.b16 %v636
    %v2170 = vunpack.c.h.b16 %v636
    %v2171 = vunpack.c.l.b16 %v637
    %v2172 = vunpack.c.h.b16 %v637
    %v2173 = vunpack.c.l.b16 %v638
    %v2174 = vunpack.c.h.b16 %v638
    %v2175 = vunpack.c.l.b16 %v639
    %v2176 = vunpack.c.h.b16 %v639
    %v2177 = vunpack.c.l.b16 %v640
    %v2178 = vunpack.c.h.b16 %v640
    %v2179 = vunpack.c.l.b16 %v641
    %v2180 = vunpack.c.h.b16 %v641
    %v2181 = vunpack.c.l.b16 %v642
    %v2182 = vunpack.c.h.b16 %v642
    %v2183 = vunpack.c.l.b16 %v643
    %v2184 = vunpack.c.h.b16 %v643
    %v2185 = vunpack.c.l.b16 %v644
    %v2186 = vunpack.c.h.b16 %v644
    %v2187 = vunpack.c.l.b16 %v645
    %v2188 = vunpack.c.h.b16 %v645
    %v2189 = vunpack.c.l.b16 %v646
    %v2190 = vunpack.c.h.b16 %v646
    %v2191 = vunpack.c.l.b16 %v647
    %v2192 = vunpack.c.h.b16 %v647
    %v2193 = vunpack.c.l.b16 %v648
    %v2194 = vunpack.c.h.b16 %v648
    %v2195 = vunpack.c.l.b16 %v649
    %v2196 = vunpack.c.h.b16 %v649
    %v2197 = vunpack.c.l.b16 %v650
    %v2198 = vunpack.c.h.b16 %v650
    %v2199 = vunpack.c.l.b16 %v651
    %v2200 = vunpack.c.h.b16 %v651
    %v2201 = vunpack.c.l.b16 %v652
    %v2202 = vunpack.c.h.b16 %v652
    %v2203 = vunpack.c.l.b16 %v653
    %v2204 = vunpack.c.h.b16 %v653
    %v2205 = vunpack.c.l.b16 %v654
    %v2206 = vunpack.c.h.b16 %v654
    %v2207 = vunpack.c.l.b16 %v655
    %v2208 = vunpack.c.h.b16 %v655
    %v2209 = vunpack.c.l.b16 %v656
    %v2210 = vunpack.c.h.b16 %v656
    %v2211 = vunpack.c.l.b16 %v657
    %v2212 = vunpack.c.h.b16 %v657
    %v2213 = vunpack.c.l.b16 %v658
    %v2214 = vunpack.c.h.b16 %v658
    %v2215 = vunpack.c.l.b16 %v659
    %v2216 = vunpack.c.h.b16 %v659
    %v2217 = vunpack.c.l.b16 %v660
    %v2218 = vunpack.c.h.b16 %v660
    %v2219 = vunpack.c.l.b16 %v661
    %v2220 = vunpack.c.h.b16 %v661
    %v2221 = vunpack.c.l.b16 %v662
    %v2222 = vunpack.c.h.b16 %v662
    %v2223 = vunpack.c.l.b16 %v663
    %v2224 = vunpack.c.h.b16 %v663
    %v2225 = vunpack.c.l.b16 %v664
    %v2226 = vunpack.c.h.b16 %v664
    %v2227 = vunpack.c.l.b16 %v665
    %v2228 = vunpack.c.h.b16 %v665
    %v2229 = vunpack.c.l.b16 %v666
    %v2230 = vunpack.c.h.b16 %v666
    %v2231 = vunpack.c.l.b16 %v667
    %v2232 = vunpack.c.h.b16 %v667
    %v2233 = vunpack.c.l.b16 %v668
    %v2234 = vunpack.c.h.b16 %v668
    %v2235 = vunpack.c.l.b16 %v669
    %v2236 = vunpack.c.h.b16 %v669
    %v2237 = vunpack.c.l.b16 %v670
    %v2238 = vunpack.c.h.b16 %v670
    %v2239 = vunpack.c.l.b16 %v671
    %v2240 = vunpack.c.h.b16 %v671
    %v2241 = vunpack.c.l.b16 %v672
    %v2242 = vunpack.c.h.b16 %v672
    %v2243 = vunpack.c.l.b16 %v673
    %v2244 = vunpack.c.h.b16 %v673
    %v2245 = vunpack.c.l.b16 %v674
    %v2246 = vunpack.c.h.b16 %v674
    %v2247 = vunpack.c.l.b16 %v675
    %v2248 = vunpack.c.h.b16 %v675
    %v2249 = vunpack.c.l.b16 %v676
    %v2250 = vunpack.c.h.b16 %v676
    %v2251 = vunpack.c.l.b16 %v677
    %v2252 = vunpack.c.h.b16 %v677
    %v2253 = vunpack.c.l.b16 %v678
    %v2254 = vunpack.c.h.b16 %v678
    %v2255 = vunpack.c.l.b16 %v679
    %v2256 = vunpack.c.h.b16 %v679
    %v2257 = vunpack.c.l.b16 %v680
    %v2258 = vunpack.c.h.b16 %v680
    %v2259 = vpack.c.b16 %v1243, %v1235
    %v2260 = vpack.c.b16 %v1244, %v1236
    %v2261 = vpack.c.b16 %v1245, %v1237
    %v2262 = vpack.c.b16 %v1246, %v1238
    %v2263 = vpack.c.b16 %v1247, %v1239
    %v2264 = vpack.c.b16 %v1248, %v1240
    %v2265 = vpack.c.b16 %v1249, %v1241
    %v2266 = vpack.c.b16 %v1250, %v1242
    %v2267 = vpack.c.b16 %v1259, %v1251
    %v2268 = vpack.c.b16 %v1260, %v1252
    %v2269 = vpack.c.b16 %v1261, %v1253
    %v2270 = vpack.c.b16 %v1262, %v1254
    %v2271 = vpack.c.b16 %v1263, %v1255
    %v2272 = vpack.c.b16 %v1264, %v1256
    %v2273 = vpack.c.b16 %v1265, %v1257
    %v2274 = vpack.c.b16 %v1266, %v1258
    %v2275 = vpack.c.b16 %v1275, %v1267
    %v2276 = vpack.c.b16 %v1276, %v1268
    %v2277 = vpack.c.b16 %v1277, %v1269
    %v2278 = vpack.c.b16 %v1278, %v1270
    %v2279 = vpack.c.b16 %v1279, %v1271
    %v2280 = vpack.c.b16 %v1280, %v1272
    %v2281 = vpack.c.b16 %v1281, %v1273
    %v2282 = vpack.c.b16 %v1282, %v1274
    %v2283 = vpack.c.b16 %v1291, %v1283
    %v2284 = vpack.c.b16 %v1292, %v1284
    %v2285 = vpack.c.b16 %v1293, %v1285
    %v2286 = vpack.c.b16 %v1294, %v1286
    %v2287 = vpack.c.b16 %v1295, %v1287
    %v2288 = vpack.c.b16 %v1296, %v1288
    %v2289 = vpack.c.b16 %v1297, %v1289
    %v2290 = vpack.c.b16 %v1298, %v1290
    %v2291 = vpack.c.b16 %v1307, %v1299
    %v2292 = vpack.c.b16 %v1308, %v1300
    %v2293 = vpack.c.b16 %v1309, %v1301
    %v2294 = vpack.c.b16 %v1310, %v1302
    %v2295 = vpack.c.b16 %v1311, %v1303
    %v2296 = vpack.c.b16 %v1312, %v1304
    %v2297 = vpack.c.b16 %v1313, %v1305
    %v2298 = vpack.c.b16 %v1314, %v1306
    %v2299 = vpack.c.b16 %v1323, %v1315
    %v2300 = vpack.c.b16 %v1324, %v1316
    %v2301 = vpack.c.b16 %v1325, %v1317
    %v2302 = vpack.c.b16 %v1326, %v1318
    %v2303 = vpack.c.b16 %v1327, %v1319
    %v2304 = vpack.c.b16 %v1328, %v1320
    %v2305 = vpack.c.b16 %v1329, %v1321
    %v2306 = vpack.c.b16 %v1330, %v1322
    %v2307 = vpack.c.b16 %v1339, %v1331
    %v2308 = vpack.c.b16 %v1340, %v1332
    %v2309 = vpack.c.b16 %v1341, %v1333
    %v2310 = vpack.c.b16 %v1342, %v1334
    %v2311 = vpack.c.b16 %v1343, %v1335
    %v2312 = vpack.c.b16 %v1344, %v1336
    %v2313 = vpack.c.b16 %v1345, %v1337
    %v2314 = vpack.c.b16 %v1346, %v1338
    %v2315 = vpack.c.b16 %v1355, %v1347
    %v2316 = vpack.c.b16 %v1356, %v1348
    %v2317 = vpack.c.b16 %v1357, %v1349
    %v2318 = vpack.c.b16 %v1358, %v1350
    %v2319 = vpack.c.b16 %v1359, %v1351
    %v2320 = vpack.c.b16 %v1360, %v1352
    %v2321 = vpack.c.b16 %v1361, %v1353
    %v2322 = vpack.c.b16 %v1362, %v1354
    %v2323 = vpack.c.b16 %v1371, %v1363
    %v2324 = vpack.c.b16 %v1372, %v1364
    %v2325 = vpack.c.b16 %v1373, %v1365
    %v2326 = vpack.c.b16 %v1374, %v1366
    %v2327 = vpack.c.b16 %v1375, %v1367
    %v2328 = vpack.c.b16 %v1376, %v1368
    %v2329 = vpack.c.b16 %v1377, %v1369
    %v2330 = vpack.c.b16 %v1378, %v1370
    %v2331 = vpack.c.b16 %v1387, %v1379
    %v2332 = vpack.c.b16 %v1388, %v1380
    %v2333 = vpack.c.b16 %v1389, %v1381
    %v2334 = vpack.c.b16 %v1390, %v1382
    %v2335 = vpack.c.b16 %v1391, %v1383
    %v2336 = vpack.c.b16 %v1392, %v1384
    %v2337 = vpack.c.b16 %v1393, %v1385
    %v2338 = vpack.c.b16 %v1394, %v1386
    %v2339 = vpack.c.b16 %v1403, %v1395
    %v2340 = vpack.c.b16 %v1404, %v1396
    %v2341 = vpack.c.b16 %v1405, %v1397
    %v2342 = vpack.c.b16 %v1406, %v1398
    %v2343 = vpack.c.b16 %v1407, %v1399
    %v2344 = vpack.c.b16 %v1408, %v1400
    %v2345 = vpack.c.b16 %v1409, %v1401
    %v2346 = vpack.c.b16 %v1410, %v1402
    %v2347 = vpack.c.b16 %v1419, %v1411
    %v2348 = vpack.c.b16 %v1420, %v1412
    %v2349 = vpack.c.b16 %v1421, %v1413
    %v2350 = vpack.c.b16 %v1422, %v1414
    %v2351 = vpack.c.b16 %v1423, %v1415
    %v2352 = vpack.c.b16 %v1424, %v1416
    %v2353 = vpack.c.b16 %v1425, %v1417
    %v2354 = vpack.c.b16 %v1426, %v1418
    %v2355 = vpack.c.b16 %v1435, %v1427
    %v2356 = vpack.c.b16 %v1436, %v1428
    %v2357 = vpack.c.b16 %v1437, %v1429
    %v2358 = vpack.c.b16 %v1438, %v1430
    %v2359 = vpack.c.b16 %v1439, %v1431
    %v2360 = vpack.c.b16 %v1440, %v1432
    %v2361 = vpack.c.b16 %v1441, %v1433
    %v2362 = vpack.c.b16 %v1442, %v1434
    %v2363 = vpack.c.b16 %v1451, %v1443
    %v2364 = vpack.c.b16 %v1452, %v1444
    %v2365 = vpack.c.b16 %v1453, %v1445
    %v2366 = vpack.c.b16 %v1454, %v1446
    %v2367 = vpack.c.b16 %v1455, %v1447
    %v2368 = vpack.c.b16 %v1456, %v1448
    %v2369 = vpack.c.b16 %v1457, %v1449
    %v2370 = vpack.c.b16 %v1458, %v1450
    %v2371 = vpack.c.b16 %v1467, %v1459
    %v2372 = vpack.c.b16 %v1468, %v1460
    %v2373 = vpack.c.b16 %v1469, %v1461
    %v2374 = vpack.c.b16 %v1470, %v1462
    %v2375 = vpack.c.b16 %v1471, %v1463
    %v2376 = vpack.c.b16 %v1472, %v1464
    %v2377 = vpack.c.b16 %v1473, %v1465
    %v2378 = vpack.c.b16 %v1474, %v1466
    %v2379 = vpack.c.b16 %v1483, %v1475
    %v2380 = vpack.c.b16 %v1484, %v1476
    %v2381 = vpack.c.b16 %v1485, %v1477
    %v2382 = vpack.c.b16 %v1486, %v1478
    %v2383 = vpack.c.b16 %v1487, %v1479
    %v2384 = vpack.c.b16 %v1488, %v1480
    %v2385 = vpack.c.b16 %v1489, %v1481
    %v2386 = vpack.c.b16 %v1490, %v1482
    %v2387 = vpack.c.b16 %v1499, %v1491
    %v2388 = vpack.c.b16 %v1500, %v1492
    %v2389 = vpack.c.b16 %v1501, %v1493
    %v2390 = vpack.c.b16 %v1502, %v1494
    %v2391 = vpack.c.b16 %v1503, %v1495
    %v2392 = vpack.c.b16 %v1504, %v1496
    %v2393 = vpack.c.b16 %v1505, %v1497
    %v2394 = vpack.c.b16 %v1506, %v1498
    %v2395 = vpack.c.b16 %v1515, %v1507
    %v2396 = vpack.c.b16 %v1516, %v1508
    %v2397 = vpack.c.b16 %v1517, %v1509
    %v2398 = vpack.c.b16 %v1518, %v1510
    %v2399 = vpack.c.b16 %v1519, %v1511
    %v2400 = vpack.c.b16 %v1520, %v1512
    %v2401 = vpack.c.b16 %v1521, %v1513
    %v2402 = vpack.c.b16 %v1522, %v1514
    %v2403 = vpack.c.b16 %v1531, %v1523
    %v2404 = vpack.c.b16 %v1532, %v1524
    %v2405 = vpack.c.b16 %v1533, %v1525
    %v2406 = vpack.c.b16 %v1534, %v1526
    %v2407 = vpack.c.b16 %v1535, %v1527
    %v2408 = vpack.c.b16 %v1536, %v1528
    %v2409 = vpack.c.b16 %v1537, %v1529
    %v2410 = vpack.c.b16 %v1538, %v1530
    %v2411 = vpack.c.b16 %v1547, %v1539
    %v2412 = vpack.c.b16 %v1548, %v1540
    %v2413 = vpack.c.b16 %v1549, %v1541
    %v2414 = vpack.c.b16 %v1550, %v1542
    %v2415 = vpack.c.b16 %v1551, %v1543
    %v2416 = vpack.c.b16 %v1552, %v1544
    %v2417 = vpack.c.b16 %v1553, %v1545
    %v2418 = vpack.c.b16 %v1554, %v1546
    %v2419 = vpack.c.b16 %v1563, %v1555
    %v2420 = vpack.c.b16 %v1564, %v1556
    %v2421 = vpack.c.b16 %v1565, %v1557
    %v2422 = vpack.c.b16 %v1566, %v1558
    %v2423 = vpack.c.b16 %v1567, %v1559
    %v2424 = vpack.c.b16 %v1568, %v1560
    %v2425 = vpack.c.b16 %v1569, %v1561
    %v2426 = vpack.c.b16 %v1570, %v1562
    %v2427 = vpack.c.b16 %v1579, %v1571
    %v2428 = vpack.c.b16 %v1580, %v1572
    %v2429 = vpack.c.b16 %v1581, %v1573
    %v2430 = vpack.c.b16 %v1582, %v1574
    %v2431 = vpack.c.b16 %v1583, %v1575
    %v2432 = vpack.c.b16 %v1584, %v1576
    %v2433 = vpack.c.b16 %v1585, %v1577
    %v2434 = vpack.c.b16 %v1586, %v1578
    %v2435 = vpack.c.b16 %v1595, %v1587
    %v2436 = vpack.c.b16 %v1596, %v1588
    %v2437 = vpack.c.b16 %v1597, %v1589
    %v2438 = vpack.c.b16 %v1598, %v1590
    %v2439 = vpack.c.b16 %v1599, %v1591
    %v2440 = vpack.c.b16 %v1600, %v1592
    %v2441 = vpack.c.b16 %v1601, %v1593
    %v2442 = vpack.c.b16 %v1602, %v1594
    %v2443 = vpack.c.b16 %v1611, %v1603
    %v2444 = vpack.c.b16 %v1612, %v1604
    %v2445 = vpack.c.b16 %v1613, %v1605
    %v2446 = vpack.c.b16 %v1614, %v1606
    %v2447 = vpack.c.b16 %v1615, %v1607
    %v2448 = vpack.c.b16 %v1616, %v1608
    %v2449 = vpack.c.b16 %v1617, %v1609
    %v2450 = vpack.c.b16 %v1618, %v1610
    %v2451 = vpack.c.b16 %v1627, %v1619
    %v2452 = vpack.c.b16 %v1628, %v1620
    %v2453 = vpack.c.b16 %v1629, %v1621
    %v2454 = vpack.c.b16 %v1630, %v1622
    %v2455 = vpack.c.b16 %v1631, %v1623
    %v2456 = vpack.c.b16 %v1632, %v1624
    %v2457 = vpack.c.b16 %v1633, %v1625
    %v2458 = vpack.c.b16 %v1634, %v1626
    %v2459 = vpack.c.b16 %v1643, %v1635
    %v2460 = vpack.c.b16 %v1644, %v1636
    %v2461 = vpack.c.b16 %v1645, %v1637
    %v2462 = vpack.c.b16 %v1646, %v1638
    %v2463 = vpack.c.b16 %v1647, %v1639
    %v2464 = vpack.c.b16 %v1648, %v1640
    %v2465 = vpack.c.b16 %v1649, %v1641
    %v2466 = vpack.c.b16 %v1650, %v1642
    %v2467 = vpack.c.b16 %v1659, %v1651
    %v2468 = vpack.c.b16 %v1660, %v1652
    %v2469 = vpack.c.b16 %v1661, %v1653
    %v2470 = vpack.c.b16 %v1662, %v1654
    %v2471 = vpack.c.b16 %v1663, %v1655
    %v2472 = vpack.c.b16 %v1664, %v1656
    %v2473 = vpack.c.b16 %v1665, %v1657
    %v2474 = vpack.c.b16 %v1666, %v1658
    %v2475 = vpack.c.b16 %v1675, %v1667
    %v2476 = vpack.c.b16 %v1676, %v1668
    %v2477 = vpack.c.b16 %v1677, %v1669
    %v2478 = vpack.c.b16 %v1678, %v1670
    %v2479 = vpack.c.b16 %v1679, %v1671
    %v2480 = vpack.c.b16 %v1680, %v1672
    %v2481 = vpack.c.b16 %v1681, %v1673
    %v2482 = vpack.c.b16 %v1682, %v1674
    %v2483 = vpack.c.b16 %v1691, %v1683
    %v2484 = vpack.c.b16 %v1692, %v1684
    %v2485 = vpack.c.b16 %v1693, %v1685
    %v2486 = vpack.c.b16 %v1694, %v1686
    %v2487 = vpack.c.b16 %v1695, %v1687
    %v2488 = vpack.c.b16 %v1696, %v1688
    %v2489 = vpack.c.b16 %v1697, %v1689
    %v2490 = vpack.c.b16 %v1698, %v1690
    %v2491 = vpack.c.b16 %v1707, %v1699
    %v2492 = vpack.c.b16 %v1708, %v1700
    %v2493 = vpack.c.b16 %v1709, %v1701
    %v2494 = vpack.c.b16 %v1710, %v1702
    %v2495 = vpack.c.b16 %v1711, %v1703
    %v2496 = vpack.c.b16 %v1712, %v1704
    %v2497 = vpack.c.b16 %v1713, %v1705
    %v2498 = vpack.c.b16 %v1714, %v1706
    %v2499 = vpack.c.b16 %v1723, %v1715
    %v2500 = vpack.c.b16 %v1724, %v1716
    %v2501 = vpack.c.b16 %v1725, %v1717
    %v2502 = vpack.c.b16 %v1726, %v1718
    %v2503 = vpack.c.b16 %v1727, %v1719
    %v2504 = vpack.c.b16 %v1728, %v1720
    %v2505 = vpack.c.b16 %v1729, %v1721
    %v2506 = vpack.c.b16 %v1730, %v1722
    %v2507 = vpack.c.b16 %v1739, %v1731
    %v2508 = vpack.c.b16 %v1740, %v1732
    %v2509 = vpack.c.b16 %v1741, %v1733
    %v2510 = vpack.c.b16 %v1742, %v1734
    %v2511 = vpack.c.b16 %v1743, %v1735
    %v2512 = vpack.c.b16 %v1744, %v1736
    %v2513 = vpack.c.b16 %v1745, %v1737
    %v2514 = vpack.c.b16 %v1746, %v1738
    %v2515 = vpack.c.b16 %v1755, %v1747
    %v2516 = vpack.c.b16 %v1756, %v1748
    %v2517 = vpack.c.b16 %v1757, %v1749
    %v2518 = vpack.c.b16 %v1758, %v1750
    %v2519 = vpack.c.b16 %v1759, %v1751
    %v2520 = vpack.c.b16 %v1760, %v1752
    %v2521 = vpack.c.b16 %v1761, %v1753
    %v2522 = vpack.c.b16 %v1762, %v1754
    %v2523 = vpack.c.b16 %v1771, %v1763
    %v2524 = vpack.c.b16 %v1772, %v1764
    %v2525 = vpack.c.b16 %v1773, %v1765
    %v2526 = vpack.c.b16 %v1774, %v1766
    %v2527 = vpack.c.b16 %v1775, %v1767
    %v2528 = vpack.c.b16 %v1776, %v1768
    %v2529 = vpack.c.b16 %v1777, %v1769
    %v2530 = vpack.c.b16 %v1778, %v1770
    %v2531 = vpack.c.b16 %v1787, %v1779
    %v2532 = vpack.c.b16 %v1788, %v1780
    %v2533 = vpack.c.b16 %v1789, %v1781
    %v2534 = vpack.c.b16 %v1790, %v1782
    %v2535 = vpack.c.b16 %v1791, %v1783
    %v2536 = vpack.c.b16 %v1792, %v1784
    %v2537 = vpack.c.b16 %v1793, %v1785
    %v2538 = vpack.c.b16 %v1794, %v1786
    %v2539 = vpack.c.b16 %v1803, %v1795
    %v2540 = vpack.c.b16 %v1804, %v1796
    %v2541 = vpack.c.b16 %v1805, %v1797
    %v2542 = vpack.c.b16 %v1806, %v1798
    %v2543 = vpack.c.b16 %v1807, %v1799
    %v2544 = vpack.c.b16 %v1808, %v1800
    %v2545 = vpack.c.b16 %v1809, %v1801
    %v2546 = vpack.c.b16 %v1810, %v1802
    %v2547 = vpack.c.b16 %v1819, %v1811
    %v2548 = vpack.c.b16 %v1820, %v1812
    %v2549 = vpack.c.b16 %v1821, %v1813
    %v2550 = vpack.c.b16 %v1822, %v1814
    %v2551 = vpack.c.b16 %v1823, %v1815
    %v2552 = vpack.c.b16 %v1824, %v1816
    %v2553 = vpack.c.b16 %v1825, %v1817
    %v2554 = vpack.c.b16 %v1826, %v1818
    %v2555 = vpack.c.b16 %v1835, %v1827
    %v2556 = vpack.c.b16 %v1836, %v1828
    %v2557 = vpack.c.b16 %v1837, %v1829
    %v2558 = vpack.c.b16 %v1838, %v1830
    %v2559 = vpack.c.b16 %v1839, %v1831
    %v2560 = vpack.c.b16 %v1840, %v1832
    %v2561 = vpack.c.b16 %v1841, %v1833
    %v2562 = vpack.c.b16 %v1842, %v1834
    %v2563 = vpack.c.b16 %v1851, %v1843
    %v2564 = vpack.c.b16 %v1852, %v1844
    %v2565 = vpack.c.b16 %v1853, %v1845
    %v2566 = vpack.c.b16 %v1854, %v1846
    %v2567 = vpack.c.b16 %v1855, %v1847
    %v2568 = vpack.c.b16 %v1856, %v1848
    %v2569 = vpack.c.b16 %v1857, %v1849
    %v2570 = vpack.c.b16 %v1858, %v1850
    %v2571 = vpack.c.b16 %v1867, %v1859
    %v2572 = vpack.c.b16 %v1868, %v1860
    %v2573 = vpack.c.b16 %v1869, %v1861
    %v2574 = vpack.c.b16 %v1870, %v1862
    %v2575 = vpack.c.b16 %v1871, %v1863
    %v2576 = vpack.c.b16 %v1872, %v1864
    %v2577 = vpack.c.b16 %v1873, %v1865
    %v2578 = vpack.c.b16 %v1874, %v1866
    %v2579 = vpack.c.b16 %v1883, %v1875
    %v2580 = vpack.c.b16 %v1884, %v1876
    %v2581 = vpack.c.b16 %v1885, %v1877
    %v2582 = vpack.c.b16 %v1886, %v1878
    %v2583 = vpack.c.b16 %v1887, %v1879
    %v2584 = vpack.c.b16 %v1888, %v1880
    %v2585 = vpack.c.b16 %v1889, %v1881
    %v2586 = vpack.c.b16 %v1890, %v1882
    %v2587 = vpack.c.b16 %v1899, %v1891
    %v2588 = vpack.c.b16 %v1900, %v1892
    %v2589 = vpack.c.b16 %v1901, %v1893
    %v2590 = vpack.c.b16 %v1902, %v1894
    %v2591 = vpack.c.b16 %v1903, %v1895
    %v2592 = vpack.c.b16 %v1904, %v1896
    %v2593 = vpack.c.b16 %v1905, %v1897
    %v2594 = vpack.c.b16 %v1906, %v1898
    %v2595 = vpack.c.b16 %v1915, %v1907
    %v2596 = vpack.c.b16 %v1916, %v1908
    %v2597 = vpack.c.b16 %v1917, %v1909
    %v2598 = vpack.c.b16 %v1918, %v1910
    %v2599 = vpack.c.b16 %v1919, %v1911
    %v2600 = vpack.c.b16 %v1920, %v1912
    %v2601 = vpack.c.b16 %v1921, %v1913
    %v2602 = vpack.c.b16 %v1922, %v1914
    %v2603 = vpack.c.b16 %v1931, %v1923
    %v2604 = vpack.c.b16 %v1932, %v1924
    %v2605 = vpack.c.b16 %v1933, %v1925
    %v2606 = vpack.c.b16 %v1934, %v1926
    %v2607 = vpack.c.b16 %v1935, %v1927
    %v2608 = vpack.c.b16 %v1936, %v1928
    %v2609 = vpack.c.b16 %v1937, %v1929
    %v2610 = vpack.c.b16 %v1938, %v1930
    %v2611 = vpack.c.b16 %v1947, %v1939
    %v2612 = vpack.c.b16 %v1948, %v1940
    %v2613 = vpack.c.b16 %v1949, %v1941
    %v2614 = vpack.c.b16 %v1950, %v1942
    %v2615 = vpack.c.b16 %v1951, %v1943
    %v2616 = vpack.c.b16 %v1952, %v1944
    %v2617 = vpack.c.b16 %v1953, %v1945
    %v2618 = vpack.c.b16 %v1954, %v1946
    %v2619 = vpack.c.b16 %v1963, %v1955
    %v2620 = vpack.c.b16 %v1964, %v1956
    %v2621 = vpack.c.b16 %v1965, %v1957
    %v2622 = vpack.c.b16 %v1966, %v1958
    %v2623 = vpack.c.b16 %v1967, %v1959
    %v2624 = vpack.c.b16 %v1968, %v1960
    %v2625 = vpack.c.b16 %v1969, %v1961
    %v2626 = vpack.c.b16 %v1970, %v1962
    %v2627 = vpack.c.b16 %v1979, %v1971
    %v2628 = vpack.c.b16 %v1980, %v1972
    %v2629 = vpack.c.b16 %v1981, %v1973
    %v2630 = vpack.c.b16 %v1982, %v1974
    %v2631 = vpack.c.b16 %v1983, %v1975
    %v2632 = vpack.c.b16 %v1984, %v1976
    %v2633 = vpack.c.b16 %v1985, %v1977
    %v2634 = vpack.c.b16 %v1986, %v1978
    %v2635 = vpack.c.b16 %v1995, %v1987
    %v2636 = vpack.c.b16 %v1996, %v1988
    %v2637 = vpack.c.b16 %v1997, %v1989
    %v2638 = vpack.c.b16 %v1998, %v1990
    %v2639 = vpack.c.b16 %v1999, %v1991
    %v2640 = vpack.c.b16 %v2000, %v1992
    %v2641 = vpack.c.b16 %v2001, %v1993
    %v2642 = vpack.c.b16 %v2002, %v1994
    %v2643 = vpack.c.b16 %v2011, %v2003
    %v2644 = vpack.c.b16 %v2012, %v2004
    %v2645 = vpack.c.b16 %v2013, %v2005
    %v2646 = vpack.c.b16 %v2014, %v2006
    %v2647 = vpack.c.b16 %v2015, %v2007
    %v2648 = vpack.c.b16 %v2016, %v2008
    %v2649 = vpack.c.b16 %v2017, %v2009
    %v2650 = vpack.c.b16 %v2018, %v2010
    %v2651 = vpack.c.b16 %v2027, %v2019
    %v2652 = vpack.c.b16 %v2028, %v2020
    %v2653 = vpack.c.b16 %v2029, %v2021
    %v2654 = vpack.c.b16 %v2030, %v2022
    %v2655 = vpack.c.b16 %v2031, %v2023
    %v2656 = vpack.c.b16 %v2032, %v2024
    %v2657 = vpack.c.b16 %v2033, %v2025
    %v2658 = vpack.c.b16 %v2034, %v2026
    %v2659 = vpack.c.b16 %v2043, %v2035
    %v2660 = vpack.c.b16 %v2044, %v2036
    %v2661 = vpack.c.b16 %v2045, %v2037
    %v2662 = vpack.c.b16 %v2046, %v2038
    %v2663 = vpack.c.b16 %v2047, %v2039
    %v2664 = vpack.c.b16 %v2048, %v2040
    %v2665 = vpack.c.b16 %v2049, %v2041
    %v2666 = vpack.c.b16 %v2050, %v2042
    %v2667 = vpack.c.b16 %v2059, %v2051
    %v2668 = vpack.c.b16 %v2060, %v2052
    %v2669 = vpack.c.b16 %v2061, %v2053
    %v2670 = vpack.c.b16 %v2062, %v2054
    %v2671 = vpack.c.b16 %v2063, %v2055
    %v2672 = vpack.c.b16 %v2064, %v2056
    %v2673 = vpack.c.b16 %v2065, %v2057
    %v2674 = vpack.c.b16 %v2066, %v2058
    %v2675 = vpack.c.b16 %v2075, %v2067
    %v2676 = vpack.c.b16 %v2076, %v2068
    %v2677 = vpack.c.b16 %v2077, %v2069
    %v2678 = vpack.c.b16 %v2078, %v2070
    %v2679 = vpack.c.b16 %v2079, %v2071
    %v2680 = vpack.c.b16 %v2080, %v2072
    %v2681 = vpack.c.b16 %v2081, %v2073
    %v2682 = vpack.c.b16 %v2082, %v2074
    %v2683 = vpack.c.b16 %v2091, %v2083
    %v2684 = vpack.c.b16 %v2092, %v2084
    %v2685 = vpack.c.b16 %v2093, %v2085
    %v2686 = vpack.c.b16 %v2094, %v2086
    %v2687 = vpack.c.b16 %v2095, %v2087
    %v2688 = vpack.c.b16 %v2096, %v2088
    %v2689 = vpack.c.b16 %v2097, %v2089
    %v2690 = vpack.c.b16 %v2098, %v2090
    %v2691 = vpack.c.b16 %v2107, %v2099
    %v2692 = vpack.c.b16 %v2108, %v2100
    %v2693 = vpack.c.b16 %v2109, %v2101
    %v2694 = vpack.c.b16 %v2110, %v2102
    %v2695 = vpack.c.b16 %v2111, %v2103
    %v2696 = vpack.c.b16 %v2112, %v2104
    %v2697 = vpack.c.b16 %v2113, %v2105
    %v2698 = vpack.c.b16 %v2114, %v2106
    %v2699 = vpack.c.b16 %v2123, %v2115
    %v2700 = vpack.c.b16 %v2124, %v2116
    %v2701 = vpack.c.b16 %v2125, %v2117
    %v2702 = vpack.c.b16 %v2126, %v2118
    %v2703 = vpack.c.b16 %v2127, %v2119
    %v2704 = vpack.c.b16 %v2128, %v2120
    %v2705 = vpack.c.b16 %v2129, %v2121
    %v2706 = vpack.c.b16 %v2130, %v2122
    %v2707 = vpack.c.b16 %v2139, %v2131
    %v2708 = vpack.c.b16 %v2140, %v2132
    %v2709 = vpack.c.b16 %v2141, %v2133
    %v2710 = vpack.c.b16 %v2142, %v2134
    %v2711 = vpack.c.b16 %v2143, %v2135
    %v2712 = vpack.c.b16 %v2144, %v2136
    %v2713 = vpack.c.b16 %v2145, %v2137
    %v2714 = vpack.c.b16 %v2146, %v2138
    %v2715 = vpack.c.b16 %v2155, %v2147
    %v2716 = vpack.c.b16 %v2156, %v2148
    %v2717 = vpack.c.b16 %v2157, %v2149
    %v2718 = vpack.c.b16 %v2158, %v2150
    %v2719 = vpack.c.b16 %v2159, %v2151
    %v2720 = vpack.c.b16 %v2160, %v2152
    %v2721 = vpack.c.b16 %v2161, %v2153
    %v2722 = vpack.c.b16 %v2162, %v2154
    %v2723 = vpack.c.b16 %v2171, %v2163
    %v2724 = vpack.c.b16 %v2172, %v2164
    %v2725 = vpack.c.b16 %v2173, %v2165
    %v2726 = vpack.c.b16 %v2174, %v2166
    %v2727 = vpack.c.b16 %v2175, %v2167
    %v2728 = vpack.c.b16 %v2176, %v2168
    %v2729 = vpack.c.b16 %v2177, %v2169
    %v2730 = vpack.c.b16 %v2178, %v2170
    %v2731 = vpack.c.b16 %v2187, %v2179
    %v2732 = vpack.c.b16 %v2188, %v2180
    %v2733 = vpack.c.b16 %v2189, %v2181
    %v2734 = vpack.c.b16 %v2190, %v2182
    %v2735 = vpack.c.b16 %v2191, %v2183
    %v2736 = vpack.c.b16 %v2192, %v2184
    %v2737 = vpack.c.b16 %v2193, %v2185
    %v2738 = vpack.c.b16 %v2194, %v2186
    %v2739 = vpack.c.b16 %v2203, %v2195
    %v2740 = vpack.c.b16 %v2204, %v2196
    %v2741 = vpack.c.b16 %v2205, %v2197
    %v2742 = vpack.c.b16 %v2206, %v2198
    %v2743 = vpack.c.b16 %v2207, %v2199
    %v2744 = vpack.c.b16 %v2208, %v2200
    %v2745 = vpack.c.b16 %v2209, %v2201
    %v2746 = vpack.c.b16 %v2210, %v2202
    %v2747 = vpack.c.b16 %v2219, %v2211
    %v2748 = vpack.c.b16 %v2220, %v2212
    %v2749 = vpack.c.b16 %v2221, %v2213
    %v2750 = vpack.c.b16 %v2222, %v2214
    %v2751 = vpack.c.b16 %v2223, %v2215
    %v2752 = vpack.c.b16 %v2224, %v2216
    %v2753 = vpack.c.b16 %v2225, %v2217
    %v2754 = vpack.c.b16 %v2226, %v2218
    %v2755 = vpack.c.b16 %v2235, %v2227
    %v2756 = vpack.c.b16 %v2236, %v2228
    %v2757 = vpack.c.b16 %v2237, %v2229
    %v2758 = vpack.c.b16 %v2238, %v2230
    %v2759 = vpack.c.b16 %v2239, %v2231
    %v2760 = vpack.c.b16 %v2240, %v2232
    %v2761 = vpack.c.b16 %v2241, %v2233
    %v2762 = vpack.c.b16 %v2242, %v2234
    %v2763 = vpack.c.b16 %v2251, %v2243
    %v2764 = vpack.c.b16 %v2252, %v2244
    %v2765 = vpack.c.b16 %v2253, %v2245
    %v2766 = vpack.c.b16 %v2254, %v2246
    %v2767 = vpack.c.b16 %v2255, %v2247
    %v2768 = vpack.c.b16 %v2256, %v2248
    %v2769 = vpack.c.b16 %v2257, %v2249
    %v2770 = vpack.c.b16 %v2258, %v2250
    %3283 = vmatprep.subr.bf16.mxu0 %v2260
    %3284 = vmatpush1.bf16.msra.mxu0 %v2259
    %3285 = vmatprep.subr.bf16.mxu0 %v2268
    %3286 = vmatpush1.bf16.msra.mxu0 %v2267
    %3287 = vmatprep.subr.bf16.mxu0 %v2276
    %3288 = vmatpush1.bf16.msra.mxu0 %v2275
    %3289 = vmatprep.subr.bf16.mxu0 %v2284
    %3290 = vmatpush1.bf16.msra.mxu0 %v2283
    %3291 = vmatprep.subr.bf16.mxu0 %v2292
    %3292 = vmatpush1.bf16.msra.mxu0 %v2291
    %3293 = vmatprep.subr.bf16.mxu0 %v2300
    %3294 = vmatpush1.bf16.msra.mxu0 %v2299
    %3295 = vmatprep.subr.bf16.mxu0 %v2308
    %3296 = vmatpush1.bf16.msra.mxu0 %v2307
    %3297 = vmatprep.subr.bf16.mxu0 %v2316
    %3298 = vmatpush1.bf16.msra.mxu0 %v2315
    %3299 = vmatprep.subr.bf16.mxu0 %v2324
    %3300 = vmatpush1.bf16.msra.mxu0 %v2323
    %3301 = vmatprep.subr.bf16.mxu0 %v2332
    %3302 = vmatpush1.bf16.msra.mxu0 %v2331
    %3303 = vmatprep.subr.bf16.mxu0 %v2340
    %3304 = vmatpush1.bf16.msra.mxu0 %v2339
    %3305 = vmatprep.subr.bf16.mxu0 %v2348
    %3306 = vmatpush1.bf16.msra.mxu0 %v2347
    %3307 = vmatprep.subr.bf16.mxu0 %v2356
    %3308 = vmatpush1.bf16.msra.mxu0 %v2355
    %3309 = vmatprep.subr.bf16.mxu0 %v2364
    %3310 = vmatpush1.bf16.msra.mxu0 %v2363
    %3311 = vmatprep.subr.bf16.mxu0 %v2372
    %3312 = vmatpush1.bf16.msra.mxu0 %v2371
    %3313 = vmatprep.subr.bf16.mxu0 %v2380
    %3314 = vmatpush1.bf16.msra.mxu0 %v2379
    %3315 = vmatprep.mubr.bf16.mxu0 %v162
    %3316 = vmatmul.mubr.bf16.gmra.mrb[0].mxu0 %v161
    %v3317 = vpop.f32.mrb[0].mxu0
    %v3318 = vadd.f32 %v686, %v3317
    %v3319 = vpop.f32.mrb[0].mxu0
    %v3320 = vadd.f32 %v690, %v3319
    %v3321 = vpop.f32.mrb[0].mxu0
    %v3322 = vpop.f32.mrb[0].mxu0
    %3323 = vdwg.mxu0
    %3324 = vmatprep.subr.bf16.mxu0 %v2388
    %3325 = vmatpush1.bf16.msra.mxu0 %v2387
    %3326 = vmatprep.subr.bf16.mxu0 %v2396
    %3327 = vmatpush1.bf16.msra.mxu0 %v2395
    %3328 = vmatprep.subr.bf16.mxu0 %v2404
    %3329 = vmatpush1.bf16.msra.mxu0 %v2403
    %3330 = vmatprep.subr.bf16.mxu0 %v2412
    %3331 = vmatpush1.bf16.msra.mxu0 %v2411
    %3332 = vmatprep.subr.bf16.mxu0 %v2420
    %3333 = vmatpush1.bf16.msra.mxu0 %v2419
    %3334 = vmatprep.subr.bf16.mxu0 %v2428
    %3335 = vmatpush1.bf16.msra.mxu0 %v2427
    %3336 = vmatprep.subr.bf16.mxu0 %v2436
    %3337 = vmatpush1.bf16.msra.mxu0 %v2435
    %3338 = vmatprep.subr.bf16.mxu0 %v2444
    %3339 = vmatpush1.bf16.msra.mxu0 %v2443
    %3340 = vmatprep.subr.bf16.mxu0 %v2452
    %3341 = vmatpush1.bf16.msra.mxu0 %v2451
    %3342 = vmatprep.subr.bf16.mxu0 %v2460
    %3343 = vmatpush1.bf16.msra.mxu0 %v2459
    %3344 = vmatprep.subr.bf16.mxu0 %v2468
    %3345 = vmatpush1.bf16.msra.mxu0 %v2467
    %3346 = vmatprep.subr.bf16.mxu0 %v2476
    %3347 = vmatpush1.bf16.msra.mxu0 %v2475
    %3348 = vmatprep.subr.bf16.mxu0 %v2484
    %3349 = vmatpush1.bf16.msra.mxu0 %v2483
    %3350 = vmatprep.subr.bf16.mxu0 %v2492
    %3351 = vmatpush1.bf16.msra.mxu0 %v2491
    %3352 = vmatprep.subr.bf16.mxu0 %v2500
    %3353 = vmatpush1.bf16.msra.mxu0 %v2499
    %3354 = vmatprep.subr.bf16.mxu0 %v2508
    %3355 = vmatpush1.bf16.msra.mxu0 %v2507
    %3356 = vmatprep.mubr.bf16.mxu0 %v164
    %3357 = vmatmul.mubr.bf16.gmra.mrb[0].mxu0 %v163
    %v3358 = vpop.f32.mrb[0].mxu0
    %v3359 = vadd.f32 %v3318, %v3358
    %v3360 = vpop.f32.mrb[0].mxu0
    %v3361 = vadd.f32 %v3320, %v3360
    %v3362 = vpop.f32.mrb[0].mxu0
    %v3363 = vpop.f32.mrb[0].mxu0
    %3364 = vdwg.mxu0
    %3365 = vmatprep.subr.bf16.mxu0 %v2516
    %3366 = vmatpush1.bf16.msra.mxu0 %v2515
    %3367 = vmatprep.subr.bf16.mxu0 %v2524
    %3368 = vmatpush1.bf16.msra.mxu0 %v2523
    %3369 = vmatprep.subr.bf16.mxu0 %v2532
    %3370 = vmatpush1.bf16.msra.mxu0 %v2531
    %3371 = vmatprep.subr.bf16.mxu0 %v2540
    %3372 = vmatpush1.bf16.msra.mxu0 %v2539
    %3373 = vmatprep.subr.bf16.mxu0 %v2548
    %3374 = vmatpush1.bf16.msra.mxu0 %v2547
    %3375 = vmatprep.subr.bf16.mxu0 %v2556
    %3376 = vmatpush1.bf16.msra.mxu0 %v2555
    %3377 = vmatprep.subr.bf16.mxu0 %v2564
    %3378 = vmatpush1.bf16.msra.mxu0 %v2563
    %3379 = vmatprep.subr.bf16.mxu0 %v2572
    %3380 = vmatpush1.bf16.msra.mxu0 %v2571
    %3381 = vmatprep.subr.bf16.mxu0 %v2580
    %3382 = vmatpush1.bf16.msra.mxu0 %v2579
    %3383 = vmatprep.subr.bf16.mxu0 %v2588
    %3384 = vmatpush1.bf16.msra.mxu0 %v2587
    %3385 = vmatprep.subr.bf16.mxu0 %v2596
    %3386 = vmatpush1.bf16.msra.mxu0 %v2595
    %3387 = vmatprep.subr.bf16.mxu0 %v2604
    %3388 = vmatpush1.bf16.msra.mxu0 %v2603
    %3389 = vmatprep.subr.bf16.mxu0 %v2612
    %3390 = vmatpush1.bf16.msra.mxu0 %v2611
    %3391 = vmatprep.subr.bf16.mxu0 %v2620
    %3392 = vmatpush1.bf16.msra.mxu0 %v2619
    %3393 = vmatprep.subr.bf16.mxu0 %v2628
    %3394 = vmatpush1.bf16.msra.mxu0 %v2627
    %3395 = vmatprep.subr.bf16.mxu0 %v2636
    %3396 = vmatpush1.bf16.msra.mxu0 %v2635
    %3397 = vmatprep.mubr.bf16.mxu0 %v166
    %3398 = vmatmul.mubr.bf16.gmra.mrb[0].mxu0 %v165
    %v3399 = vpop.f32.mrb[0].mxu0
    %v3400 = vadd.f32 %v3359, %v3399
    %v3401 = vpop.f32.mrb[0].mxu0
    %v3402 = vadd.f32 %v3361, %v3401
    %v3403 = vpop.f32.mrb[0].mxu0
    %v3404 = vpop.f32.mrb[0].mxu0
    %3405 = vdwg.mxu0
    %3406 = vmatprep.subr.bf16.mxu0 %v2644
    %3407 = vmatpush1.bf16.msra.mxu0 %v2643
    %3408 = vmatprep.subr.bf16.mxu0 %v2652
    %3409 = vmatpush1.bf16.msra.mxu0 %v2651
    %3410 = vmatprep.subr.bf16.mxu0 %v2660
    %3411 = vmatpush1.bf16.msra.mxu0 %v2659
    %3412 = vmatprep.subr.bf16.mxu0 %v2668
    %3413 = vmatpush1.bf16.msra.mxu0 %v2667
    %3414 = vmatprep.subr.bf16.mxu0 %v2676
    %3415 = vmatpush1.bf16.msra.mxu0 %v2675
    %3416 = vmatprep.subr.bf16.mxu0 %v2684
    %3417 = vmatpush1.bf16.msra.mxu0 %v2683
    %3418 = vmatprep.subr.bf16.mxu0 %v2692
    %3419 = vmatpush1.bf16.msra.mxu0 %v2691
    %3420 = vmatprep.subr.bf16.mxu0 %v2700
    %3421 = vmatpush1.bf16.msra.mxu0 %v2699
    %3422 = vmatprep.subr.bf16.mxu0 %v2708
    %3423 = vmatpush1.bf16.msra.mxu0 %v2707
    %3424 = vmatprep.subr.bf16.mxu0 %v2716
    %3425 = vmatpush1.bf16.msra.mxu0 %v2715
    %3426 = vmatprep.subr.bf16.mxu0 %v2724
    %3427 = vmatpush1.bf16.msra.mxu0 %v2723
    %3428 = vmatprep.subr.bf16.mxu0 %v2732
    %3429 = vmatpush1.bf16.msra.mxu0 %v2731
    %3430 = vmatprep.subr.bf16.mxu0 %v2740
    %3431 = vmatpush1.bf16.msra.mxu0 %v2739
    %3432 = vmatprep.subr.bf16.mxu0 %v2748
    %3433 = vmatpush1.bf16.msra.mxu0 %v2747
    %3434 = vmatprep.subr.bf16.mxu0 %v2756
    %3435 = vmatpush1.bf16.msra.mxu0 %v2755
    %3436 = vmatprep.subr.bf16.mxu0 %v2764
    %3437 = vmatpush1.bf16.msra.mxu0 %v2763
    %3438 = vmatprep.mubr.bf16.mxu0 %v168
    %3439 = vmatmul.mubr.bf16.gmra.mrb[0].mxu0 %v167
    %v3440 = vpop.f32.mrb[0].mxu0
    %v3441 = vadd.f32 %v3400, %v3440
    %v3442 = vpop.f32.mrb[0].mxu0
    %v3443 = vadd.f32 %v3402, %v3442
    %v3444 = vpop.f32.mrb[0].mxu0
    %v3445 = vpop.f32.mrb[0].mxu0
    %3446 = vdwg.mxu0
    %3447 = vmatprep.subr.bf16.mxu0 %v2262
    %3448 = vmatpush1.bf16.msra.mxu0 %v2261
    %3449 = vmatprep.subr.bf16.mxu0 %v2270
    %3450 = vmatpush1.bf16.msra.mxu0 %v2269
    %3451 = vmatprep.subr.bf16.mxu0 %v2278
    %3452 = vmatpush1.bf16.msra.mxu0 %v2277
    %3453 = vmatprep.subr.bf16.mxu0 %v2286
    %3454 = vmatpush1.bf16.msra.mxu0 %v2285
    %3455 = vmatprep.subr.bf16.mxu0 %v2294
    %3456 = vmatpush1.bf16.msra.mxu0 %v2293
    %3457 = vmatprep.subr.bf16.mxu0 %v2302
    %3458 = vmatpush1.bf16.msra.mxu0 %v2301
    %3459 = vmatprep.subr.bf16.mxu0 %v2310
    %3460 = vmatpush1.bf16.msra.mxu0 %v2309
    %3461 = vmatprep.subr.bf16.mxu0 %v2318
    %3462 = vmatpush1.bf16.msra.mxu0 %v2317
    %3463 = vmatprep.subr.bf16.mxu0 %v2326
    %3464 = vmatpush1.bf16.msra.mxu0 %v2325
    %3465 = vmatprep.subr.bf16.mxu0 %v2334
    %3466 = vmatpush1.bf16.msra.mxu0 %v2333
    %3467 = vmatprep.subr.bf16.mxu0 %v2342
    %3468 = vmatpush1.bf16.msra.mxu0 %v2341
    %3469 = vmatprep.subr.bf16.mxu0 %v2350
    %3470 = vmatpush1.bf16.msra.mxu0 %v2349
    %3471 = vmatprep.subr.bf16.mxu0 %v2358
    %3472 = vmatpush1.bf16.msra.mxu0 %v2357
    %3473 = vmatprep.subr.bf16.mxu0 %v2366
    %3474 = vmatpush1.bf16.msra.mxu0 %v2365
    %3475 = vmatprep.subr.bf16.mxu0 %v2374
    %3476 = vmatpush1.bf16.msra.mxu0 %v2373
    %3477 = vmatprep.subr.bf16.mxu0 %v2382
    %3478 = vmatpush1.bf16.msra.mxu0 %v2381
    %3479 = vmatprep.mubr.bf16.mxu0 %v162
    %3480 = vmatmul.mubr.bf16.gmra.mrb[0].mxu0 %v161
    %v3481 = vpop.f32.mrb[0].mxu0
    %v3482 = vadd.f32 %v694, %v3481
    %v3483 = vpop.f32.mrb[0].mxu0
    %v3484 = vadd.f32 %v698, %v3483
    %v3485 = vpop.f32.mrb[0].mxu0
    %v3486 = vpop.f32.mrb[0].mxu0
    %3487 = vdwg.mxu0
    %3488 = vmatprep.subr.bf16.mxu0 %v2390
    %3489 = vmatpush1.bf16.msra.mxu0 %v2389
    %3490 = vmatprep.subr.bf16.mxu0 %v2398
    %3491 = vmatpush1.bf16.msra.mxu0 %v2397
    %3492 = vmatprep.subr.bf16.mxu0 %v2406
    %3493 = vmatpush1.bf16.msra.mxu0 %v2405
    %3494 = vmatprep.subr.bf16.mxu0 %v2414
    %3495 = vmatpush1.bf16.msra.mxu0 %v2413
    %3496 = vmatprep.subr.bf16.mxu0 %v2422
    %3497 = vmatpush1.bf16.msra.mxu0 %v2421
    %3498 = vmatprep.subr.bf16.mxu0 %v2430
    %3499 = vmatpush1.bf16.msra.mxu0 %v2429
    %3500 = vmatprep.subr.bf16.mxu0 %v2438
    %3501 = vmatpush1.bf16.msra.mxu0 %v2437
    %3502 = vmatprep.subr.bf16.mxu0 %v2446
    %3503 = vmatpush1.bf16.msra.mxu0 %v2445
    %3504 = vmatprep.subr.bf16.mxu0 %v2454
    %3505 = vmatpush1.bf16.msra.mxu0 %v2453
    %3506 = vmatprep.subr.bf16.mxu0 %v2462
    %3507 = vmatpush1.bf16.msra.mxu0 %v2461
    %3508 = vmatprep.subr.bf16.mxu0 %v2470
    %3509 = vmatpush1.bf16.msra.mxu0 %v2469
    %3510 = vmatprep.subr.bf16.mxu0 %v2478
    %3511 = vmatpush1.bf16.msra.mxu0 %v2477
    %3512 = vmatprep.subr.bf16.mxu0 %v2486
    %3513 = vmatpush1.bf16.msra.mxu0 %v2485
    %3514 = vmatprep.subr.bf16.mxu0 %v2494
    %3515 = vmatpush1.bf16.msra.mxu0 %v2493
    %3516 = vmatprep.subr.bf16.mxu0 %v2502
    %3517 = vmatpush1.bf16.msra.mxu0 %v2501
    %3518 = vmatprep.subr.bf16.mxu0 %v2510
    %3519 = vmatpush1.bf16.msra.mxu0 %v2509
    %3520 = vmatprep.mubr.bf16.mxu0 %v164
    %3521 = vmatmul.mubr.bf16.gmra.mrb[0].mxu0 %v163
    %v3522 = vpop.f32.mrb[0].mxu0
    %v3523 = vadd.f32 %v3482, %v3522
    %v3524 = vpop.f32.mrb[0].mxu0
    %v3525 = vadd.f32 %v3484, %v3524
    %v3526 = vpop.f32.mrb[0].mxu0
    %v3527 = vpop.f32.mrb[0].mxu0
    %3528 = vdwg.mxu0
    %3529 = vmatprep.subr.bf16.mxu0 %v2518
    %3530 = vmatpush1.bf16.msra.mxu0 %v2517
    %3531 = vmatprep.subr.bf16.mxu0 %v2526
    %3532 = vmatpush1.bf16.msra.mxu0 %v2525
    %3533 = vmatprep.subr.bf16.mxu0 %v2534
    %3534 = vmatpush1.bf16.msra.mxu0 %v2533
    %3535 = vmatprep.subr.bf16.mxu0 %v2542
    %3536 = vmatpush1.bf16.msra.mxu0 %v2541
    %3537 = vmatprep.subr.bf16.mxu0 %v2550
    %3538 = vmatpush1.bf16.msra.mxu0 %v2549
    %3539 = vmatprep.subr.bf16.mxu0 %v2558
    %3540 = vmatpush1.bf16.msra.mxu0 %v2557
    %3541 = vmatprep.subr.bf16.mxu0 %v2566
    %3542 = vmatpush1.bf16.msra.mxu0 %v2565
    %3543 = vmatprep.subr.bf16.mxu0 %v2574
    %3544 = vmatpush1.bf16.msra.mxu0 %v2573
    %3545 = vmatprep.subr.bf16.mxu0 %v2582
    %3546 = vmatpush1.bf16.msra.mxu0 %v2581
    %3547 = vmatprep.subr.bf16.mxu0 %v2590
    %3548 = vmatpush1.bf16.msra.mxu0 %v2589
    %3549 = vmatprep.subr.bf16.mxu0 %v2598
    %3550 = vmatpush1.bf16.msra.mxu0 %v2597
    %3551 = vmatprep.subr.bf16.mxu0 %v2606
    %3552 = vmatpush1.bf16.msra.mxu0 %v2605
    %3553 = vmatprep.subr.bf16.mxu0 %v2614
    %3554 = vmatpush1.bf16.msra.mxu0 %v2613
    %3555 = vmatprep.subr.bf16.mxu0 %v2622
    %3556 = vmatpush1.bf16.msra.mxu0 %v2621
    %3557 = vmatprep.subr.bf16.mxu0 %v2630
    %3558 = vmatpush1.bf16.msra.mxu0 %v2629
    %3559 = vmatprep.subr.bf16.mxu0 %v2638
    %3560 = vmatpush1.bf16.msra.mxu0 %v2637
    %3561 = vmatprep.mubr.bf16.mxu0 %v166
    %3562 = vmatmul.mubr.bf16.gmra.mrb[0].mxu0 %v165
    %v3563 = vpop.f32.mrb[0].mxu0
    %v3564 = vadd.f32 %v3523, %v3563
    %v3565 = vpop.f32.mrb[0].mxu0
    %v3566 = vadd.f32 %v3525, %v3565
    %v3567 = vpop.f32.mrb[0].mxu0
    %v3568 = vpop.f32.mrb[0].mxu0
    %3569 = vdwg.mxu0
    %3570 = vmatprep.subr.bf16.mxu0 %v2646
    %3571 = vmatpush1.bf16.msra.mxu0 %v2645
    %3572 = vmatprep.subr.bf16.mxu0 %v2654
    %3573 = vmatpush1.bf16.msra.mxu0 %v2653
    %3574 = vmatprep.subr.bf16.mxu0 %v2662
    %3575 = vmatpush1.bf16.msra.mxu0 %v2661
    %3576 = vmatprep.subr.bf16.mxu0 %v2670
    %3577 = vmatpush1.bf16.msra.mxu0 %v2669
    %3578 = vmatprep.subr.bf16.mxu0 %v2678
    %3579 = vmatpush1.bf16.msra.mxu0 %v2677
    %3580 = vmatprep.subr.bf16.mxu0 %v2686
    %3581 = vmatpush1.bf16.msra.mxu0 %v2685
    %3582 = vmatprep.subr.bf16.mxu0 %v2694
    %3583 = vmatpush1.bf16.msra.mxu0 %v2693
    %3584 = vmatprep.subr.bf16.mxu0 %v2702
    %3585 = vmatpush1.bf16.msra.mxu0 %v2701
    %3586 = vmatprep.subr.bf16.mxu0 %v2710
    %3587 = vmatpush1.bf16.msra.mxu0 %v2709
    %3588 = vmatprep.subr.bf16.mxu0 %v2718
    %3589 = vmatpush1.bf16.msra.mxu0 %v2717
    %3590 = vmatprep.subr.bf16.mxu0 %v2726
    %3591 = vmatpush1.bf16.msra.mxu0 %v2725
    %3592 = vmatprep.subr.bf16.mxu0 %v2734
    %3593 = vmatpush1.bf16.msra.mxu0 %v2733
    %3594 = vmatprep.subr.bf16.mxu0 %v2742
    %3595 = vmatpush1.bf16.msra.mxu0 %v2741
    %3596 = vmatprep.subr.bf16.mxu0 %v2750
    %3597 = vmatpush1.bf16.msra.mxu0 %v2749
    %3598 = vmatprep.subr.bf16.mxu0 %v2758
    %3599 = vmatpush1.bf16.msra.mxu0 %v2757
    %3600 = vmatprep.subr.bf16.mxu0 %v2766
    %3601 = vmatpush1.bf16.msra.mxu0 %v2765
    %3602 = vmatprep.mubr.bf16.mxu0 %v168
    %3603 = vmatmul.mubr.bf16.gmra.mrb[0].mxu0 %v167
    %v3604 = vpop.f32.mrb[0].mxu0
    %v3605 = vadd.f32 %v3564, %v3604
    %v3606 = vpop.f32.mrb[0].mxu0
    %v3607 = vadd.f32 %v3566, %v3606
    %v3608 = vpop.f32.mrb[0].mxu0
    %v3609 = vpop.f32.mrb[0].mxu0
    %3610 = vdwg.mxu0
    %3611 = vmatprep.subr.bf16.mxu0 %v2264
    %3612 = vmatpush1.bf16.msra.mxu0 %v2263
    %3613 = vmatprep.subr.bf16.mxu0 %v2272
    %3614 = vmatpush1.bf16.msra.mxu0 %v2271
    %3615 = vmatprep.subr.bf16.mxu0 %v2280
    %3616 = vmatpush1.bf16.msra.mxu0 %v2279
    %3617 = vmatprep.subr.bf16.mxu0 %v2288
    %3618 = vmatpush1.bf16.msra.mxu0 %v2287
    %3619 = vmatprep.subr.bf16.mxu0 %v2296
    %3620 = vmatpush1.bf16.msra.mxu0 %v2295
    %3621 = vmatprep.subr.bf16.mxu0 %v2304
    %3622 = vmatpush1.bf16.msra.mxu0 %v2303
    %3623 = vmatprep.subr.bf16.mxu0 %v2312
    %3624 = vmatpush1.bf16.msra.mxu0 %v2311
    %3625 = vmatprep.subr.bf16.mxu0 %v2320
    %3626 = vmatpush1.bf16.msra.mxu0 %v2319
    %3627 = vmatprep.subr.bf16.mxu0 %v2328
    %3628 = vmatpush1.bf16.msra.mxu0 %v2327
    %3629 = vmatprep.subr.bf16.mxu0 %v2336
    %3630 = vmatpush1.bf16.msra.mxu0 %v2335
    %3631 = vmatprep.subr.bf16.mxu0 %v2344
    %3632 = vmatpush1.bf16.msra.mxu0 %v2343
    %3633 = vmatprep.subr.bf16.mxu0 %v2352
    %3634 = vmatpush1.bf16.msra.mxu0 %v2351
    %3635 = vmatprep.subr.bf16.mxu0 %v2360
    %3636 = vmatpush1.bf16.msra.mxu0 %v2359
    %3637 = vmatprep.subr.bf16.mxu0 %v2368
    %3638 = vmatpush1.bf16.msra.mxu0 %v2367
    %3639 = vmatprep.subr.bf16.mxu0 %v2376
    %3640 = vmatpush1.bf16.msra.mxu0 %v2375
    %3641 = vmatprep.subr.bf16.mxu0 %v2384
    %3642 = vmatpush1.bf16.msra.mxu0 %v2383
    %3643 = vmatprep.mubr.bf16.mxu0 %v162
    %3644 = vmatmul.mubr.bf16.gmra.mrb[0].mxu0 %v161
    %v3645 = vpop.f32.mrb[0].mxu0
    %v3646 = vadd.f32 %v702, %v3645
    %v3647 = vpop.f32.mrb[0].mxu0
    %v3648 = vadd.f32 %v706, %v3647
    %v3649 = vpop.f32.mrb[0].mxu0
    %v3650 = vpop.f32.mrb[0].mxu0
    %3651 = vdwg.mxu0
    %3652 = vmatprep.subr.bf16.mxu0 %v2392
    %3653 = vmatpush1.bf16.msra.mxu0 %v2391
    %3654 = vmatprep.subr.bf16.mxu0 %v2400
    %3655 = vmatpush1.bf16.msra.mxu0 %v2399
    %3656 = vmatprep.subr.bf16.mxu0 %v2408
    %3657 = vmatpush1.bf16.msra.mxu0 %v2407
    %3658 = vmatprep.subr.bf16.mxu0 %v2416
    %3659 = vmatpush1.bf16.msra.mxu0 %v2415
    %3660 = vmatprep.subr.bf16.mxu0 %v2424
    %3661 = vmatpush1.bf16.msra.mxu0 %v2423
    %3662 = vmatprep.subr.bf16.mxu0 %v2432
    %3663 = vmatpush1.bf16.msra.mxu0 %v2431
    %3664 = vmatprep.subr.bf16.mxu0 %v2440
    %3665 = vmatpush1.bf16.msra.mxu0 %v2439
    %3666 = vmatprep.subr.bf16.mxu0 %v2448
    %3667 = vmatpush1.bf16.msra.mxu0 %v2447
    %3668 = vmatprep.subr.bf16.mxu0 %v2456
    %3669 = vmatpush1.bf16.msra.mxu0 %v2455
    %3670 = vmatprep.subr.bf16.mxu0 %v2464
    %3671 = vmatpush1.bf16.msra.mxu0 %v2463
    %3672 = vmatprep.subr.bf16.mxu0 %v2472
    %3673 = vmatpush1.bf16.msra.mxu0 %v2471
    %3674 = vmatprep.subr.bf16.mxu0 %v2480
    %3675 = vmatpush1.bf16.msra.mxu0 %v2479
    %3676 = vmatprep.subr.bf16.mxu0 %v2488
    %3677 = vmatpush1.bf16.msra.mxu0 %v2487
    %3678 = vmatprep.subr.bf16.mxu0 %v2496
    %3679 = vmatpush1.bf16.msra.mxu0 %v2495
    %3680 = vmatprep.subr.bf16.mxu0 %v2504
    %3681 = vmatpush1.bf16.msra.mxu0 %v2503
    %3682 = vmatprep.subr.bf16.mxu0 %v2512
    %3683 = vmatpush1.bf16.msra.mxu0 %v2511
    %3684 = vmatprep.mubr.bf16.mxu0 %v164
    %3685 = vmatmul.mubr.bf16.gmra.mrb[0].mxu0 %v163
    %v3686 = vpop.f32.mrb[0].mxu0
    %v3687 = vadd.f32 %v3646, %v3686
    %v3688 = vpop.f32.mrb[0].mxu0
    %v3689 = vadd.f32 %v3648, %v3688
    %v3690 = vpop.f32.mrb[0].mxu0
    %v3691 = vpop.f32.mrb[0].mxu0
    %3692 = vdwg.mxu0
    %3693 = vmatprep.subr.bf16.mxu0 %v2520
    %3694 = vmatpush1.bf16.msra.mxu0 %v2519
    %3695 = vmatprep.subr.bf16.mxu0 %v2528
    %3696 = vmatpush1.bf16.msra.mxu0 %v2527
    %3697 = vmatprep.subr.bf16.mxu0 %v2536
    %3698 = vmatpush1.bf16.msra.mxu0 %v2535
    %3699 = vmatprep.subr.bf16.mxu0 %v2544
    %3700 = vmatpush1.bf16.msra.mxu0 %v2543
    %3701 = vmatprep.subr.bf16.mxu0 %v2552
    %3702 = vmatpush1.bf16.msra.mxu0 %v2551
    %3703 = vmatprep.subr.bf16.mxu0 %v2560
    %3704 = vmatpush1.bf16.msra.mxu0 %v2559
    %3705 = vmatprep.subr.bf16.mxu0 %v2568
    %3706 = vmatpush1.bf16.msra.mxu0 %v2567
    %3707 = vmatprep.subr.bf16.mxu0 %v2576
    %3708 = vmatpush1.bf16.msra.mxu0 %v2575
    %3709 = vmatprep.subr.bf16.mxu0 %v2584
    %3710 = vmatpush1.bf16.msra.mxu0 %v2583
    %3711 = vmatprep.subr.bf16.mxu0 %v2592
    %3712 = vmatpush1.bf16.msra.mxu0 %v2591
    %3713 = vmatprep.subr.bf16.mxu0 %v2600
    %3714 = vmatpush1.bf16.msra.mxu0 %v2599
    %3715 = vmatprep.subr.bf16.mxu0 %v2608
    %3716 = vmatpush1.bf16.msra.mxu0 %v2607
    %3717 = vmatprep.subr.bf16.mxu0 %v2616
    %3718 = vmatpush1.bf16.msra.mxu0 %v2615
    %3719 = vmatprep.subr.bf16.mxu0 %v2624
    %3720 = vmatpush1.bf16.msra.mxu0 %v2623
    %3721 = vmatprep.subr.bf16.mxu0 %v2632
    %3722 = vmatpush1.bf16.msra.mxu0 %v2631
    %3723 = vmatprep.subr.bf16.mxu0 %v2640
    %3724 = vmatpush1.bf16.msra.mxu0 %v2639
    %3725 = vmatprep.mubr.bf16.mxu0 %v166
    %3726 = vmatmul.mubr.bf16.gmra.mrb[0].mxu0 %v165
    %v3727 = vpop.f32.mrb[0].mxu0
    %v3728 = vadd.f32 %v3687, %v3727
    %v3729 = vpop.f32.mrb[0].mxu0
    %v3730 = vadd.f32 %v3689, %v3729
    %v3731 = vpop.f32.mrb[0].mxu0
    %v3732 = vpop.f32.mrb[0].mxu0
    %3733 = vdwg.mxu0
    %3734 = vmatprep.subr.bf16.mxu0 %v2648
    %3735 = vmatpush1.bf16.msra.mxu0 %v2647
    %3736 = vmatprep.subr.bf16.mxu0 %v2656
    %3737 = vmatpush1.bf16.msra.mxu0 %v2655
    %3738 = vmatprep.subr.bf16.mxu0 %v2664
    %3739 = vmatpush1.bf16.msra.mxu0 %v2663
    %3740 = vmatprep.subr.bf16.mxu0 %v2672
    %3741 = vmatpush1.bf16.msra.mxu0 %v2671
    %3742 = vmatprep.subr.bf16.mxu0 %v2680
    %3743 = vmatpush1.bf16.msra.mxu0 %v2679
    %3744 = vmatprep.subr.bf16.mxu0 %v2688
    %3745 = vmatpush1.bf16.msra.mxu0 %v2687
    %3746 = vmatprep.subr.bf16.mxu0 %v2696
    %3747 = vmatpush1.bf16.msra.mxu0 %v2695
    %3748 = vmatprep.subr.bf16.mxu0 %v2704
    %3749 = vmatpush1.bf16.msra.mxu0 %v2703
    %3750 = vmatprep.subr.bf16.mxu0 %v2712
    %3751 = vmatpush1.bf16.msra.mxu0 %v2711
    %3752 = vmatprep.subr.bf16.mxu0 %v2720
    %3753 = vmatpush1.bf16.msra.mxu0 %v2719
    %3754 = vmatprep.subr.bf16.mxu0 %v2728
    %3755 = vmatpush1.bf16.msra.mxu0 %v2727
    %3756 = vmatprep.subr.bf16.mxu0 %v2736
    %3757 = vmatpush1.bf16.msra.mxu0 %v2735
    %3758 = vmatprep.subr.bf16.mxu0 %v2744
    %3759 = vmatpush1.bf16.msra.mxu0 %v2743
    %3760 = vmatprep.subr.bf16.mxu0 %v2752
    %3761 = vmatpush1.bf16.msra.mxu0 %v2751
    %3762 = vmatprep.subr.bf16.mxu0 %v2760
    %3763 = vmatpush1.bf16.msra.mxu0 %v2759
    %3764 = vmatprep.subr.bf16.mxu0 %v2768
    %3765 = vmatpush1.bf16.msra.mxu0 %v2767
    %3766 = vmatprep.mubr.bf16.mxu0 %v168
    %3767 = vmatmul.mubr.bf16.gmra.mrb[0].mxu0 %v167
    %v3768 = vpop.f32.mrb[0].mxu0
    %v3769 = vadd.f32 %v3728, %v3768
    %v3770 = vpop.f32.mrb[0].mxu0
    %v3771 = vadd.f32 %v3730, %v3770
    %v3772 = vpop.f32.mrb[0].mxu0
    %v3773 = vpop.f32.mrb[0].mxu0
    %3774 = vdwg.mxu0
    %3775 = vmatprep.subr.bf16.mxu0 %v2266
    %3776 = vmatpush1.bf16.msra.mxu0 %v2265
    %3777 = vmatprep.subr.bf16.mxu0 %v2274
    %3778 = vmatpush1.bf16.msra.mxu0 %v2273
    %3779 = vmatprep.subr.bf16.mxu0 %v2282
    %3780 = vmatpush1.bf16.msra.mxu0 %v2281
    %3781 = vmatprep.subr.bf16.mxu0 %v2290
    %3782 = vmatpush1.bf16.msra.mxu0 %v2289
    %3783 = vmatprep.subr.bf16.mxu0 %v2298
    %3784 = vmatpush1.bf16.msra.mxu0 %v2297
    %3785 = vmatprep.subr.bf16.mxu0 %v2306
    %3786 = vmatpush1.bf16.msra.mxu0 %v2305
    %3787 = vmatprep.subr.bf16.mxu0 %v2314
    %3788 = vmatpush1.bf16.msra.mxu0 %v2313
    %3789 = vmatprep.subr.bf16.mxu0 %v2322
    %3790 = vmatpush1.bf16.msra.mxu0 %v2321
    %3791 = vmatprep.subr.bf16.mxu0 %v2330
    %3792 = vmatpush1.bf16.msra.mxu0 %v2329
    %3793 = vmatprep.subr.bf16.mxu0 %v2338
    %3794 = vmatpush1.bf16.msra.mxu0 %v2337
    %3795 = vmatprep.subr.bf16.mxu0 %v2346
    %3796 = vmatpush1.bf16.msra.mxu0 %v2345
    %3797 = vmatprep.subr.bf16.mxu0 %v2354
    %3798 = vmatpush1.bf16.msra.mxu0 %v2353
    %3799 = vmatprep.subr.bf16.mxu0 %v2362
    %3800 = vmatpush1.bf16.msra.mxu0 %v2361
    %3801 = vmatprep.subr.bf16.mxu0 %v2370
    %3802 = vmatpush1.bf16.msra.mxu0 %v2369
    %3803 = vmatprep.subr.bf16.mxu0 %v2378
    %3804 = vmatpush1.bf16.msra.mxu0 %v2377
    %3805 = vmatprep.subr.bf16.mxu0 %v2386
    %3806 = vmatpush1.bf16.msra.mxu0 %v2385
    %3807 = vmatprep.mubr.bf16.mxu0 %v162
    %3808 = vmatmul.mubr.bf16.gmra.mrb[0].mxu0 %v161
    %v3809 = vpop.f32.mrb[0].mxu0
    %v3810 = vadd.f32 %v710, %v3809
    %v3811 = vpop.f32.mrb[0].mxu0
    %v3812 = vadd.f32 %v714, %v3811
    %v3813 = vpop.f32.mrb[0].mxu0
    %v3814 = vpop.f32.mrb[0].mxu0
    %3815 = vdwg.mxu0
    %3816 = vmatprep.subr.bf16.mxu0 %v2394
    %3817 = vmatpush1.bf16.msra.mxu0 %v2393
    %3818 = vmatprep.subr.bf16.mxu0 %v2402
    %3819 = vmatpush1.bf16.msra.mxu0 %v2401
    %3820 = vmatprep.subr.bf16.mxu0 %v2410
    %3821 = vmatpush1.bf16.msra.mxu0 %v2409
    %3822 = vmatprep.subr.bf16.mxu0 %v2418
    %3823 = vmatpush1.bf16.msra.mxu0 %v2417
    %3824 = vmatprep.subr.bf16.mxu0 %v2426
    %3825 = vmatpush1.bf16.msra.mxu0 %v2425
    %3826 = vmatprep.subr.bf16.mxu0 %v2434
    %3827 = vmatpush1.bf16.msra.mxu0 %v2433
    %3828 = vmatprep.subr.bf16.mxu0 %v2442
    %3829 = vmatpush1.bf16.msra.mxu0 %v2441
    %3830 = vmatprep.subr.bf16.mxu0 %v2450
    %3831 = vmatpush1.bf16.msra.mxu0 %v2449
    %3832 = vmatprep.subr.bf16.mxu0 %v2458
    %3833 = vmatpush1.bf16.msra.mxu0 %v2457
    %3834 = vmatprep.subr.bf16.mxu0 %v2466
    %3835 = vmatpush1.bf16.msra.mxu0 %v2465
    %3836 = vmatprep.subr.bf16.mxu0 %v2474
    %3837 = vmatpush1.bf16.msra.mxu0 %v2473
    %3838 = vmatprep.subr.bf16.mxu0 %v2482
    %3839 = vmatpush1.bf16.msra.mxu0 %v2481
    %3840 = vmatprep.subr.bf16.mxu0 %v2490
    %3841 = vmatpush1.bf16.msra.mxu0 %v2489
    %3842 = vmatprep.subr.bf16.mxu0 %v2498
    %3843 = vmatpush1.bf16.msra.mxu0 %v2497
    %3844 = vmatprep.subr.bf16.mxu0 %v2506
    %3845 = vmatpush1.bf16.msra.mxu0 %v2505
    %3846 = vmatprep.subr.bf16.mxu0 %v2514
    %3847 = vmatpush1.bf16.msra.mxu0 %v2513
    %3848 = vmatprep.mubr.bf16.mxu0 %v164
    %3849 = vmatmul.mubr.bf16.gmra.mrb[0].mxu0 %v163
    %v3850 = vpop.f32.mrb[0].mxu0
    %v3851 = vadd.f32 %v3810, %v3850
    %v3852 = vpop.f32.mrb[0].mxu0
    %v3853 = vadd.f32 %v3812, %v3852
    %v3854 = vpop.f32.mrb[0].mxu0
    %v3855 = vpop.f32.mrb[0].mxu0
    %3856 = vdwg.mxu0
    %3857 = vmatprep.subr.bf16.mxu0 %v2522
    %3858 = vmatpush1.bf16.msra.mxu0 %v2521
    %3859 = vmatprep.subr.bf16.mxu0 %v2530
    %3860 = vmatpush1.bf16.msra.mxu0 %v2529
    %3861 = vmatprep.subr.bf16.mxu0 %v2538
    %3862 = vmatpush1.bf16.msra.mxu0 %v2537
    %3863 = vmatprep.subr.bf16.mxu0 %v2546
    %3864 = vmatpush1.bf16.msra.mxu0 %v2545
    %3865 = vmatprep.subr.bf16.mxu0 %v2554
    %3866 = vmatpush1.bf16.msra.mxu0 %v2553
    %3867 = vmatprep.subr.bf16.mxu0 %v2562
    %3868 = vmatpush1.bf16.msra.mxu0 %v2561
    %3869 = vmatprep.subr.bf16.mxu0 %v2570
    %3870 = vmatpush1.bf16.msra.mxu0 %v2569
    %3871 = vmatprep.subr.bf16.mxu0 %v2578
    %3872 = vmatpush1.bf16.msra.mxu0 %v2577
    %3873 = vmatprep.subr.bf16.mxu0 %v2586
    %3874 = vmatpush1.bf16.msra.mxu0 %v2585
    %3875 = vmatprep.subr.bf16.mxu0 %v2594
    %3876 = vmatpush1.bf16.msra.mxu0 %v2593
    %3877 = vmatprep.subr.bf16.mxu0 %v2602
    %3878 = vmatpush1.bf16.msra.mxu0 %v2601
    %3879 = vmatprep.subr.bf16.mxu0 %v2610
    %3880 = vmatpush1.bf16.msra.mxu0 %v2609
    %3881 = vmatprep.subr.bf16.mxu0 %v2618
    %3882 = vmatpush1.bf16.msra.mxu0 %v2617
    %3883 = vmatprep.subr.bf16.mxu0 %v2626
    %3884 = vmatpush1.bf16.msra.mxu0 %v2625
    %3885 = vmatprep.subr.bf16.mxu0 %v2634
    %3886 = vmatpush1.bf16.msra.mxu0 %v2633
    %3887 = vmatprep.subr.bf16.mxu0 %v2642
    %3888 = vmatpush1.bf16.msra.mxu0 %v2641
    %3889 = vmatprep.mubr.bf16.mxu0 %v166
    %3890 = vmatmul.mubr.bf16.gmra.mrb[0].mxu0 %v165
    %v3891 = vpop.f32.mrb[0].mxu0
    %v3892 = vadd.f32 %v3851, %v3891
    %v3893 = vpop.f32.mrb[0].mxu0
    %v3894 = vadd.f32 %v3853, %v3893
    %v3895 = vpop.f32.mrb[0].mxu0
    %v3896 = vpop.f32.mrb[0].mxu0
    %3897 = vdwg.mxu0
    %3898 = vmatprep.subr.bf16.mxu0 %v2650
    %3899 = vmatpush1.bf16.msra.mxu0 %v2649
    %3900 = vmatprep.subr.bf16.mxu0 %v2658
    %3901 = vmatpush1.bf16.msra.mxu0 %v2657
    %3902 = vmatprep.subr.bf16.mxu0 %v2666
    %3903 = vmatpush1.bf16.msra.mxu0 %v2665
    %3904 = vmatprep.subr.bf16.mxu0 %v2674
    %3905 = vmatpush1.bf16.msra.mxu0 %v2673
    %3906 = vmatprep.subr.bf16.mxu0 %v2682
    %3907 = vmatpush1.bf16.msra.mxu0 %v2681
    %3908 = vmatprep.subr.bf16.mxu0 %v2690
    %3909 = vmatpush1.bf16.msra.mxu0 %v2689
    %3910 = vmatprep.subr.bf16.mxu0 %v2698
    %3911 = vmatpush1.bf16.msra.mxu0 %v2697
    %3912 = vmatprep.subr.bf16.mxu0 %v2706
    %3913 = vmatpush1.bf16.msra.mxu0 %v2705
    %3914 = vmatprep.subr.bf16.mxu0 %v2714
    %3915 = vmatpush1.bf16.msra.mxu0 %v2713
    %3916 = vmatprep.subr.bf16.mxu0 %v2722
    %3917 = vmatpush1.bf16.msra.mxu0 %v2721
    %3918 = vmatprep.subr.bf16.mxu0 %v2730
    %3919 = vmatpush1.bf16.msra.mxu0 %v2729
    %3920 = vmatprep.subr.bf16.mxu0 %v2738
    %3921 = vmatpush1.bf16.msra.mxu0 %v2737
    %3922 = vmatprep.subr.bf16.mxu0 %v2746
    %3923 = vmatpush1.bf16.msra.mxu0 %v2745
    %3924 = vmatprep.subr.bf16.mxu0 %v2754
    %3925 = vmatpush1.bf16.msra.mxu0 %v2753
    %3926 = vmatprep.subr.bf16.mxu0 %v2762
    %3927 = vmatpush1.bf16.msra.mxu0 %v2761
    %3928 = vmatprep.subr.bf16.mxu0 %v2770
    %3929 = vmatpush1.bf16.msra.mxu0 %v2769
    %3930 = vmatprep.mubr.bf16.mxu0 %v168
    %3931 = vmatmul.mubr.bf16.gmra.mrb[0].mxu0 %v167
    %v3932 = vpop.f32.mrb[0].mxu0
    %v3933 = vadd.f32 %v3892, %v3932
    %v3934 = vpop.f32.mrb[0].mxu0
    %v3935 = vadd.f32 %v3894, %v3934
    %v3936 = vpop.f32.mrb[0].mxu0
    %v3937 = vpop.f32.mrb[0].mxu0
    %3938 = vdwg.mxu0
    %v3939 = vadd.f32 %v3441, %v3443
    %v3940 = vadd.f32 %v3939, %v3605
    %v3941 = vadd.f32 %v3940, %v3607
    %v3942 = vadd.f32 %v3941, %v3769
    %v3943 = vadd.f32 %v3942, %v3771
    %v3944 = vadd.f32 %v3943, %v3933
    %v3945 = vadd.f32 %v3944, %v3935
    %3946 = vadd.xlane.f32.xlu0 %v3945
    %v3947 = vpop.xlane.xlu0 %3946
    %v3948 = vrcp.pop 1024.0
    %v3949 = vmul.f32 %v3947, %v3948
    %v3950 = vsub.f32 %v3441, %v3949
    %v3951 = vsub.f32 %v3443, %v3949
    %v3952 = vsub.f32 %v3605, %v3949
    %v3953 = vsub.f32 %v3607, %v3949
    %v3954 = vsub.f32 %v3769, %v3949
    %v3955 = vsub.f32 %v3771, %v3949
    %v3956 = vsub.f32 %v3933, %v3949
    %v3957 = vsub.f32 %v3935, %v3949
    %v3958 = vmul.f32 %v3950, %v3950
    %v3959 = vmul.f32 %v3951, %v3951
    %v3960 = vmul.f32 %v3952, %v3952
    %v3961 = vmul.f32 %v3953, %v3953
    %v3962 = vmul.f32 %v3954, %v3954
    %v3963 = vmul.f32 %v3955, %v3955
    %v3964 = vmul.f32 %v3956, %v3956
    %v3965 = vmul.f32 %v3957, %v3957
    %v3966 = vadd.f32 %v3958, %v3959
    %v3967 = vadd.f32 %v3966, %v3960
    %v3968 = vadd.f32 %v3967, %v3961
    %v3969 = vadd.f32 %v3968, %v3962
    %v3970 = vadd.f32 %v3969, %v3963
    %v3971 = vadd.f32 %v3970, %v3964
    %v3972 = vadd.f32 %v3971, %v3965
    %3973 = vadd.xlane.f32.xlu0 %v3972
    %v3974 = vpop.xlane.xlu0 %3973
    %v3975 = vmul.f32 %v3974, %v3948
    %v3976 = vadd.f32 %v3975, 1e-05
    %v3977 = vrsqrt.pop %v3976
    %v3978 = vmul.f32 %v3950, %v3977
    %v3979 = vmul.f32 %v3951, %v3977
    %v3980 = vmul.f32 %v3952, %v3977
    %v3981 = vmul.f32 %v3953, %v3977
    %v3982 = vmul.f32 %v3954, %v3977
    %v3983 = vmul.f32 %v3955, %v3977
    %v3984 = vmul.f32 %v3956, %v3977
    %v3985 = vmul.f32 %v3957, %v3977
    %v3986 = vmax.f32 %v3978, 0.0
    %v3987 = vmax.f32 %v3979, 0.0
    %v3988 = vmax.f32 %v3980, 0.0
    %v3989 = vmax.f32 %v3981, 0.0
    %v3990 = vmax.f32 %v3982, 0.0
    %v3991 = vmax.f32 %v3983, 0.0
    %v3992 = vmax.f32 %v3984, 0.0
    %v3993 = vmax.f32 %v3985, 0.0
    %3994 = vst [vmem:[%s10] sm:$0xff] %v3986
    %3995 = vst [vmem:[%s10 + $0x8] sm:$0xff] %v3987
    %3996 = vst [vmem:[%s10 + $0x10] sm:$0xff] %v3988
    %3997 = vst [vmem:[%s10 + $0x18] sm:$0xff] %v3989
    %3998 = vst [vmem:[%s10 + $0x20] sm:$0xff] %v3990
    %3999 = vst [vmem:[%s10 + $0x28] sm:$0xff] %v3991
    %4000 = vst [vmem:[%s10 + $0x30] sm:$0xff] %v3992
    %4001 = vst [vmem:[%s10 + $0x38] sm:$0xff] %v3993
    %v4002 = vpack.c.bf16 %v3986, %v3986
    %v4003 = vpack.c.bf16 %v3987, %v3987
    %v4004 = vpack.c.bf16 %v3988, %v3988
    %v4005 = vpack.c.bf16 %v3989, %v3989
    %v4006 = vpack.c.bf16 %v3990, %v3990
    %v4007 = vpack.c.bf16 %v3991, %v3991
    %v4008 = vpack.c.bf16 %v3992, %v3992
    %v4009 = vpack.c.bf16 %v3993, %v3993
    %v4010 = vld [vmem:[#allocation6] sm:$0xff]
    %v4011 = vld [vmem:[#allocation6 + $0x8] sm:$0xff]
    %v4012 = vld [vmem:[#allocation6 + $0x10] sm:$0xf]
    %v4013 = vld [vmem:[#allocation6 + $0x14] sm:$0xff]
    %v4014 = vld [vmem:[#allocation6 + $0x1c] sm:$0xff]
    %v4015 = vld [vmem:[#allocation6 + $0x24] sm:$0xf]
    %v4016 = vld [vmem:[#allocation6 + $0x28] sm:$0xff]
    %v4017 = vld [vmem:[#allocation6 + $0x30] sm:$0xff]
    %v4018 = vld [vmem:[#allocation6 + $0x38] sm:$0xf]
    %v4019 = vld [vmem:[#allocation6 + $0x3c] sm:$0xff]
    %v4020 = vld [vmem:[#allocation6 + $0x44] sm:$0xff]
    %v4021 = vld [vmem:[#allocation6 + $0x4c] sm:$0xf]
    %v4022 = vld [vmem:[#allocation6 + $0x50] sm:$0xff]
    %v4023 = vld [vmem:[#allocation6 + $0x58] sm:$0xff]
    %v4024 = vld [vmem:[#allocation6 + $0x60] sm:$0xf]
    %v4025 = vld [vmem:[#allocation6 + $0x64] sm:$0xff]
    %v4026 = vld [vmem:[#allocation6 + $0x6c] sm:$0xff]
    %v4027 = vld [vmem:[#allocation6 + $0x74] sm:$0xf]
    %v4028 = vld [vmem:[#allocation6 + $0x78] sm:$0xff]
    %v4029 = vld [vmem:[#allocation6 + $0x80] sm:$0xff]
    %v4030 = vld [vmem:[#allocation6 + $0x88] sm:$0xf]
    %v4031 = vld [vmem:[#allocation6 + $0x8c] sm:$0xff]
    %v4032 = vld [vmem:[#allocation6 + $0x94] sm:$0xff]
    %v4033 = vld [vmem:[#allocation6 + $0x9c] sm:$0xf]
    %v4034 = vld [vmem:[#allocation6 + $0xa0] sm:$0xff]
    %v4035 = vld [vmem:[#allocation6 + $0xa8] sm:$0xff]
    %v4036 = vld [vmem:[#allocation6 + $0xb0] sm:$0xf]
    %v4037 = vld [vmem:[#allocation6 + $0xb4] sm:$0xff]
    %v4038 = vld [vmem:[#allocation6 + $0xbc] sm:$0xff]
    %v4039 = vld [vmem:[#allocation6 + $0xc4] sm:$0xf]
    %v4040 = vld [vmem:[#allocation6 + $0xc8] sm:$0xff]
    %v4041 = vld [vmem:[#allocation6 + $0xd0] sm:$0xff]
    %v4042 = vld [vmem:[#allocation6 + $0xd8] sm:$0xf]
    %v4043 = vld [vmem:[#allocation6 + $0xdc] sm:$0xff]
    %v4044 = vld [vmem:[#allocation6 + $0xe4] sm:$0xff]
    %v4045 = vld [vmem:[#allocation6 + $0xec] sm:$0xf]
    %v4046 = vld [vmem:[#allocation6 + $0xf0] sm:$0xff]
    %v4047 = vld [vmem:[#allocation6 + $0xf8] sm:$0xff]
    %v4048 = vld [vmem:[#allocation6 + $0x100] sm:$0xf]
    %v4049 = vld [vmem:[#allocation6 + $0x104] sm:$0xff]
    %v4050 = vld [vmem:[#allocation6 + $0x10c] sm:$0xff]
    %v4051 = vld [vmem:[#allocation6 + $0x114] sm:$0xf]
    %v4052 = vld [vmem:[#allocation6 + $0x118] sm:$0xff]
    %v4053 = vld [vmem:[#allocation6 + $0x120] sm:$0xff]
    %v4054 = vld [vmem:[#allocation6 + $0x128] sm:$0xf]
    %v4055 = vld [vmem:[#allocation6 + $0x12c] sm:$0xff]
    %v4056 = vld [vmem:[#allocation6 + $0x134] sm:$0xff]
    %v4057 = vld [vmem:[#allocation6 + $0x13c] sm:$0xf]
    %v4058 = vld [vmem:[#allocation6 + $0x140] sm:$0xff]
    %v4059 = vld [vmem:[#allocation6 + $0x148] sm:$0xff]
    %v4060 = vld [vmem:[#allocation6 + $0x150] sm:$0xf]
    %v4061 = vld [vmem:[#allocation6 + $0x154] sm:$0xff]
    %v4062 = vld [vmem:[#allocation6 + $0x15c] sm:$0xff]
    %v4063 = vld [vmem:[#allocation6 + $0x164] sm:$0xf]
    %v4064 = vld [vmem:[#allocation6 + $0x168] sm:$0xff]
    %v4065 = vld [vmem:[#allocation6 + $0x170] sm:$0xff]
    %v4066 = vld [vmem:[#allocation6 + $0x178] sm:$0xf]
    %v4067 = vld [vmem:[#allocation6 + $0x17c] sm:$0xff]
    %v4068 = vld [vmem:[#allocation6 + $0x184] sm:$0xff]
    %v4069 = vld [vmem:[#allocation6 + $0x18c] sm:$0xf]
    %v4070 = vld [vmem:[#allocation6 + $0x190] sm:$0xff]
    %v4071 = vld [vmem:[#allocation6 + $0x198] sm:$0xff]
    %v4072 = vld [vmem:[#allocation6 + $0x1a0] sm:$0xf]
    %v4073 = vld [vmem:[#allocation6 + $0x1a4] sm:$0xff]
    %v4074 = vld [vmem:[#allocation6 + $0x1ac] sm:$0xff]
    %v4075 = vld [vmem:[#allocation6 + $0x1b4] sm:$0xf]
    %v4076 = vld [vmem:[#allocation6 + $0x1b8] sm:$0xff]
    %v4077 = vld [vmem:[#allocation6 + $0x1c0] sm:$0xff]
    %v4078 = vld [vmem:[#allocation6 + $0x1c8] sm:$0xf]
    %v4079 = vld [vmem:[#allocation6 + $0x1cc] sm:$0xff]
    %v4080 = vld [vmem:[#allocation6 + $0x1d4] sm:$0xff]
    %v4081 = vld [vmem:[#allocation6 + $0x1dc] sm:$0xf]
    %v4082 = vld [vmem:[#allocation6 + $0x1e0] sm:$0xff]
    %v4083 = vld [vmem:[#allocation6 + $0x1e8] sm:$0xff]
    %v4084 = vld [vmem:[#allocation6 + $0x1f0] sm:$0xf]
    %v4085 = vld [vmem:[#allocation6 + $0x1f4] sm:$0xff]
    %v4086 = vld [vmem:[#allocation6 + $0x1fc] sm:$0xff]
    %v4087 = vld [vmem:[#allocation6 + $0x204] sm:$0xf]
    %v4088 = vld [vmem:[#allocation6 + $0x208] sm:$0xff]
    %v4089 = vld [vmem:[#allocation6 + $0x210] sm:$0xff]
    %v4090 = vld [vmem:[#allocation6 + $0x218] sm:$0xf]
    %v4091 = vld [vmem:[#allocation6 + $0x21c] sm:$0xff]
    %v4092 = vld [vmem:[#allocation6 + $0x224] sm:$0xff]
    %v4093 = vld [vmem:[#allocation6 + $0x22c] sm:$0xf]
    %v4094 = vld [vmem:[#allocation6 + $0x230] sm:$0xff]
    %v4095 = vld [vmem:[#allocation6 + $0x238] sm:$0xff]
    %v4096 = vld [vmem:[#allocation6 + $0x240] sm:$0xf]
    %v4097 = vld [vmem:[#allocation6 + $0x244] sm:$0xff]
    %v4098 = vld [vmem:[#allocation6 + $0x24c] sm:$0xff]
    %v4099 = vld [vmem:[#allocation6 + $0x254] sm:$0xf]
    %v4100 = vld [vmem:[#allocation6 + $0x258] sm:$0xff]
    %v4101 = vld [vmem:[#allocation6 + $0x260] sm:$0xff]
    %v4102 = vld [vmem:[#allocation6 + $0x268] sm:$0xf]
    %v4103 = vld [vmem:[#allocation6 + $0x26c] sm:$0xff]
    %v4104 = vld [vmem:[#allocation6 + $0x274] sm:$0xff]
    %v4105 = vld [vmem:[#allocation6 + $0x27c] sm:$0xf]
    %v4106 = vld [vmem:[#allocation6 + $0x280] sm:$0xff]
    %v4107 = vld [vmem:[#allocation6 + $0x288] sm:$0xff]
    %v4108 = vld [vmem:[#allocation6 + $0x290] sm:$0xf]
    %v4109 = vld [vmem:[#allocation6 + $0x294] sm:$0xff]
    %v4110 = vld [vmem:[#allocation6 + $0x29c] sm:$0xff]
    %v4111 = vld [vmem:[#allocation6 + $0x2a4] sm:$0xf]
    %v4112 = vld [vmem:[#allocation6 + $0x2a8] sm:$0xff]
    %v4113 = vld [vmem:[#allocation6 + $0x2b0] sm:$0xff]
    %v4114 = vld [vmem:[#allocation6 + $0x2b8] sm:$0xf]
    %v4115 = vld [vmem:[#allocation6 + $0x2bc] sm:$0xff]
    %v4116 = vld [vmem:[#allocation6 + $0x2c4] sm:$0xff]
    %v4117 = vld [vmem:[#allocation6 + $0x2cc] sm:$0xf]
    %v4118 = vld [vmem:[#allocation6 + $0x2d0] sm:$0xff]
    %v4119 = vld [vmem:[#allocation6 + $0x2d8] sm:$0xff]
    %v4120 = vld [vmem:[#allocation6 + $0x2e0] sm:$0xf]
    %v4121 = vld [vmem:[#allocation6 + $0x2e4] sm:$0xff]
    %v4122 = vld [vmem:[#allocation6 + $0x2ec] sm:$0xff]
    %v4123 = vld [vmem:[#allocation6 + $0x2f4] sm:$0xf]
    %v4124 = vld [vmem:[#allocation6 + $0x2f8] sm:$0xff]
    %v4125 = vld [vmem:[#allocation6 + $0x300] sm:$0xff]
    %v4126 = vld [vmem:[#allocation6 + $0x308] sm:$0xf]
    %v4127 = vld [vmem:[#allocation6 + $0x30c] sm:$0xff]
    %v4128 = vld [vmem:[#allocation6 + $0x314] sm:$0xff]
    %v4129 = vld [vmem:[#allocation6 + $0x31c] sm:$0xf]
    %v4130 = vld [vmem:[#allocation6 + $0x320] sm:$0xff]
    %v4131 = vld [vmem:[#allocation6 + $0x328] sm:$0xff]
    %v4132 = vld [vmem:[#allocation6 + $0x330] sm:$0xf]
    %v4133 = vld [vmem:[#allocation6 + $0x334] sm:$0xff]
    %v4134 = vld [vmem:[#allocation6 + $0x33c] sm:$0xff]
    %v4135 = vld [vmem:[#allocation6 + $0x344] sm:$0xf]
    %v4136 = vld [vmem:[#allocation6 + $0x348] sm:$0xff]
    %v4137 = vld [vmem:[#allocation6 + $0x350] sm:$0xff]
    %v4138 = vld [vmem:[#allocation6 + $0x358] sm:$0xf]
    %v4139 = vld [vmem:[#allocation6 + $0x35c] sm:$0xff]
    %v4140 = vld [vmem:[#allocation6 + $0x364] sm:$0xff]
    %v4141 = vld [vmem:[#allocation6 + $0x36c] sm:$0xf]
    %v4142 = vld [vmem:[#allocation6 + $0x370] sm:$0xff]
    %v4143 = vld [vmem:[#allocation6 + $0x378] sm:$0xff]
    %v4144 = vld [vmem:[#allocation6 + $0x380] sm:$0xf]
    %v4145 = vld [vmem:[#allocation6 + $0x384] sm:$0xff]
    %v4146 = vld [vmem:[#allocation6 + $0x38c] sm:$0xff]
    %v4147 = vld [vmem:[#allocation6 + $0x394] sm:$0xf]
    %v4148 = vld [vmem:[#allocation6 + $0x398] sm:$0xff]
    %v4149 = vld [vmem:[#allocation6 + $0x3a0] sm:$0xff]
    %v4150 = vld [vmem:[#allocation6 + $0x3a8] sm:$0xf]
    %v4151 = vld [vmem:[#allocation6 + $0x3ac] sm:$0xff]
    %v4152 = vld [vmem:[#allocation6 + $0x3b4] sm:$0xff]
    %v4153 = vld [vmem:[#allocation6 + $0x3bc] sm:$0xf]
    %v4154 = vld [vmem:[#allocation6 + $0x3c0] sm:$0xff]
    %v4155 = vld [vmem:[#allocation6 + $0x3c8] sm:$0xff]
    %v4156 = vld [vmem:[#allocation6 + $0x3d0] sm:$0xf]
    %v4157 = vld [vmem:[#allocation6 + $0x3d4] sm:$0xff]
    %v4158 = vld [vmem:[#allocation6 + $0x3dc] sm:$0xff]
    %v4159 = vld [vmem:[#allocation6 + $0x3e4] sm:$0xf]
    %v4160 = vld [vmem:[#allocation6 + $0x3e8] sm:$0xff]
    %v4161 = vld [vmem:[#allocation6 + $0x3f0] sm:$0xff]
    %v4162 = vld [vmem:[#allocation6 + $0x3f8] sm:$0xf]
    %v4163 = vld [vmem:[#allocation6 + $0x3fc] sm:$0xff]
    %v4164 = vld [vmem:[#allocation6 + $0x404] sm:$0xff]
    %v4165 = vld [vmem:[#allocation6 + $0x40c] sm:$0xf]
    %v4166 = vld [vmem:[#allocation6 + $0x410] sm:$0xff]
    %v4167 = vld [vmem:[#allocation6 + $0x418] sm:$0xff]
    %v4168 = vld [vmem:[#allocation6 + $0x420] sm:$0xf]
    %v4169 = vld [vmem:[#allocation6 + $0x424] sm:$0xff]
    %v4170 = vld [vmem:[#allocation6 + $0x42c] sm:$0xff]
    %v4171 = vld [vmem:[#allocation6 + $0x434] sm:$0xf]
    %v4172 = vld [vmem:[#allocation6 + $0x438] sm:$0xff]
    %v4173 = vld [vmem:[#allocation6 + $0x440] sm:$0xff]
    %v4174 = vld [vmem:[#allocation6 + $0x448] sm:$0xf]
    %v4175 = vld [vmem:[#allocation6 + $0x44c] sm:$0xff]
    %v4176 = vld [vmem:[#allocation6 + $0x454] sm:$0xff]
    %v4177 = vld [vmem:[#allocation6 + $0x45c] sm:$0xf]
    %v4178 = vld [vmem:[#allocation6 + $0x460] sm:$0xff]
    %v4179 = vld [vmem:[#allocation6 + $0x468] sm:$0xff]
    %v4180 = vld [vmem:[#allocation6 + $0x470] sm:$0xf]
    %v4181 = vld [vmem:[#allocation6 + $0x474] sm:$0xff]
    %v4182 = vld [vmem:[#allocation6 + $0x47c] sm:$0xff]
    %v4183 = vld [vmem:[#allocation6 + $0x484] sm:$0xf]
    %v4184 = vld [vmem:[#allocation6 + $0x488] sm:$0xff]
    %v4185 = vld [vmem:[#allocation6 + $0x490] sm:$0xff]
    %v4186 = vld [vmem:[#allocation6 + $0x498] sm:$0xf]
    %v4187 = vld [vmem:[#allocation6 + $0x49c] sm:$0xff]
    %v4188 = vld [vmem:[#allocation6 + $0x4a4] sm:$0xff]
    %v4189 = vld [vmem:[#allocation6 + $0x4ac] sm:$0xf]
    %v4190 = vld [vmem:[#allocation6 + $0x4b0] sm:$0xff]
    %v4191 = vld [vmem:[#allocation6 + $0x4b8] sm:$0xff]
    %v4192 = vld [vmem:[#allocation6 + $0x4c0] sm:$0xf]
    %v4193 = vld [vmem:[#allocation6 + $0x4c4] sm:$0xff]
    %v4194 = vld [vmem:[#allocation6 + $0x4cc] sm:$0xff]
    %v4195 = vld [vmem:[#allocation6 + $0x4d4] sm:$0xf]
    %v4196 = vld [vmem:[#allocation6 + $0x4d8] sm:$0xff]
    %v4197 = vld [vmem:[#allocation6 + $0x4e0] sm:$0xff]
    %v4198 = vld [vmem:[#allocation6 + $0x4e8] sm:$0xf]
    %v4199 = vld [vmem:[#allocation6 + $0x4ec] sm:$0xff]
    %v4200 = vld [vmem:[#allocation6 + $0x4f4] sm:$0xff]
    %v4201 = vld [vmem:[#allocation6 + $0x4fc] sm:$0xf]
    %v4202 = vld [vmem:[#allocation6 + $0x500] sm:$0xff]
    %v4203 = vld [vmem:[#allocation6 + $0x508] sm:$0xff]
    %v4204 = vld [vmem:[#allocation6 + $0x510] sm:$0xf]
    %v4205 = vld [vmem:[#allocation6 + $0x514] sm:$0xff]
    %v4206 = vld [vmem:[#allocation6 + $0x51c] sm:$0xff]
    %v4207 = vld [vmem:[#allocation6 + $0x524] sm:$0xf]
    %v4208 = vld [vmem:[#allocation6 + $0x528] sm:$0xff]
    %v4209 = vld [vmem:[#allocation6 + $0x530] sm:$0xff]
    %v4210 = vld [vmem:[#allocation6 + $0x538] sm:$0xf]
    %v4211 = vld [vmem:[#allocation6 + $0x53c] sm:$0xff]
    %v4212 = vld [vmem:[#allocation6 + $0x544] sm:$0xff]
    %v4213 = vld [vmem:[#allocation6 + $0x54c] sm:$0xf]
    %v4214 = vld [vmem:[#allocation6 + $0x550] sm:$0xff]
    %v4215 = vld [vmem:[#allocation6 + $0x558] sm:$0xff]
    %v4216 = vld [vmem:[#allocation6 + $0x560] sm:$0xf]
    %v4217 = vld [vmem:[#allocation6 + $0x564] sm:$0xff]
    %v4218 = vld [vmem:[#allocation6 + $0x56c] sm:$0xff]
    %v4219 = vld [vmem:[#allocation6 + $0x574] sm:$0xf]
    %v4220 = vld [vmem:[#allocation6 + $0x578] sm:$0xff]
    %v4221 = vld [vmem:[#allocation6 + $0x580] sm:$0xff]
    %v4222 = vld [vmem:[#allocation6 + $0x588] sm:$0xf]
    %v4223 = vld [vmem:[#allocation6 + $0x58c] sm:$0xff]
    %v4224 = vld [vmem:[#allocation6 + $0x594] sm:$0xff]
    %v4225 = vld [vmem:[#allocation6 + $0x59c] sm:$0xf]
    %v4226 = vld [vmem:[#allocation6 + $0x5a0] sm:$0xff]
    %v4227 = vld [vmem:[#allocation6 + $0x5a8] sm:$0xff]
    %v4228 = vld [vmem:[#allocation6 + $0x5b0] sm:$0xf]
    %v4229 = vld [vmem:[#allocation6 + $0x5b4] sm:$0xff]
    %v4230 = vld [vmem:[#allocation6 + $0x5bc] sm:$0xff]
    %v4231 = vld [vmem:[#allocation6 + $0x5c4] sm:$0xf]
    %v4232 = vld [vmem:[#allocation6 + $0x5c8] sm:$0xff]
    %v4233 = vld [vmem:[#allocation6 + $0x5d0] sm:$0xff]
    %v4234 = vld [vmem:[#allocation6 + $0x5d8] sm:$0xf]
    %v4235 = vld [vmem:[#allocation6 + $0x5dc] sm:$0xff]
    %v4236 = vld [vmem:[#allocation6 + $0x5e4] sm:$0xff]
    %v4237 = vld [vmem:[#allocation6 + $0x5ec] sm:$0xf]
    %v4238 = vld [vmem:[#allocation6 + $0x5f0] sm:$0xff]
    %v4239 = vld [vmem:[#allocation6 + $0x5f8] sm:$0xff]
    %v4240 = vld [vmem:[#allocation6 + $0x600] sm:$0xf]
    %v4241 = vld [vmem:[#allocation6 + $0x604] sm:$0xff]
    %v4242 = vld [vmem:[#allocation6 + $0x60c] sm:$0xff]
    %v4243 = vld [vmem:[#allocation6 + $0x614] sm:$0xf]
    %v4244 = vld [vmem:[#allocation6 + $0x618] sm:$0xff]
    %v4245 = vld [vmem:[#allocation6 + $0x620] sm:$0xff]
    %v4246 = vld [vmem:[#allocation6 + $0x628] sm:$0xf]
    %v4247 = vld [vmem:[#allocation6 + $0x62c] sm:$0xff]
    %v4248 = vld [vmem:[#allocation6 + $0x634] sm:$0xff]
    %v4249 = vld [vmem:[#allocation6 + $0x63c] sm:$0xf]
    %v4250 = vld [vmem:[#allocation6 + $0x640] sm:$0xff]
    %v4251 = vld [vmem:[#allocation6 + $0x648] sm:$0xff]
    %v4252 = vld [vmem:[#allocation6 + $0x650] sm:$0xf]
    %v4253 = vld [vmem:[#allocation6 + $0x654] sm:$0xff]
    %v4254 = vld [vmem:[#allocation6 + $0x65c] sm:$0xff]
    %v4255 = vld [vmem:[#allocation6 + $0x664] sm:$0xf]
    %v4256 = vld [vmem:[#allocation6 + $0x668] sm:$0xff]
    %v4257 = vld [vmem:[#allocation6 + $0x670] sm:$0xff]
    %v4258 = vld [vmem:[#allocation6 + $0x678] sm:$0xf]
    %v4259 = vld [vmem:[#allocation6 + $0x67c] sm:$0xff]
    %v4260 = vld [vmem:[#allocation6 + $0x684] sm:$0xff]
    %v4261 = vld [vmem:[#allocation6 + $0x68c] sm:$0xf]
    %v4262 = vld [vmem:[#allocation6 + $0x690] sm:$0xff]
    %v4263 = vld [vmem:[#allocation6 + $0x698] sm:$0xff]
    %v4264 = vld [vmem:[#allocation6 + $0x6a0] sm:$0xf]
    %v4265 = vld [vmem:[#allocation6 + $0x6a4] sm:$0xff]
    %v4266 = vld [vmem:[#allocation6 + $0x6ac] sm:$0xff]
    %v4267 = vld [vmem:[#allocation6 + $0x6b4] sm:$0xf]
    %v4268 = vld [vmem:[#allocation6 + $0x6b8] sm:$0xff]
    %v4269 = vld [vmem:[#allocation6 + $0x6c0] sm:$0xff]
    %v4270 = vld [vmem:[#allocation6 + $0x6c8] sm:$0xf]
    %v4271 = vld [vmem:[#allocation6 + $0x6cc] sm:$0xff]
    %v4272 = vld [vmem:[#allocation6 + $0x6d4] sm:$0xff]
    %v4273 = vld [vmem:[#allocation6 + $0x6dc] sm:$0xf]
    %v4274 = vld [vmem:[#allocation6 + $0x6e0] sm:$0xff]
    %v4275 = vld [vmem:[#allocation6 + $0x6e8] sm:$0xff]
    %v4276 = vld [vmem:[#allocation6 + $0x6f0] sm:$0xf]
    %v4277 = vld [vmem:[#allocation6 + $0x6f4] sm:$0xff]
    %v4278 = vld [vmem:[#allocation6 + $0x6fc] sm:$0xff]
    %v4279 = vld [vmem:[#allocation6 + $0x704] sm:$0xf]
    %v4280 = vld [vmem:[#allocation6 + $0x708] sm:$0xff]
    %v4281 = vld [vmem:[#allocation6 + $0x710] sm:$0xff]
    %v4282 = vld [vmem:[#allocation6 + $0x718] sm:$0xf]
    %v4283 = vld [vmem:[#allocation6 + $0x71c] sm:$0xff]
    %v4284 = vld [vmem:[#allocation6 + $0x724] sm:$0xff]
    %v4285 = vld [vmem:[#allocation6 + $0x72c] sm:$0xf]
    %v4286 = vld [vmem:[#allocation6 + $0x730] sm:$0xff]
    %v4287 = vld [vmem:[#allocation6 + $0x738] sm:$0xff]
    %v4288 = vld [vmem:[#allocation6 + $0x740] sm:$0xf]
    %v4289 = vld [vmem:[#allocation6 + $0x744] sm:$0xff]
    %v4290 = vld [vmem:[#allocation6 + $0x74c] sm:$0xff]
    %v4291 = vld [vmem:[#allocation6 + $0x754] sm:$0xf]
    %v4292 = vld [vmem:[#allocation6 + $0x758] sm:$0xff]
    %v4293 = vld [vmem:[#allocation6 + $0x760] sm:$0xff]
    %v4294 = vld [vmem:[#allocation6 + $0x768] sm:$0xf]
    %v4295 = vld [vmem:[#allocation6 + $0x76c] sm:$0xff]
    %v4296 = vld [vmem:[#allocation6 + $0x774] sm:$0xff]
    %v4297 = vld [vmem:[#allocation6 + $0x77c] sm:$0xf]
    %v4298 = vld [vmem:[#allocation6 + $0x780] sm:$0xff]
    %v4299 = vld [vmem:[#allocation6 + $0x788] sm:$0xff]
    %v4300 = vld [vmem:[#allocation6 + $0x790] sm:$0xf]
    %v4301 = vld [vmem:[#allocation6 + $0x794] sm:$0xff]
    %v4302 = vld [vmem:[#allocation6 + $0x79c] sm:$0xff]
    %v4303 = vld [vmem:[#allocation6 + $0x7a4] sm:$0xf]
    %v4304 = vld [vmem:[#allocation6 + $0x7a8] sm:$0xff]
    %v4305 = vld [vmem:[#allocation6 + $0x7b0] sm:$0xff]
    %v4306 = vld [vmem:[#allocation6 + $0x7b8] sm:$0xf]
    %v4307 = vld [vmem:[#allocation6 + $0x7bc] sm:$0xff]
    %v4308 = vld [vmem:[#allocation6 + $0x7c4] sm:$0xff]
    %v4309 = vld [vmem:[#allocation6 + $0x7cc] sm:$0xf]
    %v4310 = vld [vmem:[#allocation6 + $0x7d0] sm:$0xff]
    %v4311 = vld [vmem:[#allocation6 + $0x7d8] sm:$0xff]
    %v4312 = vld [vmem:[#allocation6 + $0x7e0] sm:$0xf]
    %v4313 = vld [vmem:[#allocation6 + $0x7e4] sm:$0xff]
    %v4314 = vld [vmem:[#allocation6 + $0x7ec] sm:$0xff]
    %v4315 = vld [vmem:[#allocation6 + $0x7f4] sm:$0xf]
    %v4316 = vld [vmem:[#allocation6 + $0x7f8] sm:$0xff]
    %v4317 = vld [vmem:[#allocation6 + $0x800] sm:$0xff]
    %v4318 = vld [vmem:[#allocation6 + $0x808] sm:$0xf]
    %v4319 = vld [vmem:[#allocation6 + $0x80c] sm:$0xff]
    %v4320 = vld [vmem:[#allocation6 + $0x814] sm:$0xff]
    %v4321 = vld [vmem:[#allocation6 + $0x81c] sm:$0xf]
    %v4322 = vld [vmem:[#allocation6 + $0x820] sm:$0xff]
    %v4323 = vld [vmem:[#allocation6 + $0x828] sm:$0xff]
    %v4324 = vld [vmem:[#allocation6 + $0x830] sm:$0xf]
    %v4325 = vld [vmem:[#allocation6 + $0x834] sm:$0xff]
    %v4326 = vld [vmem:[#allocation6 + $0x83c] sm:$0xff]
    %v4327 = vld [vmem:[#allocation6 + $0x844] sm:$0xf]
    %v4328 = vld [vmem:[#allocation6 + $0x848] sm:$0xff]
    %v4329 = vld [vmem:[#allocation6 + $0x850] sm:$0xff]
    %v4330 = vld [vmem:[#allocation6 + $0x858] sm:$0xf]
    %v4331 = vld [vmem:[#allocation6 + $0x85c] sm:$0xff]
    %v4332 = vld [vmem:[#allocation6 + $0x864] sm:$0xff]
    %v4333 = vld [vmem:[#allocation6 + $0x86c] sm:$0xf]
    %v4334 = vld [vmem:[#allocation6 + $0x870] sm:$0xff]
    %v4335 = vld [vmem:[#allocation6 + $0x878] sm:$0xff]
    %v4336 = vld [vmem:[#allocation6 + $0x880] sm:$0xf]
    %v4337 = vld [vmem:[#allocation6 + $0x884] sm:$0xff]
    %v4338 = vld [vmem:[#allocation6 + $0x88c] sm:$0xff]
    %v4339 = vld [vmem:[#allocation6 + $0x894] sm:$0xf]
    %v4340 = vld [vmem:[#allocation6 + $0x898] sm:$0xff]
    %v4341 = vld [vmem:[#allocation6 + $0x8a0] sm:$0xff]
    %v4342 = vld [vmem:[#allocation6 + $0x8a8] sm:$0xf]
    %v4343 = vld [vmem:[#allocation6 + $0x8ac] sm:$0xff]
    %v4344 = vld [vmem:[#allocation6 + $0x8b4] sm:$0xff]
    %v4345 = vld [vmem:[#allocation6 + $0x8bc] sm:$0xf]
    %v4346 = vld [vmem:[#allocation6 + $0x8c0] sm:$0xff]
    %v4347 = vld [vmem:[#allocation6 + $0x8c8] sm:$0xff]
    %v4348 = vld [vmem:[#allocation6 + $0x8d0] sm:$0xf]
    %v4349 = vld [vmem:[#allocation6 + $0x8d4] sm:$0xff]
    %v4350 = vld [vmem:[#allocation6 + $0x8dc] sm:$0xff]
    %v4351 = vld [vmem:[#allocation6 + $0x8e4] sm:$0xf]
    %v4352 = vld [vmem:[#allocation6 + $0x8e8] sm:$0xff]
    %v4353 = vld [vmem:[#allocation6 + $0x8f0] sm:$0xff]
    %v4354 = vld [vmem:[#allocation6 + $0x8f8] sm:$0xf]
    %v4355 = vld [vmem:[#allocation6 + $0x8fc] sm:$0xff]
    %v4356 = vld [vmem:[#allocation6 + $0x904] sm:$0xff]
    %v4357 = vld [vmem:[#allocation6 + $0x90c] sm:$0xf]
    %v4358 = vld [vmem:[#allocation6 + $0x910] sm:$0xff]
    %v4359 = vld [vmem:[#allocation6 + $0x918] sm:$0xff]
    %v4360 = vld [vmem:[#allocation6 + $0x920] sm:$0xf]
    %v4361 = vld [vmem:[#allocation6 + $0x924] sm:$0xff]
    %v4362 = vld [vmem:[#allocation6 + $0x92c] sm:$0xff]
    %v4363 = vld [vmem:[#allocation6 + $0x934] sm:$0xf]
    %v4364 = vld [vmem:[#allocation6 + $0x938] sm:$0xff]
    %v4365 = vld [vmem:[#allocation6 + $0x940] sm:$0xff]
    %v4366 = vld [vmem:[#allocation6 + $0x948] sm:$0xf]
    %v4367 = vld [vmem:[#allocation6 + $0x94c] sm:$0xff]
    %v4368 = vld [vmem:[#allocation6 + $0x954] sm:$0xff]
    %v4369 = vld [vmem:[#allocation6 + $0x95c] sm:$0xf]
    %v4370 = vld [vmem:[#allocation6 + $0x960] sm:$0xff]
    %v4371 = vld [vmem:[#allocation6 + $0x968] sm:$0xff]
    %v4372 = vld [vmem:[#allocation6 + $0x970] sm:$0xf]
    %v4373 = vld [vmem:[#allocation6 + $0x974] sm:$0xff]
    %v4374 = vld [vmem:[#allocation6 + $0x97c] sm:$0xff]
    %v4375 = vld [vmem:[#allocation6 + $0x984] sm:$0xf]
    %v4376 = vld [vmem:[#allocation6 + $0x988] sm:$0xff]
    %v4377 = vld [vmem:[#allocation6 + $0x990] sm:$0xff]
    %v4378 = vld [vmem:[#allocation6 + $0x998] sm:$0xf]
    %v4379 = vld [vmem:[#allocation6 + $0x99c] sm:$0xff]
    %v4380 = vld [vmem:[#allocation6 + $0x9a4] sm:$0xff]
    %v4381 = vld [vmem:[#allocation6 + $0x9ac] sm:$0xf]
    %v4382 = vld [vmem:[#allocation6 + $0x9b0] sm:$0xff]
    %v4383 = vld [vmem:[#allocation6 + $0x9b8] sm:$0xff]
    %v4384 = vld [vmem:[#allocation6 + $0x9c0] sm:$0xf]
    %v4385 = vld [vmem:[#allocation6 + $0x9c4] sm:$0xff]
    %v4386 = vld [vmem:[#allocation6 + $0x9cc] sm:$0xff]
    %v4387 = vld [vmem:[#allocation6 + $0x9d4] sm:$0xf]
    %v4388 = vld [vmem:[#allocation6 + $0x9d8] sm:$0xff]
    %v4389 = vld [vmem:[#allocation6 + $0x9e0] sm:$0xff]
    %v4390 = vld [vmem:[#allocation6 + $0x9e8] sm:$0xf]
    %v4391 = vld [vmem:[#allocation6 + $0x9ec] sm:$0xff]
    %v4392 = vld [vmem:[#allocation6 + $0x9f4] sm:$0xff]
    %v4393 = vld [vmem:[#allocation6 + $0x9fc] sm:$0xf]
    %v4394 = vld [vmem:[#allocation7] sm:$0x1f]
    %v4396 = vlaneseq
    %v4397 = vshrl.u32 %v4396, 7
    %v4398 = vsub.s32 0, %v4397
    %v4399 = vrot.slane %v4394, %v4398
    %v4400 = vlaneseq
    %v4401 = vshrl.u32 %v4400, 7
    %v4402 = vsub.s32 1, %v4401
    %v4403 = vrot.slane %v4394, %v4402
    %v4404 = vlaneseq
    %v4405 = vshrl.u32 %v4404, 7
    %v4406 = vsub.s32 2, %v4405
    %v4407 = vrot.slane %v4394, %v4406
    %v4408 = vlaneseq
    %v4409 = vshrl.u32 %v4408, 7
    %v4410 = vsub.s32 3, %v4409
    %v4411 = vrot.slane %v4394, %v4410
    %v4412 = vlaneseq
    %v4413 = vshrl.u32 %v4412, 7
    %v4414 = vsub.s32 4, %v4413
    %v4415 = vrot.slane %v4394, %v4414
    %v4805 = vunpack.c.l.b16 %v4010
    %v4806 = vunpack.c.h.b16 %v4010
    %v4807 = vunpack.c.l.b16 %v4011
    %v4808 = vunpack.c.h.b16 %v4011
    %v4809 = vunpack.c.l.b16 %v4012
    %v4810 = vunpack.c.l.b16 %v4013
    %v4811 = vunpack.c.h.b16 %v4013
    %v4812 = vunpack.c.l.b16 %v4014
    %v4813 = vunpack.c.h.b16 %v4014
    %v4814 = vunpack.c.l.b16 %v4015
    %v4815 = vunpack.c.l.b16 %v4016
    %v4816 = vunpack.c.h.b16 %v4016
    %v4817 = vunpack.c.l.b16 %v4017
    %v4818 = vunpack.c.h.b16 %v4017
    %v4819 = vunpack.c.l.b16 %v4018
    %v4820 = vunpack.c.l.b16 %v4019
    %v4821 = vunpack.c.h.b16 %v4019
    %v4822 = vunpack.c.l.b16 %v4020
    %v4823 = vunpack.c.h.b16 %v4020
    %v4824 = vunpack.c.l.b16 %v4021
    %v4825 = vunpack.c.l.b16 %v4022
    %v4826 = vunpack.c.h.b16 %v4022
    %v4827 = vunpack.c.l.b16 %v4023
    %v4828 = vunpack.c.h.b16 %v4023
    %v4829 = vunpack.c.l.b16 %v4024
    %v4830 = vunpack.c.l.b16 %v4025
    %v4831 = vunpack.c.h.b16 %v4025
    %v4832 = vunpack.c.l.b16 %v4026
    %v4833 = vunpack.c.h.b16 %v4026
    %v4834 = vunpack.c.l.b16 %v4027
    %v4835 = vunpack.c.l.b16 %v4028
    %v4836 = vunpack.c.h.b16 %v4028
    %v4837 = vunpack.c.l.b16 %v4029
    %v4838 = vunpack.c.h.b16 %v4029
    %v4839 = vunpack.c.l.b16 %v4030
    %v4840 = vunpack.c.l.b16 %v4031
    %v4841 = vunpack.c.h.b16 %v4031
    %v4842 = vunpack.c.l.b16 %v4032
    %v4843 = vunpack.c.h.b16 %v4032
    %v4844 = vunpack.c.l.b16 %v4033
    %v4845 = vunpack.c.l.b16 %v4034
    %v4846 = vunpack.c.h.b16 %v4034
    %v4847 = vunpack.c.l.b16 %v4035
    %v4848 = vunpack.c.h.b16 %v4035
    %v4849 = vunpack.c.l.b16 %v4036
    %v4850 = vunpack.c.l.b16 %v4037
    %v4851 = vunpack.c.h.b16 %v4037
    %v4852 = vunpack.c.l.b16 %v4038
    %v4853 = vunpack.c.h.b16 %v4038
    %v4854 = vunpack.c.l.b16 %v4039
    %v4855 = vunpack.c.l.b16 %v4040
    %v4856 = vunpack.c.h.b16 %v4040
    %v4857 = vunpack.c.l.b16 %v4041
    %v4858 = vunpack.c.h.b16 %v4041
    %v4859 = vunpack.c.l.b16 %v4042
    %v4860 = vunpack.c.l.b16 %v4043
    %v4861 = vunpack.c.h.b16 %v4043
    %v4862 = vunpack.c.l.b16 %v4044
    %v4863 = vunpack.c.h.b16 %v4044
    %v4864 = vunpack.c.l.b16 %v4045
    %v4865 = vunpack.c.l.b16 %v4046
    %v4866 = vunpack.c.h.b16 %v4046
    %v4867 = vunpack.c.l.b16 %v4047
    %v4868 = vunpack.c.h.b16 %v4047
    %v4869 = vunpack.c.l.b16 %v4048
    %v4870 = vunpack.c.l.b16 %v4049
    %v4871 = vunpack.c.h.b16 %v4049
    %v4872 = vunpack.c.l.b16 %v4050
    %v4873 = vunpack.c.h.b16 %v4050
    %v4874 = vunpack.c.l.b16 %v4051
    %v4875 = vunpack.c.l.b16 %v4052
    %v4876 = vunpack.c.h.b16 %v4052
    %v4877 = vunpack.c.l.b16 %v4053
    %v4878 = vunpack.c.h.b16 %v4053
    %v4879 = vunpack.c.l.b16 %v4054
    %v4880 = vunpack.c.l.b16 %v4055
    %v4881 = vunpack.c.h.b16 %v4055
    %v4882 = vunpack.c.l.b16 %v4056
    %v4883 = vunpack.c.h.b16 %v4056
    %v4884 = vunpack.c.l.b16 %v4057
    %v4885 = vunpack.c.l.b16 %v4058
    %v4886 = vunpack.c.h.b16 %v4058
    %v4887 = vunpack.c.l.b16 %v4059
    %v4888 = vunpack.c.h.b16 %v4059
    %v4889 = vunpack.c.l.b16 %v4060
    %v4890 = vunpack.c.l.b16 %v4061
    %v4891 = vunpack.c.h.b16 %v4061
    %v4892 = vunpack.c.l.b16 %v4062
    %v4893 = vunpack.c.h.b16 %v4062
    %v4894 = vunpack.c.l.b16 %v4063
    %v4895 = vunpack.c.l.b16 %v4064
    %v4896 = vunpack.c.h.b16 %v4064
    %v4897 = vunpack.c.l.b16 %v4065
    %v4898 = vunpack.c.h.b16 %v4065
    %v4899 = vunpack.c.l.b16 %v4066
    %v4900 = vunpack.c.l.b16 %v4067
    %v4901 = vunpack.c.h.b16 %v4067
    %v4902 = vunpack.c.l.b16 %v4068
    %v4903 = vunpack.c.h.b16 %v4068
    %v4904 = vunpack.c.l.b16 %v4069
    %v4905 = vunpack.c.l.b16 %v4070
    %v4906 = vunpack.c.h.b16 %v4070
    %v4907 = vunpack.c.l.b16 %v4071
    %v4908 = vunpack.c.h.b16 %v4071
    %v4909 = vunpack.c.l.b16 %v4072
    %v4910 = vunpack.c.l.b16 %v4073
    %v4911 = vunpack.c.h.b16 %v4073
    %v4912 = vunpack.c.l.b16 %v4074
    %v4913 = vunpack.c.h.b16 %v4074
    %v4914 = vunpack.c.l.b16 %v4075
    %v4915 = vunpack.c.l.b16 %v4076
    %v4916 = vunpack.c.h.b16 %v4076
    %v4917 = vunpack.c.l.b16 %v4077
    %v4918 = vunpack.c.h.b16 %v4077
    %v4919 = vunpack.c.l.b16 %v4078
    %v4920 = vunpack.c.l.b16 %v4079
    %v4921 = vunpack.c.h.b16 %v4079
    %v4922 = vunpack.c.l.b16 %v4080
    %v4923 = vunpack.c.h.b16 %v4080
    %v4924 = vunpack.c.l.b16 %v4081
    %v4925 = vunpack.c.l.b16 %v4082
    %v4926 = vunpack.c.h.b16 %v4082
    %v4927 = vunpack.c.l.b16 %v4083
    %v4928 = vunpack.c.h.b16 %v4083
    %v4929 = vunpack.c.l.b16 %v4084
    %v4930 = vunpack.c.l.b16 %v4085
    %v4931 = vunpack.c.h.b16 %v4085
    %v4932 = vunpack.c.l.b16 %v4086
    %v4933 = vunpack.c.h.b16 %v4086
    %v4934 = vunpack.c.l.b16 %v4087
    %v4935 = vunpack.c.l.b16 %v4088
    %v4936 = vunpack.c.h.b16 %v4088
    %v4937 = vunpack.c.l.b16 %v4089
    %v4938 = vunpack.c.h.b16 %v4089
    %v4939 = vunpack.c.l.b16 %v4090
    %v4940 = vunpack.c.l.b16 %v4091
    %v4941 = vunpack.c.h.b16 %v4091
    %v4942 = vunpack.c.l.b16 %v4092
    %v4943 = vunpack.c.h.b16 %v4092
    %v4944 = vunpack.c.l.b16 %v4093
    %v4945 = vunpack.c.l.b16 %v4094
    %v4946 = vunpack.c.h.b16 %v4094
    %v4947 = vunpack.c.l.b16 %v4095
    %v4948 = vunpack.c.h.b16 %v4095
    %v4949 = vunpack.c.l.b16 %v4096
    %v4950 = vunpack.c.l.b16 %v4097
    %v4951 = vunpack.c.h.b16 %v4097
    %v4952 = vunpack.c.l.b16 %v4098
    %v4953 = vunpack.c.h.b16 %v4098
    %v4954 = vunpack.c.l.b16 %v4099
    %v4955 = vunpack.c.l.b16 %v4100
    %v4956 = vunpack.c.h.b16 %v4100
    %v4957 = vunpack.c.l.b16 %v4101
    %v4958 = vunpack.c.h.b16 %v4101
    %v4959 = vunpack.c.l.b16 %v4102
    %v4960 = vunpack.c.l.b16 %v4103
    %v4961 = vunpack.c.h.b16 %v4103
    %v4962 = vunpack.c.l.b16 %v4104
    %v4963 = vunpack.c.h.b16 %v4104
    %v4964 = vunpack.c.l.b16 %v4105
    %v4965 = vunpack.c.l.b16 %v4106
    %v4966 = vunpack.c.h.b16 %v4106
    %v4967 = vunpack.c.l.b16 %v4107
    %v4968 = vunpack.c.h.b16 %v4107
    %v4969 = vunpack.c.l.b16 %v4108
    %v4970 = vunpack.c.l.b16 %v4109
    %v4971 = vunpack.c.h.b16 %v4109
    %v4972 = vunpack.c.l.b16 %v4110
    %v4973 = vunpack.c.h.b16 %v4110
    %v4974 = vunpack.c.l.b16 %v4111
    %v4975 = vunpack.c.l.b16 %v4112
    %v4976 = vunpack.c.h.b16 %v4112
    %v4977 = vunpack.c.l.b16 %v4113
    %v4978 = vunpack.c.h.b16 %v4113
    %v4979 = vunpack.c.l.b16 %v4114
    %v4980 = vunpack.c.l.b16 %v4115
    %v4981 = vunpack.c.h.b16 %v4115
    %v4982 = vunpack.c.l.b16 %v4116
    %v4983 = vunpack.c.h.b16 %v4116
    %v4984 = vunpack.c.l.b16 %v4117
    %v4985 = vunpack.c.l.b16 %v4118
    %v4986 = vunpack.c.h.b16 %v4118
    %v4987 = vunpack.c.l.b16 %v4119
    %v4988 = vunpack.c.h.b16 %v4119
    %v4989 = vunpack.c.l.b16 %v4120
    %v4990 = vunpack.c.l.b16 %v4121
    %v4991 = vunpack.c.h.b16 %v4121
    %v4992 = vunpack.c.l.b16 %v4122
    %v4993 = vunpack.c.h.b16 %v4122
    %v4994 = vunpack.c.l.b16 %v4123
    %v4995 = vunpack.c.l.b16 %v4124
    %v4996 = vunpack.c.h.b16 %v4124
    %v4997 = vunpack.c.l.b16 %v4125
    %v4998 = vunpack.c.h.b16 %v4125
    %v4999 = vunpack.c.l.b16 %v4126
    %v5000 = vunpack.c.l.b16 %v4127
    %v5001 = vunpack.c.h.b16 %v4127
    %v5002 = vunpack.c.l.b16 %v4128
    %v5003 = vunpack.c.h.b16 %v4128
    %v5004 = vunpack.c.l.b16 %v4129
    %v5005 = vunpack.c.l.b16 %v4130
    %v5006 = vunpack.c.h.b16 %v4130
    %v5007 = vunpack.c.l.b16 %v4131
    %v5008 = vunpack.c.h.b16 %v4131
    %v5009 = vunpack.c.l.b16 %v4132
    %v5010 = vunpack.c.l.b16 %v4133
    %v5011 = vunpack.c.h.b16 %v4133
    %v5012 = vunpack.c.l.b16 %v4134
    %v5013 = vunpack.c.h.b16 %v4134
    %v5014 = vunpack.c.l.b16 %v4135
    %v5015 = vunpack.c.l.b16 %v4136
    %v5016 = vunpack.c.h.b16 %v4136
    %v5017 = vunpack.c.l.b16 %v4137
    %v5018 = vunpack.c.h.b16 %v4137
    %v5019 = vunpack.c.l.b16 %v4138
    %v5020 = vunpack.c.l.b16 %v4139
    %v5021 = vunpack.c.h.b16 %v4139
    %v5022 = vunpack.c.l.b16 %v4140
    %v5023 = vunpack.c.h.b16 %v4140
    %v5024 = vunpack.c.l.b16 %v4141
    %v5025 = vunpack.c.l.b16 %v4142
    %v5026 = vunpack.c.h.b16 %v4142
    %v5027 = vunpack.c.l.b16 %v4143
    %v5028 = vunpack.c.h.b16 %v4143
    %v5029 = vunpack.c.l.b16 %v4144
    %v5030 = vunpack.c.l.b16 %v4145
    %v5031 = vunpack.c.h.b16 %v4145
    %v5032 = vunpack.c.l.b16 %v4146
    %v5033 = vunpack.c.h.b16 %v4146
    %v5034 = vunpack.c.l.b16 %v4147
    %v5035 = vunpack.c.l.b16 %v4148
    %v5036 = vunpack.c.h.b16 %v4148
    %v5037 = vunpack.c.l.b16 %v4149
    %v5038 = vunpack.c.h.b16 %v4149
    %v5039 = vunpack.c.l.b16 %v4150
    %v5040 = vunpack.c.l.b16 %v4151
    %v5041 = vunpack.c.h.b16 %v4151
    %v5042 = vunpack.c.l.b16 %v4152
    %v5043 = vunpack.c.h.b16 %v4152
    %v5044 = vunpack.c.l.b16 %v4153
    %v5045 = vunpack.c.l.b16 %v4154
    %v5046 = vunpack.c.h.b16 %v4154
    %v5047 = vunpack.c.l.b16 %v4155
    %v5048 = vunpack.c.h.b16 %v4155
    %v5049 = vunpack.c.l.b16 %v4156
    %v5050 = vunpack.c.l.b16 %v4157
    %v5051 = vunpack.c.h.b16 %v4157
    %v5052 = vunpack.c.l.b16 %v4158
    %v5053 = vunpack.c.h.b16 %v4158
    %v5054 = vunpack.c.l.b16 %v4159
    %v5055 = vunpack.c.l.b16 %v4160
    %v5056 = vunpack.c.h.b16 %v4160
    %v5057 = vunpack.c.l.b16 %v4161
    %v5058 = vunpack.c.h.b16 %v4161
    %v5059 = vunpack.c.l.b16 %v4162
    %v5060 = vunpack.c.l.b16 %v4163
    %v5061 = vunpack.c.h.b16 %v4163
    %v5062 = vunpack.c.l.b16 %v4164
    %v5063 = vunpack.c.h.b16 %v4164
    %v5064 = vunpack.c.l.b16 %v4165
    %v5065 = vunpack.c.l.b16 %v4166
    %v5066 = vunpack.c.h.b16 %v4166
    %v5067 = vunpack.c.l.b16 %v4167
    %v5068 = vunpack.c.h.b16 %v4167
    %v5069 = vunpack.c.l.b16 %v4168
    %v5070 = vunpack.c.l.b16 %v4169
    %v5071 = vunpack.c.h.b16 %v4169
    %v5072 = vunpack.c.l.b16 %v4170
    %v5073 = vunpack.c.h.b16 %v4170
    %v5074 = vunpack.c.l.b16 %v4171
    %v5075 = vunpack.c.l.b16 %v4172
    %v5076 = vunpack.c.h.b16 %v4172
    %v5077 = vunpack.c.l.b16 %v4173
    %v5078 = vunpack.c.h.b16 %v4173
    %v5079 = vunpack.c.l.b16 %v4174
    %v5080 = vunpack.c.l.b16 %v4175
    %v5081 = vunpack.c.h.b16 %v4175
    %v5082 = vunpack.c.l.b16 %v4176
    %v5083 = vunpack.c.h.b16 %v4176
    %v5084 = vunpack.c.l.b16 %v4177
    %v5085 = vunpack.c.l.b16 %v4178
    %v5086 = vunpack.c.h.b16 %v4178
    %v5087 = vunpack.c.l.b16 %v4179
    %v5088 = vunpack.c.h.b16 %v4179
    %v5089 = vunpack.c.l.b16 %v4180
    %v5090 = vunpack.c.l.b16 %v4181
    %v5091 = vunpack.c.h.b16 %v4181
    %v5092 = vunpack.c.l.b16 %v4182
    %v5093 = vunpack.c.h.b16 %v4182
    %v5094 = vunpack.c.l.b16 %v4183
    %v5095 = vunpack.c.l.b16 %v4184
    %v5096 = vunpack.c.h.b16 %v4184
    %v5097 = vunpack.c.l.b16 %v4185
    %v5098 = vunpack.c.h.b16 %v4185
    %v5099 = vunpack.c.l.b16 %v4186
    %v5100 = vunpack.c.l.b16 %v4187
    %v5101 = vunpack.c.h.b16 %v4187
    %v5102 = vunpack.c.l.b16 %v4188
    %v5103 = vunpack.c.h.b16 %v4188
    %v5104 = vunpack.c.l.b16 %v4189
    %v5105 = vunpack.c.l.b16 %v4190
    %v5106 = vunpack.c.h.b16 %v4190
    %v5107 = vunpack.c.l.b16 %v4191
    %v5108 = vunpack.c.h.b16 %v4191
    %v5109 = vunpack.c.l.b16 %v4192
    %v5110 = vunpack.c.l.b16 %v4193
    %v5111 = vunpack.c.h.b16 %v4193
    %v5112 = vunpack.c.l.b16 %v4194
    %v5113 = vunpack.c.h.b16 %v4194
    %v5114 = vunpack.c.l.b16 %v4195
    %v5115 = vunpack.c.l.b16 %v4196
    %v5116 = vunpack.c.h.b16 %v4196
    %v5117 = vunpack.c.l.b16 %v4197
    %v5118 = vunpack.c.h.b16 %v4197
    %v5119 = vunpack.c.l.b16 %v4198
    %v5120 = vunpack.c.l.b16 %v4199
    %v5121 = vunpack.c.h.b16 %v4199
    %v5122 = vunpack.c.l.b16 %v4200
    %v5123 = vunpack.c.h.b16 %v4200
    %v5124 = vunpack.c.l.b16 %v4201
    %v5125 = vunpack.c.l.b16 %v4202
    %v5126 = vunpack.c.h.b16 %v4202
    %v5127 = vunpack.c.l.b16 %v4203
    %v5128 = vunpack.c.h.b16 %v4203
    %v5129 = vunpack.c.l.b16 %v4204
    %v5130 = vunpack.c.l.b16 %v4205
    %v5131 = vunpack.c.h.b16 %v4205
    %v5132 = vunpack.c.l.b16 %v4206
    %v5133 = vunpack.c.h.b16 %v4206
    %v5134 = vunpack.c.l.b16 %v4207
    %v5135 = vunpack.c.l.b16 %v4208
    %v5136 = vunpack.c.h.b16 %v4208
    %v5137 = vunpack.c.l.b16 %v4209
    %v5138 = vunpack.c.h.b16 %v4209
    %v5139 = vunpack.c.l.b16 %v4210
    %v5140 = vunpack.c.l.b16 %v4211
    %v5141 = vunpack.c.h.b16 %v4211
    %v5142 = vunpack.c.l.b16 %v4212
    %v5143 = vunpack.c.h.b16 %v4212
    %v5144 = vunpack.c.l.b16 %v4213
    %v5145 = vunpack.c.l.b16 %v4214
    %v5146 = vunpack.c.h.b16 %v4214
    %v5147 = vunpack.c.l.b16 %v4215
    %v5148 = vunpack.c.h.b16 %v4215
    %v5149 = vunpack.c.l.b16 %v4216
    %v5150 = vunpack.c.l.b16 %v4217
    %v5151 = vunpack.c.h.b16 %v4217
    %v5152 = vunpack.c.l.b16 %v4218
    %v5153 = vunpack.c.h.b16 %v4218
    %v5154 = vunpack.c.l.b16 %v4219
    %v5155 = vunpack.c.l.b16 %v4220
    %v5156 = vunpack.c.h.b16 %v4220
    %v5157 = vunpack.c.l.b16 %v4221
    %v5158 = vunpack.c.h.b16 %v4221
    %v5159 = vunpack.c.l.b16 %v4222
    %v5160 = vunpack.c.l.b16 %v4223
    %v5161 = vunpack.c.h.b16 %v4223
    %v5162 = vunpack.c.l.b16 %v4224
    %v5163 = vunpack.c.h.b16 %v4224
    %v5164 = vunpack.c.l.b16 %v4225
    %v5165 = vunpack.c.l.b16 %v4226
    %v5166 = vunpack.c.h.b16 %v4226
    %v5167 = vunpack.c.l.b16 %v4227
    %v5168 = vunpack.c.h.b16 %v4227
    %v5169 = vunpack.c.l.b16 %v4228
    %v5170 = vunpack.c.l.b16 %v4229
    %v5171 = vunpack.c.h.b16 %v4229
    %v5172 = vunpack.c.l.b16 %v4230
    %v5173 = vunpack.c.h.b16 %v4230
    %v5174 = vunpack.c.l.b16 %v4231
    %v5175 = vunpack.c.l.b16 %v4232
    %v5176 = vunpack.c.h.b16 %v4232
    %v5177 = vunpack.c.l.b16 %v4233
    %v5178 = vunpack.c.h.b16 %v4233
    %v5179 = vunpack.c.l.b16 %v4234
    %v5180 = vunpack.c.l.b16 %v4235
    %v5181 = vunpack.c.h.b16 %v4235
    %v5182 = vunpack.c.l.b16 %v4236
    %v5183 = vunpack.c.h.b16 %v4236
    %v5184 = vunpack.c.l.b16 %v4237
    %v5185 = vunpack.c.l.b16 %v4238
    %v5186 = vunpack.c.h.b16 %v4238
    %v5187 = vunpack.c.l.b16 %v4239
    %v5188 = vunpack.c.h.b16 %v4239
    %v5189 = vunpack.c.l.b16 %v4240
    %v5190 = vunpack.c.l.b16 %v4241
    %v5191 = vunpack.c.h.b16 %v4241
    %v5192 = vunpack.c.l.b16 %v4242
    %v5193 = vunpack.c.h.b16 %v4242
    %v5194 = vunpack.c.l.b16 %v4243
    %v5195 = vunpack.c.l.b16 %v4244
    %v5196 = vunpack.c.h.b16 %v4244
    %v5197 = vunpack.c.l.b16 %v4245
    %v5198 = vunpack.c.h.b16 %v4245
    %v5199 = vunpack.c.l.b16 %v4246
    %v5200 = vunpack.c.l.b16 %v4247
    %v5201 = vunpack.c.h.b16 %v4247
    %v5202 = vunpack.c.l.b16 %v4248
    %v5203 = vunpack.c.h.b16 %v4248
    %v5204 = vunpack.c.l.b16 %v4249
    %v5205 = vunpack.c.l.b16 %v4250
    %v5206 = vunpack.c.h.b16 %v4250
    %v5207 = vunpack.c.l.b16 %v4251
    %v5208 = vunpack.c.h.b16 %v4251
    %v5209 = vunpack.c.l.b16 %v4252
    %v5210 = vunpack.c.l.b16 %v4253
    %v5211 = vunpack.c.h.b16 %v4253
    %v5212 = vunpack.c.l.b16 %v4254
    %v5213 = vunpack.c.h.b16 %v4254
    %v5214 = vunpack.c.l.b16 %v4255
    %v5215 = vunpack.c.l.b16 %v4256
    %v5216 = vunpack.c.h.b16 %v4256
    %v5217 = vunpack.c.l.b16 %v4257
    %v5218 = vunpack.c.h.b16 %v4257
    %v5219 = vunpack.c.l.b16 %v4258
    %v5220 = vunpack.c.l.b16 %v4259
    %v5221 = vunpack.c.h.b16 %v4259
    %v5222 = vunpack.c.l.b16 %v4260
    %v5223 = vunpack.c.h.b16 %v4260
    %v5224 = vunpack.c.l.b16 %v4261
    %v5225 = vunpack.c.l.b16 %v4262
    %v5226 = vunpack.c.h.b16 %v4262
    %v5227 = vunpack.c.l.b16 %v4263
    %v5228 = vunpack.c.h.b16 %v4263
    %v5229 = vunpack.c.l.b16 %v4264
    %v5230 = vunpack.c.l.b16 %v4265
    %v5231 = vunpack.c.h.b16 %v4265
    %v5232 = vunpack.c.l.b16 %v4266
    %v5233 = vunpack.c.h.b16 %v4266
    %v5234 = vunpack.c.l.b16 %v4267
    %v5235 = vunpack.c.l.b16 %v4268
    %v5236 = vunpack.c.h.b16 %v4268
    %v5237 = vunpack.c.l.b16 %v4269
    %v5238 = vunpack.c.h.b16 %v4269
    %v5239 = vunpack.c.l.b16 %v4270
    %v5240 = vunpack.c.l.b16 %v4271
    %v5241 = vunpack.c.h.b16 %v4271
    %v5242 = vunpack.c.l.b16 %v4272
    %v5243 = vunpack.c.h.b16 %v4272
    %v5244 = vunpack.c.l.b16 %v4273
    %v5245 = vunpack.c.l.b16 %v4274
    %v5246 = vunpack.c.h.b16 %v4274
    %v5247 = vunpack.c.l.b16 %v4275
    %v5248 = vunpack.c.h.b16 %v4275
    %v5249 = vunpack.c.l.b16 %v4276
    %v5250 = vunpack.c.l.b16 %v4277
    %v5251 = vunpack.c.h.b16 %v4277
    %v5252 = vunpack.c.l.b16 %v4278
    %v5253 = vunpack.c.h.b16 %v4278
    %v5254 = vunpack.c.l.b16 %v4279
    %v5255 = vunpack.c.l.b16 %v4280
    %v5256 = vunpack.c.h.b16 %v4280
    %v5257 = vunpack.c.l.b16 %v4281
    %v5258 = vunpack.c.h.b16 %v4281
    %v5259 = vunpack.c.l.b16 %v4282
    %v5260 = vunpack.c.l.b16 %v4283
    %v5261 = vunpack.c.h.b16 %v4283
    %v5262 = vunpack.c.l.b16 %v4284
    %v5263 = vunpack.c.h.b16 %v4284
    %v5264 = vunpack.c.l.b16 %v4285
    %v5265 = vunpack.c.l.b16 %v4286
    %v5266 = vunpack.c.h.b16 %v4286
    %v5267 = vunpack.c.l.b16 %v4287
    %v5268 = vunpack.c.h.b16 %v4287
    %v5269 = vunpack.c.l.b16 %v4288
    %v5270 = vunpack.c.l.b16 %v4289
    %v5271 = vunpack.c.h.b16 %v4289
    %v5272 = vunpack.c.l.b16 %v4290
    %v5273 = vunpack.c.h.b16 %v4290
    %v5274 = vunpack.c.l.b16 %v4291
    %v5275 = vunpack.c.l.b16 %v4292
    %v5276 = vunpack.c.h.b16 %v4292
    %v5277 = vunpack.c.l.b16 %v4293
    %v5278 = vunpack.c.h.b16 %v4293
    %v5279 = vunpack.c.l.b16 %v4294
    %v5280 = vunpack.c.l.b16 %v4295
    %v5281 = vunpack.c.h.b16 %v4295
    %v5282 = vunpack.c.l.b16 %v4296
    %v5283 = vunpack.c.h.b16 %v4296
    %v5284 = vunpack.c.l.b16 %v4297
    %v5285 = vunpack.c.l.b16 %v4298
    %v5286 = vunpack.c.h.b16 %v4298
    %v5287 = vunpack.c.l.b16 %v4299
    %v5288 = vunpack.c.h.b16 %v4299
    %v5289 = vunpack.c.l.b16 %v4300
    %v5290 = vunpack.c.l.b16 %v4301
    %v5291 = vunpack.c.h.b16 %v4301
    %v5292 = vunpack.c.l.b16 %v4302
    %v5293 = vunpack.c.h.b16 %v4302
    %v5294 = vunpack.c.l.b16 %v4303
    %v5295 = vunpack.c.l.b16 %v4304
    %v5296 = vunpack.c.h.b16 %v4304
    %v5297 = vunpack.c.l.b16 %v4305
    %v5298 = vunpack.c.h.b16 %v4305
    %v5299 = vunpack.c.l.b16 %v4306
    %v5300 = vunpack.c.l.b16 %v4307
    %v5301 = vunpack.c.h.b16 %v4307
    %v5302 = vunpack.c.l.b16 %v4308
    %v5303 = vunpack.c.h.b16 %v4308
    %v5304 = vunpack.c.l.b16 %v4309
    %v5305 = vunpack.c.l.b16 %v4310
    %v5306 = vunpack.c.h.b16 %v4310
    %v5307 = vunpack.c.l.b16 %v4311
    %v5308 = vunpack.c.h.b16 %v4311
    %v5309 = vunpack.c.l.b16 %v4312
    %v5310 = vunpack.c.l.b16 %v4313
    %v5311 = vunpack.c.h.b16 %v4313
    %v5312 = vunpack.c.l.b16 %v4314
    %v5313 = vunpack.c.h.b16 %v4314
    %v5314 = vunpack.c.l.b16 %v4315
    %v5315 = vunpack.c.l.b16 %v4316
    %v5316 = vunpack.c.h.b16 %v4316
    %v5317 = vunpack.c.l.b16 %v4317
    %v5318 = vunpack.c.h.b16 %v4317
    %v5319 = vunpack.c.l.b16 %v4318
    %v5320 = vunpack.c.l.b16 %v4319
    %v5321 = vunpack.c.h.b16 %v4319
    %v5322 = vunpack.c.l.b16 %v4320
    %v5323 = vunpack.c.h.b16 %v4320
    %v5324 = vunpack.c.l.b16 %v4321
    %v5325 = vunpack.c.l.b16 %v4322
    %v5326 = vunpack.c.h.b16 %v4322
    %v5327 = vunpack.c.l.b16 %v4323
    %v5328 = vunpack.c.h.b16 %v4323
    %v5329 = vunpack.c.l.b16 %v4324
    %v5330 = vunpack.c.l.b16 %v4325
    %v5331 = vunpack.c.h.b16 %v4325
    %v5332 = vunpack.c.l.b16 %v4326
    %v5333 = vunpack.c.h.b16 %v4326
    %v5334 = vunpack.c.l.b16 %v4327
    %v5335 = vunpack.c.l.b16 %v4328
    %v5336 = vunpack.c.h.b16 %v4328
    %v5337 = vunpack.c.l.b16 %v4329
    %v5338 = vunpack.c.h.b16 %v4329
    %v5339 = vunpack.c.l.b16 %v4330
    %v5340 = vunpack.c.l.b16 %v4331
    %v5341 = vunpack.c.h.b16 %v4331
    %v5342 = vunpack.c.l.b16 %v4332
    %v5343 = vunpack.c.h.b16 %v4332
    %v5344 = vunpack.c.l.b16 %v4333
    %v5345 = vunpack.c.l.b16 %v4334
    %v5346 = vunpack.c.h.b16 %v4334
    %v5347 = vunpack.c.l.b16 %v4335
    %v5348 = vunpack.c.h.b16 %v4335
    %v5349 = vunpack.c.l.b16 %v4336
    %v5350 = vunpack.c.l.b16 %v4337
    %v5351 = vunpack.c.h.b16 %v4337
    %v5352 = vunpack.c.l.b16 %v4338
    %v5353 = vunpack.c.h.b16 %v4338
    %v5354 = vunpack.c.l.b16 %v4339
    %v5355 = vunpack.c.l.b16 %v4340
    %v5356 = vunpack.c.h.b16 %v4340
    %v5357 = vunpack.c.l.b16 %v4341
    %v5358 = vunpack.c.h.b16 %v4341
    %v5359 = vunpack.c.l.b16 %v4342
    %v5360 = vunpack.c.l.b16 %v4343
    %v5361 = vunpack.c.h.b16 %v4343
    %v5362 = vunpack.c.l.b16 %v4344
    %v5363 = vunpack.c.h.b16 %v4344
    %v5364 = vunpack.c.l.b16 %v4345
    %v5365 = vunpack.c.l.b16 %v4346
    %v5366 = vunpack.c.h.b16 %v4346
    %v5367 = vunpack.c.l.b16 %v4347
    %v5368 = vunpack.c.h.b16 %v4347
    %v5369 = vunpack.c.l.b16 %v4348
    %v5370 = vunpack.c.l.b16 %v4349
    %v5371 = vunpack.c.h.b16 %v4349
    %v5372 = vunpack.c.l.b16 %v4350
    %v5373 = vunpack.c.h.b16 %v4350
    %v5374 = vunpack.c.l.b16 %v4351
    %v5375 = vunpack.c.l.b16 %v4352
    %v5376 = vunpack.c.h.b16 %v4352
    %v5377 = vunpack.c.l.b16 %v4353
    %v5378 = vunpack.c.h.b16 %v4353
    %v5379 = vunpack.c.l.b16 %v4354
    %v5380 = vunpack.c.l.b16 %v4355
    %v5381 = vunpack.c.h.b16 %v4355
    %v5382 = vunpack.c.l.b16 %v4356
    %v5383 = vunpack.c.h.b16 %v4356
    %v5384 = vunpack.c.l.b16 %v4357
    %v5385 = vunpack.c.l.b16 %v4358
    %v5386 = vunpack.c.h.b16 %v4358
    %v5387 = vunpack.c.l.b16 %v4359
    %v5388 = vunpack.c.h.b16 %v4359
    %v5389 = vunpack.c.l.b16 %v4360
    %v5390 = vunpack.c.l.b16 %v4361
    %v5391 = vunpack.c.h.b16 %v4361
    %v5392 = vunpack.c.l.b16 %v4362
    %v5393 = vunpack.c.h.b16 %v4362
    %v5394 = vunpack.c.l.b16 %v4363
    %v5395 = vunpack.c.l.b16 %v4364
    %v5396 = vunpack.c.h.b16 %v4364
    %v5397 = vunpack.c.l.b16 %v4365
    %v5398 = vunpack.c.h.b16 %v4365
    %v5399 = vunpack.c.l.b16 %v4366
    %v5400 = vunpack.c.l.b16 %v4367
    %v5401 = vunpack.c.h.b16 %v4367
    %v5402 = vunpack.c.l.b16 %v4368
    %v5403 = vunpack.c.h.b16 %v4368
    %v5404 = vunpack.c.l.b16 %v4369
    %v5405 = vunpack.c.l.b16 %v4370
    %v5406 = vunpack.c.h.b16 %v4370
    %v5407 = vunpack.c.l.b16 %v4371
    %v5408 = vunpack.c.h.b16 %v4371
    %v5409 = vunpack.c.l.b16 %v4372
    %v5410 = vunpack.c.l.b16 %v4373
    %v5411 = vunpack.c.h.b16 %v4373
    %v5412 = vunpack.c.l.b16 %v4374
    %v5413 = vunpack.c.h.b16 %v4374
    %v5414 = vunpack.c.l.b16 %v4375
    %v5415 = vunpack.c.l.b16 %v4376
    %v5416 = vunpack.c.h.b16 %v4376
    %v5417 = vunpack.c.l.b16 %v4377
    %v5418 = vunpack.c.h.b16 %v4377
    %v5419 = vunpack.c.l.b16 %v4378
    %v5420 = vunpack.c.l.b16 %v4379
    %v5421 = vunpack.c.h.b16 %v4379
    %v5422 = vunpack.c.l.b16 %v4380
    %v5423 = vunpack.c.h.b16 %v4380
    %v5424 = vunpack.c.l.b16 %v4381
    %v5425 = vunpack.c.l.b16 %v4382
    %v5426 = vunpack.c.h.b16 %v4382
    %v5427 = vunpack.c.l.b16 %v4383
    %v5428 = vunpack.c.h.b16 %v4383
    %v5429 = vunpack.c.l.b16 %v4384
    %v5430 = vunpack.c.l.b16 %v4385
    %v5431 = vunpack.c.h.b16 %v4385
    %v5432 = vunpack.c.l.b16 %v4386
    %v5433 = vunpack.c.h.b16 %v4386
    %v5434 = vunpack.c.l.b16 %v4387
    %v5435 = vunpack.c.l.b16 %v4388
    %v5436 = vunpack.c.h.b16 %v4388
    %v5437 = vunpack.c.l.b16 %v4389
    %v5438 = vunpack.c.h.b16 %v4389
    %v5439 = vunpack.c.l.b16 %v4390
    %v5440 = vunpack.c.l.b16 %v4391
    %v5441 = vunpack.c.h.b16 %v4391
    %v5442 = vunpack.c.l.b16 %v4392
    %v5443 = vunpack.c.h.b16 %v4392
    %v5444 = vunpack.c.l.b16 %v4393
    %v5445 = vpack.c.b16 %v4810, %v4805
    %v5446 = vpack.c.b16 %v4811, %v4806
    %v5447 = vpack.c.b16 %v4812, %v4807
    %v5448 = vpack.c.b16 %v4813, %v4808
    %v5449 = vpack.c.b16 %v4814, %v4809
    %v5450 = vpack.c.b16 %v4820, %v4815
    %v5451 = vpack.c.b16 %v4821, %v4816
    %v5452 = vpack.c.b16 %v4822, %v4817
    %v5453 = vpack.c.b16 %v4823, %v4818
    %v5454 = vpack.c.b16 %v4824, %v4819
    %v5455 = vpack.c.b16 %v4830, %v4825
    %v5456 = vpack.c.b16 %v4831, %v4826
    %v5457 = vpack.c.b16 %v4832, %v4827
    %v5458 = vpack.c.b16 %v4833, %v4828
    %v5459 = vpack.c.b16 %v4834, %v4829
    %v5460 = vpack.c.b16 %v4840, %v4835
    %v5461 = vpack.c.b16 %v4841, %v4836
    %v5462 = vpack.c.b16 %v4842, %v4837
    %v5463 = vpack.c.b16 %v4843, %v4838
    %v5464 = vpack.c.b16 %v4844, %v4839
    %v5465 = vpack.c.b16 %v4850, %v4845
    %v5466 = vpack.c.b16 %v4851, %v4846
    %v5467 = vpack.c.b16 %v4852, %v4847
    %v5468 = vpack.c.b16 %v4853, %v4848
    %v5469 = vpack.c.b16 %v4854, %v4849
    %v5470 = vpack.c.b16 %v4860, %v4855
    %v5471 = vpack.c.b16 %v4861, %v4856
    %v5472 = vpack.c.b16 %v4862, %v4857
    %v5473 = vpack.c.b16 %v4863, %v4858
    %v5474 = vpack.c.b16 %v4864, %v4859
    %v5475 = vpack.c.b16 %v4870, %v4865
    %v5476 = vpack.c.b16 %v4871, %v4866
    %v5477 = vpack.c.b16 %v4872, %v4867
    %v5478 = vpack.c.b16 %v4873, %v4868
    %v5479 = vpack.c.b16 %v4874, %v4869
    %v5480 = vpack.c.b16 %v4880, %v4875
    %v5481 = vpack.c.b16 %v4881, %v4876
    %v5482 = vpack.c.b16 %v4882, %v4877
    %v5483 = vpack.c.b16 %v4883, %v4878
    %v5484 = vpack.c.b16 %v4884, %v4879
    %v5485 = vpack.c.b16 %v4890, %v4885
    %v5486 = vpack.c.b16 %v4891, %v4886
    %v5487 = vpack.c.b16 %v4892, %v4887
    %v5488 = vpack.c.b16 %v4893, %v4888
    %v5489 = vpack.c.b16 %v4894, %v4889
    %v5490 = vpack.c.b16 %v4900, %v4895
    %v5491 = vpack.c.b16 %v4901, %v4896
    %v5492 = vpack.c.b16 %v4902, %v4897
    %v5493 = vpack.c.b16 %v4903, %v4898
    %v5494 = vpack.c.b16 %v4904, %v4899
    %v5495 = vpack.c.b16 %v4910, %v4905
    %v5496 = vpack.c.b16 %v4911, %v4906
    %v5497 = vpack.c.b16 %v4912, %v4907
    %v5498 = vpack.c.b16 %v4913, %v4908
    %v5499 = vpack.c.b16 %v4914, %v4909
    %v5500 = vpack.c.b16 %v4920, %v4915
    %v5501 = vpack.c.b16 %v4921, %v4916
    %v5502 = vpack.c.b16 %v4922, %v4917
    %v5503 = vpack.c.b16 %v4923, %v4918
    %v5504 = vpack.c.b16 %v4924, %v4919
    %v5505 = vpack.c.b16 %v4930, %v4925
    %v5506 = vpack.c.b16 %v4931, %v4926
    %v5507 = vpack.c.b16 %v4932, %v4927
    %v5508 = vpack.c.b16 %v4933, %v4928
    %v5509 = vpack.c.b16 %v4934, %v4929
    %v5510 = vpack.c.b16 %v4940, %v4935
    %v5511 = vpack.c.b16 %v4941, %v4936
    %v5512 = vpack.c.b16 %v4942, %v4937
    %v5513 = vpack.c.b16 %v4943, %v4938
    %v5514 = vpack.c.b16 %v4944, %v4939
    %v5515 = vpack.c.b16 %v4950, %v4945
    %v5516 = vpack.c.b16 %v4951, %v4946
    %v5517 = vpack.c.b16 %v4952, %v4947
    %v5518 = vpack.c.b16 %v4953, %v4948
    %v5519 = vpack.c.b16 %v4954, %v4949
    %v5520 = vpack.c.b16 %v4960, %v4955
    %v5521 = vpack.c.b16 %v4961, %v4956
    %v5522 = vpack.c.b16 %v4962, %v4957
    %v5523 = vpack.c.b16 %v4963, %v4958
    %v5524 = vpack.c.b16 %v4964, %v4959
    %v5525 = vpack.c.b16 %v4970, %v4965
    %v5526 = vpack.c.b16 %v4971, %v4966
    %v5527 = vpack.c.b16 %v4972, %v4967
    %v5528 = vpack.c.b16 %v4973, %v4968
    %v5529 = vpack.c.b16 %v4974, %v4969
    %v5530 = vpack.c.b16 %v4980, %v4975
    %v5531 = vpack.c.b16 %v4981, %v4976
    %v5532 = vpack.c.b16 %v4982, %v4977
    %v5533 = vpack.c.b16 %v4983, %v4978
    %v5534 = vpack.c.b16 %v4984, %v4979
    %v5535 = vpack.c.b16 %v4990, %v4985
    %v5536 = vpack.c.b16 %v4991, %v4986
    %v5537 = vpack.c.b16 %v4992, %v4987
    %v5538 = vpack.c.b16 %v4993, %v4988
    %v5539 = vpack.c.b16 %v4994, %v4989
    %v5540 = vpack.c.b16 %v5000, %v4995
    %v5541 = vpack.c.b16 %v5001, %v4996
    %v5542 = vpack.c.b16 %v5002, %v4997
    %v5543 = vpack.c.b16 %v5003, %v4998
    %v5544 = vpack.c.b16 %v5004, %v4999
    %v5545 = vpack.c.b16 %v5010, %v5005
    %v5546 = vpack.c.b16 %v5011, %v5006
    %v5547 = vpack.c.b16 %v5012, %v5007
    %v5548 = vpack.c.b16 %v5013, %v5008
    %v5549 = vpack.c.b16 %v5014, %v5009
    %v5550 = vpack.c.b16 %v5020, %v5015
    %v5551 = vpack.c.b16 %v5021, %v5016
    %v5552 = vpack.c.b16 %v5022, %v5017
    %v5553 = vpack.c.b16 %v5023, %v5018
    %v5554 = vpack.c.b16 %v5024, %v5019
    %v5555 = vpack.c.b16 %v5030, %v5025
    %v5556 = vpack.c.b16 %v5031, %v5026
    %v5557 = vpack.c.b16 %v5032, %v5027
    %v5558 = vpack.c.b16 %v5033, %v5028
    %v5559 = vpack.c.b16 %v5034, %v5029
    %v5560 = vpack.c.b16 %v5040, %v5035
    %v5561 = vpack.c.b16 %v5041, %v5036
    %v5562 = vpack.c.b16 %v5042, %v5037
    %v5563 = vpack.c.b16 %v5043, %v5038
    %v5564 = vpack.c.b16 %v5044, %v5039
    %v5565 = vpack.c.b16 %v5050, %v5045
    %v5566 = vpack.c.b16 %v5051, %v5046
    %v5567 = vpack.c.b16 %v5052, %v5047
    %v5568 = vpack.c.b16 %v5053, %v5048
    %v5569 = vpack.c.b16 %v5054, %v5049
    %v5570 = vpack.c.b16 %v5060, %v5055
    %v5571 = vpack.c.b16 %v5061, %v5056
    %v5572 = vpack.c.b16 %v5062, %v5057
    %v5573 = vpack.c.b16 %v5063, %v5058
    %v5574 = vpack.c.b16 %v5064, %v5059
    %v5575 = vpack.c.b16 %v5070, %v5065
    %v5576 = vpack.c.b16 %v5071, %v5066
    %v5577 = vpack.c.b16 %v5072, %v5067
    %v5578 = vpack.c.b16 %v5073, %v5068
    %v5579 = vpack.c.b16 %v5074, %v5069
    %v5580 = vpack.c.b16 %v5080, %v5075
    %v5581 = vpack.c.b16 %v5081, %v5076
    %v5582 = vpack.c.b16 %v5082, %v5077
    %v5583 = vpack.c.b16 %v5083, %v5078
    %v5584 = vpack.c.b16 %v5084, %v5079
    %v5585 = vpack.c.b16 %v5090, %v5085
    %v5586 = vpack.c.b16 %v5091, %v5086
    %v5587 = vpack.c.b16 %v5092, %v5087
    %v5588 = vpack.c.b16 %v5093, %v5088
    %v5589 = vpack.c.b16 %v5094, %v5089
    %v5590 = vpack.c.b16 %v5100, %v5095
    %v5591 = vpack.c.b16 %v5101, %v5096
    %v5592 = vpack.c.b16 %v5102, %v5097
    %v5593 = vpack.c.b16 %v5103, %v5098
    %v5594 = vpack.c.b16 %v5104, %v5099
    %v5595 = vpack.c.b16 %v5110, %v5105
    %v5596 = vpack.c.b16 %v5111, %v5106
    %v5597 = vpack.c.b16 %v5112, %v5107
    %v5598 = vpack.c.b16 %v5113, %v5108
    %v5599 = vpack.c.b16 %v5114, %v5109
    %v5600 = vpack.c.b16 %v5120, %v5115
    %v5601 = vpack.c.b16 %v5121, %v5116
    %v5602 = vpack.c.b16 %v5122, %v5117
    %v5603 = vpack.c.b16 %v5123, %v5118
    %v5604 = vpack.c.b16 %v5124, %v5119
    %v5605 = vpack.c.b16 %v5130, %v5125
    %v5606 = vpack.c.b16 %v5131, %v5126
    %v5607 = vpack.c.b16 %v5132, %v5127
    %v5608 = vpack.c.b16 %v5133, %v5128
    %v5609 = vpack.c.b16 %v5134, %v5129
    %v5610 = vpack.c.b16 %v5140, %v5135
    %v5611 = vpack.c.b16 %v5141, %v5136
    %v5612 = vpack.c.b16 %v5142, %v5137
    %v5613 = vpack.c.b16 %v5143, %v5138
    %v5614 = vpack.c.b16 %v5144, %v5139
    %v5615 = vpack.c.b16 %v5150, %v5145
    %v5616 = vpack.c.b16 %v5151, %v5146
    %v5617 = vpack.c.b16 %v5152, %v5147
    %v5618 = vpack.c.b16 %v5153, %v5148
    %v5619 = vpack.c.b16 %v5154, %v5149
    %v5620 = vpack.c.b16 %v5160, %v5155
    %v5621 = vpack.c.b16 %v5161, %v5156
    %v5622 = vpack.c.b16 %v5162, %v5157
    %v5623 = vpack.c.b16 %v5163, %v5158
    %v5624 = vpack.c.b16 %v5164, %v5159
    %v5625 = vpack.c.b16 %v5170, %v5165
    %v5626 = vpack.c.b16 %v5171, %v5166
    %v5627 = vpack.c.b16 %v5172, %v5167
    %v5628 = vpack.c.b16 %v5173, %v5168
    %v5629 = vpack.c.b16 %v5174, %v5169
    %v5630 = vpack.c.b16 %v5180, %v5175
    %v5631 = vpack.c.b16 %v5181, %v5176
    %v5632 = vpack.c.b16 %v5182, %v5177
    %v5633 = vpack.c.b16 %v5183, %v5178
    %v5634 = vpack.c.b16 %v5184, %v5179
    %v5635 = vpack.c.b16 %v5190, %v5185
    %v5636 = vpack.c.b16 %v5191, %v5186
    %v5637 = vpack.c.b16 %v5192, %v5187
    %v5638 = vpack.c.b16 %v5193, %v5188
    %v5639 = vpack.c.b16 %v5194, %v5189
    %v5640 = vpack.c.b16 %v5200, %v5195
    %v5641 = vpack.c.b16 %v5201, %v5196
    %v5642 = vpack.c.b16 %v5202, %v5197
    %v5643 = vpack.c.b16 %v5203, %v5198
    %v5644 = vpack.c.b16 %v5204, %v5199
    %v5645 = vpack.c.b16 %v5210, %v5205
    %v5646 = vpack.c.b16 %v5211, %v5206
    %v5647 = vpack.c.b16 %v5212, %v5207
    %v5648 = vpack.c.b16 %v5213, %v5208
    %v5649 = vpack.c.b16 %v5214, %v5209
    %v5650 = vpack.c.b16 %v5220, %v5215
    %v5651 = vpack.c.b16 %v5221, %v5216
    %v5652 = vpack.c.b16 %v5222, %v5217
    %v5653 = vpack.c.b16 %v5223, %v5218
    %v5654 = vpack.c.b16 %v5224, %v5219
    %v5655 = vpack.c.b16 %v5230, %v5225
    %v5656 = vpack.c.b16 %v5231, %v5226
    %v5657 = vpack.c.b16 %v5232, %v5227
    %v5658 = vpack.c.b16 %v5233, %v5228
    %v5659 = vpack.c.b16 %v5234, %v5229
    %v5660 = vpack.c.b16 %v5240, %v5235
    %v5661 = vpack.c.b16 %v5241, %v5236
    %v5662 = vpack.c.b16 %v5242, %v5237
    %v5663 = vpack.c.b16 %v5243, %v5238
    %v5664 = vpack.c.b16 %v5244, %v5239
    %v5665 = vpack.c.b16 %v5250, %v5245
    %v5666 = vpack.c.b16 %v5251, %v5246
    %v5667 = vpack.c.b16 %v5252, %v5247
    %v5668 = vpack.c.b16 %v5253, %v5248
    %v5669 = vpack.c.b16 %v5254, %v5249
    %v5670 = vpack.c.b16 %v5260, %v5255
    %v5671 = vpack.c.b16 %v5261, %v5256
    %v5672 = vpack.c.b16 %v5262, %v5257
    %v5673 = vpack.c.b16 %v5263, %v5258
    %v5674 = vpack.c.b16 %v5264, %v5259
    %v5675 = vpack.c.b16 %v5270, %v5265
    %v5676 = vpack.c.b16 %v5271, %v5266
    %v5677 = vpack.c.b16 %v5272, %v5267
    %v5678 = vpack.c.b16 %v5273, %v5268
    %v5679 = vpack.c.b16 %v5274, %v5269
    %v5680 = vpack.c.b16 %v5280, %v5275
    %v5681 = vpack.c.b16 %v5281, %v5276
    %v5682 = vpack.c.b16 %v5282, %v5277
    %v5683 = vpack.c.b16 %v5283, %v5278
    %v5684 = vpack.c.b16 %v5284, %v5279
    %v5685 = vpack.c.b16 %v5290, %v5285
    %v5686 = vpack.c.b16 %v5291, %v5286
    %v5687 = vpack.c.b16 %v5292, %v5287
    %v5688 = vpack.c.b16 %v5293, %v5288
    %v5689 = vpack.c.b16 %v5294, %v5289
    %v5690 = vpack.c.b16 %v5300, %v5295
    %v5691 = vpack.c.b16 %v5301, %v5296
    %v5692 = vpack.c.b16 %v5302, %v5297
    %v5693 = vpack.c.b16 %v5303, %v5298
    %v5694 = vpack.c.b16 %v5304, %v5299
    %v5695 = vpack.c.b16 %v5310, %v5305
    %v5696 = vpack.c.b16 %v5311, %v5306
    %v5697 = vpack.c.b16 %v5312, %v5307
    %v5698 = vpack.c.b16 %v5313, %v5308
    %v5699 = vpack.c.b16 %v5314, %v5309
    %v5700 = vpack.c.b16 %v5320, %v5315
    %v5701 = vpack.c.b16 %v5321, %v5316
    %v5702 = vpack.c.b16 %v5322, %v5317
    %v5703 = vpack.c.b16 %v5323, %v5318
    %v5704 = vpack.c.b16 %v5324, %v5319
    %v5705 = vpack.c.b16 %v5330, %v5325
    %v5706 = vpack.c.b16 %v5331, %v5326
    %v5707 = vpack.c.b16 %v5332, %v5327
    %v5708 = vpack.c.b16 %v5333, %v5328
    %v5709 = vpack.c.b16 %v5334, %v5329
    %v5710 = vpack.c.b16 %v5340, %v5335
    %v5711 = vpack.c.b16 %v5341, %v5336
    %v5712 = vpack.c.b16 %v5342, %v5337
    %v5713 = vpack.c.b16 %v5343, %v5338
    %v5714 = vpack.c.b16 %v5344, %v5339
    %v5715 = vpack.c.b16 %v5350, %v5345
    %v5716 = vpack.c.b16 %v5351, %v5346
    %v5717 = vpack.c.b16 %v5352, %v5347
    %v5718 = vpack.c.b16 %v5353, %v5348
    %v5719 = vpack.c.b16 %v5354, %v5349
    %v5720 = vpack.c.b16 %v5360, %v5355
    %v5721 = vpack.c.b16 %v5361, %v5356
    %v5722 = vpack.c.b16 %v5362, %v5357
    %v5723 = vpack.c.b16 %v5363, %v5358
    %v5724 = vpack.c.b16 %v5364, %v5359
    %v5725 = vpack.c.b16 %v5370, %v5365
    %v5726 = vpack.c.b16 %v5371, %v5366
    %v5727 = vpack.c.b16 %v5372, %v5367
    %v5728 = vpack.c.b16 %v5373, %v5368
    %v5729 = vpack.c.b16 %v5374, %v5369
    %v5730 = vpack.c.b16 %v5380, %v5375
    %v5731 = vpack.c.b16 %v5381, %v5376
    %v5732 = vpack.c.b16 %v5382, %v5377
    %v5733 = vpack.c.b16 %v5383, %v5378
    %v5734 = vpack.c.b16 %v5384, %v5379
    %v5735 = vpack.c.b16 %v5390, %v5385
    %v5736 = vpack.c.b16 %v5391, %v5386
    %v5737 = vpack.c.b16 %v5392, %v5387
    %v5738 = vpack.c.b16 %v5393, %v5388
    %v5739 = vpack.c.b16 %v5394, %v5389
    %v5740 = vpack.c.b16 %v5400, %v5395
    %v5741 = vpack.c.b16 %v5401, %v5396
    %v5742 = vpack.c.b16 %v5402, %v5397
    %v5743 = vpack.c.b16 %v5403, %v5398
    %v5744 = vpack.c.b16 %v5404, %v5399
    %v5745 = vpack.c.b16 %v5410, %v5405
    %v5746 = vpack.c.b16 %v5411, %v5406
    %v5747 = vpack.c.b16 %v5412, %v5407
    %v5748 = vpack.c.b16 %v5413, %v5408
    %v5749 = vpack.c.b16 %v5414, %v5409
    %v5750 = vpack.c.b16 %v5420, %v5415
    %v5751 = vpack.c.b16 %v5421, %v5416
    %v5752 = vpack.c.b16 %v5422, %v5417
    %v5753 = vpack.c.b16 %v5423, %v5418
    %v5754 = vpack.c.b16 %v5424, %v5419
    %v5755 = vpack.c.b16 %v5430, %v5425
    %v5756 = vpack.c.b16 %v5431, %v5426
    %v5757 = vpack.c.b16 %v5432, %v5427
    %v5758 = vpack.c.b16 %v5433, %v5428
    %v5759 = vpack.c.b16 %v5434, %v5429
    %v5760 = vpack.c.b16 %v5440, %v5435
    %v5761 = vpack.c.b16 %v5441, %v5436
    %v5762 = vpack.c.b16 %v5442, %v5437
    %v5763 = vpack.c.b16 %v5443, %v5438
    %v5764 = vpack.c.b16 %v5444, %v5439
    %6085 = vmatprep.subr.bf16.mxu0 %v5446
    %6086 = vmatpush1.bf16.msra.mxu0 %v5445
    %6087 = vmatprep.subr.bf16.mxu0 %v5451
    %6088 = vmatpush1.bf16.msra.mxu0 %v5450
    %6089 = vmatprep.subr.bf16.mxu0 %v5456
    %6090 = vmatpush1.bf16.msra.mxu0 %v5455
    %6091 = vmatprep.subr.bf16.mxu0 %v5461
    %6092 = vmatpush1.bf16.msra.mxu0 %v5460
    %6093 = vmatprep.subr.bf16.mxu0 %v5466
    %6094 = vmatpush1.bf16.msra.mxu0 %v5465
    %6095 = vmatprep.subr.bf16.mxu0 %v5471
    %6096 = vmatpush1.bf16.msra.mxu0 %v5470
    %6097 = vmatprep.subr.bf16.mxu0 %v5476
    %6098 = vmatpush1.bf16.msra.mxu0 %v5475
    %6099 = vmatprep.subr.bf16.mxu0 %v5481
    %6100 = vmatpush1.bf16.msra.mxu0 %v5480
    %6101 = vmatprep.subr.bf16.mxu0 %v5486
    %6102 = vmatpush1.bf16.msra.mxu0 %v5485
    %6103 = vmatprep.subr.bf16.mxu0 %v5491
    %6104 = vmatpush1.bf16.msra.mxu0 %v5490
    %6105 = vmatprep.subr.bf16.mxu0 %v5496
    %6106 = vmatpush1.bf16.msra.mxu0 %v5495
    %6107 = vmatprep.subr.bf16.mxu0 %v5501
    %6108 = vmatpush1.bf16.msra.mxu0 %v5500
    %6109 = vmatprep.subr.bf16.mxu0 %v5506
    %6110 = vmatpush1.bf16.msra.mxu0 %v5505
    %6111 = vmatprep.subr.bf16.mxu0 %v5511
    %6112 = vmatpush1.bf16.msra.mxu0 %v5510
    %6113 = vmatprep.subr.bf16.mxu0 %v5516
    %6114 = vmatpush1.bf16.msra.mxu0 %v5515
    %6115 = vmatprep.subr.bf16.mxu0 %v5521
    %6116 = vmatpush1.bf16.msra.mxu0 %v5520
    %6117 = vmatprep.mubr.bf16.mxu0 %v4003
    %6118 = vmatmul.mubr.bf16.gmra.mrb[0].mxu0 %v4002
    %v6119 = vpop.f32.mrb[0].mxu0
    %v6120 = vadd.f32 %v4399, %v6119
    %v6121 = vpop.f32.mrb[0].mxu0
    %v6122 = vadd.f32 %v4403, %v6121
    %v6123 = vpop.f32.mrb[0].mxu0
    %v6124 = vpop.f32.mrb[0].mxu0
    %6125 = vdwg.mxu0
    %6126 = vmatprep.subr.bf16.mxu0 %v5526
    %6127 = vmatpush1.bf16.msra.mxu0 %v5525
    %6128 = vmatprep.subr.bf16.mxu0 %v5531
    %6129 = vmatpush1.bf16.msra.mxu0 %v5530
    %6130 = vmatprep.subr.bf16.mxu0 %v5536
    %6131 = vmatpush1.bf16.msra.mxu0 %v5535
    %6132 = vmatprep.subr.bf16.mxu0 %v5541
    %6133 = vmatpush1.bf16.msra.mxu0 %v5540
    %6134 = vmatprep.subr.bf16.mxu0 %v5546
    %6135 = vmatpush1.bf16.msra.mxu0 %v5545
    %6136 = vmatprep.subr.bf16.mxu0 %v5551
    %6137 = vmatpush1.bf16.msra.mxu0 %v5550
    %6138 = vmatprep.subr.bf16.mxu0 %v5556
    %6139 = vmatpush1.bf16.msra.mxu0 %v5555
    %6140 = vmatprep.subr.bf16.mxu0 %v5561
    %6141 = vmatpush1.bf16.msra.mxu0 %v5560
    %6142 = vmatprep.subr.bf16.mxu0 %v5566
    %6143 = vmatpush1.bf16.msra.mxu0 %v5565
    %6144 = vmatprep.subr.bf16.mxu0 %v5571
    %6145 = vmatpush1.bf16.msra.mxu0 %v5570
    %6146 = vmatprep.subr.bf16.mxu0 %v5576
    %6147 = vmatpush1.bf16.msra.mxu0 %v5575
    %6148 = vmatprep.subr.bf16.mxu0 %v5581
    %6149 = vmatpush1.bf16.msra.mxu0 %v5580
    %6150 = vmatprep.subr.bf16.mxu0 %v5586
    %6151 = vmatpush1.bf16.msra.mxu0 %v5585
    %6152 = vmatprep.subr.bf16.mxu0 %v5591
    %6153 = vmatpush1.bf16.msra.mxu0 %v5590
    %6154 = vmatprep.subr.bf16.mxu0 %v5596
    %6155 = vmatpush1.bf16.msra.mxu0 %v5595
    %6156 = vmatprep.subr.bf16.mxu0 %v5601
    %6157 = vmatpush1.bf16.msra.mxu0 %v5600
    %6158 = vmatprep.mubr.bf16.mxu0 %v4005
    %6159 = vmatmul.mubr.bf16.gmra.mrb[0].mxu0 %v4004
    %v6160 = vpop.f32.mrb[0].mxu0
    %v6161 = vadd.f32 %v6120, %v6160
    %v6162 = vpop.f32.mrb[0].mxu0
    %v6163 = vadd.f32 %v6122, %v6162
    %v6164 = vpop.f32.mrb[0].mxu0
    %v6165 = vpop.f32.mrb[0].mxu0
    %6166 = vdwg.mxu0
    %6167 = vmatprep.subr.bf16.mxu0 %v5606
    %6168 = vmatpush1.bf16.msra.mxu0 %v5605
    %6169 = vmatprep.subr.bf16.mxu0 %v5611
    %6170 = vmatpush1.bf16.msra.mxu0 %v5610
    %6171 = vmatprep.subr.bf16.mxu0 %v5616
    %6172 = vmatpush1.bf16.msra.mxu0 %v5615
    %6173 = vmatprep.subr.bf16.mxu0 %v5621
    %6174 = vmatpush1.bf16.msra.mxu0 %v5620
    %6175 = vmatprep.subr.bf16.mxu0 %v5626
    %6176 = vmatpush1.bf16.msra.mxu0 %v5625
    %6177 = vmatprep.subr.bf16.mxu0 %v5631
    %6178 = vmatpush1.bf16.msra.mxu0 %v5630
    %6179 = vmatprep.subr.bf16.mxu0 %v5636
    %6180 = vmatpush1.bf16.msra.mxu0 %v5635
    %6181 = vmatprep.subr.bf16.mxu0 %v5641
    %6182 = vmatpush1.bf16.msra.mxu0 %v5640
    %6183 = vmatprep.subr.bf16.mxu0 %v5646
    %6184 = vmatpush1.bf16.msra.mxu0 %v5645
    %6185 = vmatprep.subr.bf16.mxu0 %v5651
    %6186 = vmatpush1.bf16.msra.mxu0 %v5650
    %6187 = vmatprep.subr.bf16.mxu0 %v5656
    %6188 = vmatpush1.bf16.msra.mxu0 %v5655
    %6189 = vmatprep.subr.bf16.mxu0 %v5661
    %6190 = vmatpush1.bf16.msra.mxu0 %v5660
    %6191 = vmatprep.subr.bf16.mxu0 %v5666
    %6192 = vmatpush1.bf16.msra.mxu0 %v5665
    %6193 = vmatprep.subr.bf16.mxu0 %v5671
    %6194 = vmatpush1.bf16.msra.mxu0 %v5670
    %6195 = vmatprep.subr.bf16.mxu0 %v5676
    %6196 = vmatpush1.bf16.msra.mxu0 %v5675
    %6197 = vmatprep.subr.bf16.mxu0 %v5681
    %6198 = vmatpush1.bf16.msra.mxu0 %v5680
    %6199 = vmatprep.mubr.bf16.mxu0 %v4007
    %6200 = vmatmul.mubr.bf16.gmra.mrb[0].mxu0 %v4006
    %v6201 = vpop.f32.mrb[0].mxu0
    %v6202 = vadd.f32 %v6161, %v6201
    %v6203 = vpop.f32.mrb[0].mxu0
    %v6204 = vadd.f32 %v6163, %v6203
    %v6205 = vpop.f32.mrb[0].mxu0
    %v6206 = vpop.f32.mrb[0].mxu0
    %6207 = vdwg.mxu0
    %6208 = vmatprep.subr.bf16.mxu0 %v5686
    %6209 = vmatpush1.bf16.msra.mxu0 %v5685
    %6210 = vmatprep.subr.bf16.mxu0 %v5691
    %6211 = vmatpush1.bf16.msra.mxu0 %v5690
    %6212 = vmatprep.subr.bf16.mxu0 %v5696
    %6213 = vmatpush1.bf16.msra.mxu0 %v5695
    %6214 = vmatprep.subr.bf16.mxu0 %v5701
    %6215 = vmatpush1.bf16.msra.mxu0 %v5700
    %6216 = vmatprep.subr.bf16.mxu0 %v5706
    %6217 = vmatpush1.bf16.msra.mxu0 %v5705
    %6218 = vmatprep.subr.bf16.mxu0 %v5711
    %6219 = vmatpush1.bf16.msra.mxu0 %v5710
    %6220 = vmatprep.subr.bf16.mxu0 %v5716
    %6221 = vmatpush1.bf16.msra.mxu0 %v5715
    %6222 = vmatprep.subr.bf16.mxu0 %v5721
    %6223 = vmatpush1.bf16.msra.mxu0 %v5720
    %6224 = vmatprep.subr.bf16.mxu0 %v5726
    %6225 = vmatpush1.bf16.msra.mxu0 %v5725
    %6226 = vmatprep.subr.bf16.mxu0 %v5731
    %6227 = vmatpush1.bf16.msra.mxu0 %v5730
    %6228 = vmatprep.subr.bf16.mxu0 %v5736
    %6229 = vmatpush1.bf16.msra.mxu0 %v5735
    %6230 = vmatprep.subr.bf16.mxu0 %v5741
    %6231 = vmatpush1.bf16.msra.mxu0 %v5740
    %6232 = vmatprep.subr.bf16.mxu0 %v5746
    %6233 = vmatpush1.bf16.msra.mxu0 %v5745
    %6234 = vmatprep.subr.bf16.mxu0 %v5751
    %6235 = vmatpush1.bf16.msra.mxu0 %v5750
    %6236 = vmatprep.subr.bf16.mxu0 %v5756
    %6237 = vmatpush1.bf16.msra.mxu0 %v5755
    %6238 = vmatprep.subr.bf16.mxu0 %v5761
    %6239 = vmatpush1.bf16.msra.mxu0 %v5760
    %6240 = vmatprep.mubr.bf16.mxu0 %v4009
    %6241 = vmatmul.mubr.bf16.gmra.mrb[0].mxu0 %v4008
    %v6242 = vpop.f32.mrb[0].mxu0
    %v6243 = vadd.f32 %v6202, %v6242
    %v6244 = vpop.f32.mrb[0].mxu0
    %v6245 = vadd.f32 %v6204, %v6244
    %v6246 = vpop.f32.mrb[0].mxu0
    %v6247 = vpop.f32.mrb[0].mxu0
    %6248 = vdwg.mxu0
    %6249 = vmatprep.subr.bf16.mxu0 %v5448
    %6250 = vmatpush1.bf16.msra.mxu0 %v5447
    %6251 = vmatprep.subr.bf16.mxu0 %v5453
    %6252 = vmatpush1.bf16.msra.mxu0 %v5452
    %6253 = vmatprep.subr.bf16.mxu0 %v5458
    %6254 = vmatpush1.bf16.msra.mxu0 %v5457
    %6255 = vmatprep.subr.bf16.mxu0 %v5463
    %6256 = vmatpush1.bf16.msra.mxu0 %v5462
    %6257 = vmatprep.subr.bf16.mxu0 %v5468
    %6258 = vmatpush1.bf16.msra.mxu0 %v5467
    %6259 = vmatprep.subr.bf16.mxu0 %v5473
    %6260 = vmatpush1.bf16.msra.mxu0 %v5472
    %6261 = vmatprep.subr.bf16.mxu0 %v5478
    %6262 = vmatpush1.bf16.msra.mxu0 %v5477
    %6263 = vmatprep.subr.bf16.mxu0 %v5483
    %6264 = vmatpush1.bf16.msra.mxu0 %v5482
    %6265 = vmatprep.subr.bf16.mxu0 %v5488
    %6266 = vmatpush1.bf16.msra.mxu0 %v5487
    %6267 = vmatprep.subr.bf16.mxu0 %v5493
    %6268 = vmatpush1.bf16.msra.mxu0 %v5492
    %6269 = vmatprep.subr.bf16.mxu0 %v5498
    %6270 = vmatpush1.bf16.msra.mxu0 %v5497
    %6271 = vmatprep.subr.bf16.mxu0 %v5503
    %6272 = vmatpush1.bf16.msra.mxu0 %v5502
    %6273 = vmatprep.subr.bf16.mxu0 %v5508
    %6274 = vmatpush1.bf16.msra.mxu0 %v5507
    %6275 = vmatprep.subr.bf16.mxu0 %v5513
    %6276 = vmatpush1.bf16.msra.mxu0 %v5512
    %6277 = vmatprep.subr.bf16.mxu0 %v5518
    %6278 = vmatpush1.bf16.msra.mxu0 %v5517
    %6279 = vmatprep.subr.bf16.mxu0 %v5523
    %6280 = vmatpush1.bf16.msra.mxu0 %v5522
    %6281 = vmatprep.mubr.bf16.mxu0 %v4003
    %6282 = vmatmul.mubr.bf16.gmra.mrb[0].mxu0 %v4002
    %v6283 = vpop.f32.mrb[0].mxu0
    %v6284 = vadd.f32 %v4407, %v6283
    %v6285 = vpop.f32.mrb[0].mxu0
    %v6286 = vadd.f32 %v4411, %v6285
    %v6287 = vpop.f32.mrb[0].mxu0
    %v6288 = vpop.f32.mrb[0].mxu0
    %6289 = vdwg.mxu0
    %6290 = vmatprep.subr.bf16.mxu0 %v5528
    %6291 = vmatpush1.bf16.msra.mxu0 %v5527
    %6292 = vmatprep.subr.bf16.mxu0 %v5533
    %6293 = vmatpush1.bf16.msra.mxu0 %v5532
    %6294 = vmatprep.subr.bf16.mxu0 %v5538
    %6295 = vmatpush1.bf16.msra.mxu0 %v5537
    %6296 = vmatprep.subr.bf16.mxu0 %v5543
    %6297 = vmatpush1.bf16.msra.mxu0 %v5542
    %6298 = vmatprep.subr.bf16.mxu0 %v5548
    %6299 = vmatpush1.bf16.msra.mxu0 %v5547
    %6300 = vmatprep.subr.bf16.mxu0 %v5553
    %6301 = vmatpush1.bf16.msra.mxu0 %v5552
    %6302 = vmatprep.subr.bf16.mxu0 %v5558
    %6303 = vmatpush1.bf16.msra.mxu0 %v5557
    %6304 = vmatprep.subr.bf16.mxu0 %v5563
    %6305 = vmatpush1.bf16.msra.mxu0 %v5562
    %6306 = vmatprep.subr.bf16.mxu0 %v5568
    %6307 = vmatpush1.bf16.msra.mxu0 %v5567
    %6308 = vmatprep.subr.bf16.mxu0 %v5573
    %6309 = vmatpush1.bf16.msra.mxu0 %v5572
    %6310 = vmatprep.subr.bf16.mxu0 %v5578
    %6311 = vmatpush1.bf16.msra.mxu0 %v5577
    %6312 = vmatprep.subr.bf16.mxu0 %v5583
    %6313 = vmatpush1.bf16.msra.mxu0 %v5582
    %6314 = vmatprep.subr.bf16.mxu0 %v5588
    %6315 = vmatpush1.bf16.msra.mxu0 %v5587
    %6316 = vmatprep.subr.bf16.mxu0 %v5593
    %6317 = vmatpush1.bf16.msra.mxu0 %v5592
    %6318 = vmatprep.subr.bf16.mxu0 %v5598
    %6319 = vmatpush1.bf16.msra.mxu0 %v5597
    %6320 = vmatprep.subr.bf16.mxu0 %v5603
    %6321 = vmatpush1.bf16.msra.mxu0 %v5602
    %6322 = vmatprep.mubr.bf16.mxu0 %v4005
    %6323 = vmatmul.mubr.bf16.gmra.mrb[0].mxu0 %v4004
    %v6324 = vpop.f32.mrb[0].mxu0
    %v6325 = vadd.f32 %v6284, %v6324
    %v6326 = vpop.f32.mrb[0].mxu0
    %v6327 = vadd.f32 %v6286, %v6326
    %v6328 = vpop.f32.mrb[0].mxu0
    %v6329 = vpop.f32.mrb[0].mxu0
    %6330 = vdwg.mxu0
    %6331 = vmatprep.subr.bf16.mxu0 %v5608
    %6332 = vmatpush1.bf16.msra.mxu0 %v5607
    %6333 = vmatprep.subr.bf16.mxu0 %v5613
    %6334 = vmatpush1.bf16.msra.mxu0 %v5612
    %6335 = vmatprep.subr.bf16.mxu0 %v5618
    %6336 = vmatpush1.bf16.msra.mxu0 %v5617
    %6337 = vmatprep.subr.bf16.mxu0 %v5623
    %6338 = vmatpush1.bf16.msra.mxu0 %v5622
    %6339 = vmatprep.subr.bf16.mxu0 %v5628
    %6340 = vmatpush1.bf16.msra.mxu0 %v5627
    %6341 = vmatprep.subr.bf16.mxu0 %v5633
    %6342 = vmatpush1.bf16.msra.mxu0 %v5632
    %6343 = vmatprep.subr.bf16.mxu0 %v5638
    %6344 = vmatpush1.bf16.msra.mxu0 %v5637
    %6345 = vmatprep.subr.bf16.mxu0 %v5643
    %6346 = vmatpush1.bf16.msra.mxu0 %v5642
    %6347 = vmatprep.subr.bf16.mxu0 %v5648
    %6348 = vmatpush1.bf16.msra.mxu0 %v5647
    %6349 = vmatprep.subr.bf16.mxu0 %v5653
    %6350 = vmatpush1.bf16.msra.mxu0 %v5652
    %6351 = vmatprep.subr.bf16.mxu0 %v5658
    %6352 = vmatpush1.bf16.msra.mxu0 %v5657
    %6353 = vmatprep.subr.bf16.mxu0 %v5663
    %6354 = vmatpush1.bf16.msra.mxu0 %v5662
    %6355 = vmatprep.subr.bf16.mxu0 %v5668
    %6356 = vmatpush1.bf16.msra.mxu0 %v5667
    %6357 = vmatprep.subr.bf16.mxu0 %v5673
    %6358 = vmatpush1.bf16.msra.mxu0 %v5672
    %6359 = vmatprep.subr.bf16.mxu0 %v5678
    %6360 = vmatpush1.bf16.msra.mxu0 %v5677
    %6361 = vmatprep.subr.bf16.mxu0 %v5683
    %6362 = vmatpush1.bf16.msra.mxu0 %v5682
    %6363 = vmatprep.mubr.bf16.mxu0 %v4007
    %6364 = vmatmul.mubr.bf16.gmra.mrb[0].mxu0 %v4006
    %v6365 = vpop.f32.mrb[0].mxu0
    %v6366 = vadd.f32 %v6325, %v6365
    %v6367 = vpop.f32.mrb[0].mxu0
    %v6368 = vadd.f32 %v6327, %v6367
    %v6369 = vpop.f32.mrb[0].mxu0
    %v6370 = vpop.f32.mrb[0].mxu0
    %6371 = vdwg.mxu0
    %6372 = vmatprep.subr.bf16.mxu0 %v5688
    %6373 = vmatpush1.bf16.msra.mxu0 %v5687
    %6374 = vmatprep.subr.bf16.mxu0 %v5693
    %6375 = vmatpush1.bf16.msra.mxu0 %v5692
    %6376 = vmatprep.subr.bf16.mxu0 %v5698
    %6377 = vmatpush1.bf16.msra.mxu0 %v5697
    %6378 = vmatprep.subr.bf16.mxu0 %v5703
    %6379 = vmatpush1.bf16.msra.mxu0 %v5702
    %6380 = vmatprep.subr.bf16.mxu0 %v5708
    %6381 = vmatpush1.bf16.msra.mxu0 %v5707
    %6382 = vmatprep.subr.bf16.mxu0 %v5713
    %6383 = vmatpush1.bf16.msra.mxu0 %v5712
    %6384 = vmatprep.subr.bf16.mxu0 %v5718
    %6385 = vmatpush1.bf16.msra.mxu0 %v5717
    %6386 = vmatprep.subr.bf16.mxu0 %v5723
    %6387 = vmatpush1.bf16.msra.mxu0 %v5722
    %6388 = vmatprep.subr.bf16.mxu0 %v5728
    %6389 = vmatpush1.bf16.msra.mxu0 %v5727
    %6390 = vmatprep.subr.bf16.mxu0 %v5733
    %6391 = vmatpush1.bf16.msra.mxu0 %v5732
    %6392 = vmatprep.subr.bf16.mxu0 %v5738
    %6393 = vmatpush1.bf16.msra.mxu0 %v5737
    %6394 = vmatprep.subr.bf16.mxu0 %v5743
    %6395 = vmatpush1.bf16.msra.mxu0 %v5742
    %6396 = vmatprep.subr.bf16.mxu0 %v5748
    %6397 = vmatpush1.bf16.msra.mxu0 %v5747
    %6398 = vmatprep.subr.bf16.mxu0 %v5753
    %6399 = vmatpush1.bf16.msra.mxu0 %v5752
    %6400 = vmatprep.subr.bf16.mxu0 %v5758
    %6401 = vmatpush1.bf16.msra.mxu0 %v5757
    %6402 = vmatprep.subr.bf16.mxu0 %v5763
    %6403 = vmatpush1.bf16.msra.mxu0 %v5762
    %6404 = vmatprep.mubr.bf16.mxu0 %v4009
    %6405 = vmatmul.mubr.bf16.gmra.mrb[0].mxu0 %v4008
    %v6406 = vpop.f32.mrb[0].mxu0
    %v6407 = vadd.f32 %v6366, %v6406
    %v6408 = vpop.f32.mrb[0].mxu0
    %v6409 = vadd.f32 %v6368, %v6408
    %v6410 = vpop.f32.mrb[0].mxu0
    %v6411 = vpop.f32.mrb[0].mxu0
    %6412 = vdwg.mxu0
    %6413 = vmatprep.subr.bf16.mxu0 0
    %6414 = vmatpush1.bf16.msra.mxu0 %v5449
    %6415 = vmatprep.subr.bf16.mxu0 0
    %6416 = vmatpush1.bf16.msra.mxu0 %v5454
    %6417 = vmatprep.subr.bf16.mxu0 0
    %6418 = vmatpush1.bf16.msra.mxu0 %v5459
    %6419 = vmatprep.subr.bf16.mxu0 0
    %6420 = vmatpush1.bf16.msra.mxu0 %v5464
    %6421 = vmatprep.subr.bf16.mxu0 0
    %6422 = vmatpush1.bf16.msra.mxu0 %v5469
    %6423 = vmatprep.subr.bf16.mxu0 0
    %6424 = vmatpush1.bf16.msra.mxu0 %v5474
    %6425 = vmatprep.subr.bf16.mxu0 0
    %6426 = vmatpush1.bf16.msra.mxu0 %v5479
    %6427 = vmatprep.subr.bf16.mxu0 0
    %6428 = vmatpush1.bf16.msra.mxu0 %v5484
    %6429 = vmatprep.subr.bf16.mxu0 0
    %6430 = vmatpush1.bf16.msra.mxu0 %v5489
    %6431 = vmatprep.subr.bf16.mxu0 0
    %6432 = vmatpush1.bf16.msra.mxu0 %v5494
    %6433 = vmatprep.subr.bf16.mxu0 0
    %6434 = vmatpush1.bf16.msra.mxu0 %v5499
    %6435 = vmatprep.subr.bf16.mxu0 0
    %6436 = vmatpush1.bf16.msra.mxu0 %v5504
    %6437 = vmatprep.subr.bf16.mxu0 0
    %6438 = vmatpush1.bf16.msra.mxu0 %v5509
    %6439 = vmatprep.subr.bf16.mxu0 0
    %6440 = vmatpush1.bf16.msra.mxu0 %v5514
    %6441 = vmatprep.subr.bf16.mxu0 0
    %6442 = vmatpush1.bf16.msra.mxu0 %v5519
    %6443 = vmatprep.subr.bf16.mxu0 0
    %6444 = vmatpush1.bf16.msra.mxu0 %v5524
    %6445 = vmatprep.mubr.bf16.mxu0 %v4003
    %6446 = vmatmul.mubr.bf16.gmra.mrb[0].mxu0 %v4002
    %v6447 = vpop.f32.mrb[0].mxu0
    %v6448 = vadd.f32 %v4415, %v6447
    %v6449 = vpop.f32.mrb[0].mxu0
    %v6450 = vpop.f32.mrb[0].mxu0
    %v6451 = vpop.f32.mrb[0].mxu0
    %6452 = vdwg.mxu0
    %6453 = vmatprep.subr.bf16.mxu0 0
    %6454 = vmatpush1.bf16.msra.mxu0 %v5529
    %6455 = vmatprep.subr.bf16.mxu0 0
    %6456 = vmatpush1.bf16.msra.mxu0 %v5534
    %6457 = vmatprep.subr.bf16.mxu0 0
    %6458 = vmatpush1.bf16.msra.mxu0 %v5539
    %6459 = vmatprep.subr.bf16.mxu0 0
    %6460 = vmatpush1.bf16.msra.mxu0 %v5544
    %6461 = vmatprep.subr.bf16.mxu0 0
    %6462 = vmatpush1.bf16.msra.mxu0 %v5549
    %6463 = vmatprep.subr.bf16.mxu0 0
    %6464 = vmatpush1.bf16.msra.mxu0 %v5554
    %6465 = vmatprep.subr.bf16.mxu0 0
    %6466 = vmatpush1.bf16.msra.mxu0 %v5559
    %6467 = vmatprep.subr.bf16.mxu0 0
    %6468 = vmatpush1.bf16.msra.mxu0 %v5564
    %6469 = vmatprep.subr.bf16.mxu0 0
    %6470 = vmatpush1.bf16.msra.mxu0 %v5569
    %6471 = vmatprep.subr.bf16.mxu0 0
    %6472 = vmatpush1.bf16.msra.mxu0 %v5574
    %6473 = vmatprep.subr.bf16.mxu0 0
    %6474 = vmatpush1.bf16.msra.mxu0 %v5579
    %6475 = vmatprep.subr.bf16.mxu0 0
    %6476 = vmatpush1.bf16.msra.mxu0 %v5584
    %6477 = vmatprep.subr.bf16.mxu0 0
    %6478 = vmatpush1.bf16.msra.mxu0 %v5589
    %6479 = vmatprep.subr.bf16.mxu0 0
    %6480 = vmatpush1.bf16.msra.mxu0 %v5594
    %6481 = vmatprep.subr.bf16.mxu0 0
    %6482 = vmatpush1.bf16.msra.mxu0 %v5599
    %6483 = vmatprep.subr.bf16.mxu0 0
    %6484 = vmatpush1.bf16.msra.mxu0 %v5604
    %6485 = vmatprep.mubr.bf16.mxu0 %v4005
    %6486 = vmatmul.mubr.bf16.gmra.mrb[0].mxu0 %v4004
    %v6487 = vpop.f32.mrb[0].mxu0
    %v6488 = vadd.f32 %v6448, %v6487
    %v6489 = vpop.f32.mrb[0].mxu0
    %v6490 = vpop.f32.mrb[0].mxu0
    %v6491 = vpop.f32.mrb[0].mxu0
    %6492 = vdwg.mxu0
    %6493 = vmatprep.subr.bf16.mxu0 0
    %6494 = vmatpush1.bf16.msra.mxu0 %v5609
    %6495 = vmatprep.subr.bf16.mxu0 0
    %6496 = vmatpush1.bf16.msra.mxu0 %v5614
    %6497 = vmatprep.subr.bf16.mxu0 0
    %6498 = vmatpush1.bf16.msra.mxu0 %v5619
    %6499 = vmatprep.subr.bf16.mxu0 0
    %6500 = vmatpush1.bf16.msra.mxu0 %v5624
    %6501 = vmatprep.subr.bf16.mxu0 0
    %6502 = vmatpush1.bf16.msra.mxu0 %v5629
    %6503 = vmatprep.subr.bf16.mxu0 0
    %6504 = vmatpush1.bf16.msra.mxu0 %v5634
    %6505 = vmatprep.subr.bf16.mxu0 0
    %6506 = vmatpush1.bf16.msra.mxu0 %v5639
    %6507 = vmatprep.subr.bf16.mxu0 0
    %6508 = vmatpush1.bf16.msra.mxu0 %v5644
    %6509 = vmatprep.subr.bf16.mxu0 0
    %6510 = vmatpush1.bf16.msra.mxu0 %v5649
    %6511 = vmatprep.subr.bf16.mxu0 0
    %6512 = vmatpush1.bf16.msra.mxu0 %v5654
    %6513 = vmatprep.subr.bf16.mxu0 0
    %6514 = vmatpush1.bf16.msra.mxu0 %v5659
    %6515 = vmatprep.subr.bf16.mxu0 0
    %6516 = vmatpush1.bf16.msra.mxu0 %v5664
    %6517 = vmatprep.subr.bf16.mxu0 0
    %6518 = vmatpush1.bf16.msra.mxu0 %v5669
    %6519 = vmatprep.subr.bf16.mxu0 0
    %6520 = vmatpush1.bf16.msra.mxu0 %v5674
    %6521 = vmatprep.subr.bf16.mxu0 0
    %6522 = vmatpush1.bf16.msra.mxu0 %v5679
    %6523 = vmatprep.subr.bf16.mxu0 0
    %6524 = vmatpush1.bf16.msra.mxu0 %v5684
    %6525 = vmatprep.mubr.bf16.mxu0 %v4007
    %6526 = vmatmul.mubr.bf16.gmra.mrb[0].mxu0 %v4006
    %v6527 = vpop.f32.mrb[0].mxu0
    %v6528 = vadd.f32 %v6488, %v6527
    %v6529 = vpop.f32.mrb[0].mxu0
    %v6530 = vpop.f32.mrb[0].mxu0
    %v6531 = vpop.f32.mrb[0].mxu0
    %6532 = vdwg.mxu0
    %6533 = vmatprep.subr.bf16.mxu0 0
    %6534 = vmatpush1.bf16.msra.mxu0 %v5689
    %6535 = vmatprep.subr.bf16.mxu0 0
    %6536 = vmatpush1.bf16.msra.mxu0 %v5694
    %6537 = vmatprep.subr.bf16.mxu0 0
    %6538 = vmatpush1.bf16.msra.mxu0 %v5699
    %6539 = vmatprep.subr.bf16.mxu0 0
    %6540 = vmatpush1.bf16.msra.mxu0 %v5704
    %6541 = vmatprep.subr.bf16.mxu0 0
    %6542 = vmatpush1.bf16.msra.mxu0 %v5709
    %6543 = vmatprep.subr.bf16.mxu0 0
    %6544 = vmatpush1.bf16.msra.mxu0 %v5714
    %6545 = vmatprep.subr.bf16.mxu0 0
    %6546 = vmatpush1.bf16.msra.mxu0 %v5719
    %6547 = vmatprep.subr.bf16.mxu0 0
    %6548 = vmatpush1.bf16.msra.mxu0 %v5724
    %6549 = vmatprep.subr.bf16.mxu0 0
    %6550 = vmatpush1.bf16.msra.mxu0 %v5729
    %6551 = vmatprep.subr.bf16.mxu0 0
    %6552 = vmatpush1.bf16.msra.mxu0 %v5734
    %6553 = vmatprep.subr.bf16.mxu0 0
    %6554 = vmatpush1.bf16.msra.mxu0 %v5739
    %6555 = vmatprep.subr.bf16.mxu0 0
    %6556 = vmatpush1.bf16.msra.mxu0 %v5744
    %6557 = vmatprep.subr.bf16.mxu0 0
    %6558 = vmatpush1.bf16.msra.mxu0 %v5749
    %6559 = vmatprep.subr.bf16.mxu0 0
    %6560 = vmatpush1.bf16.msra.mxu0 %v5754
    %6561 = vmatprep.subr.bf16.mxu0 0
    %6562 = vmatpush1.bf16.msra.mxu0 %v5759
    %6563 = vmatprep.subr.bf16.mxu0 0
    %6564 = vmatpush1.bf16.msra.mxu0 %v5764
    %6565 = vmatprep.mubr.bf16.mxu0 %v4009
    %6566 = vmatmul.mubr.bf16.gmra.mrb[0].mxu0 %v4008
    %v6567 = vpop.f32.mrb[0].mxu0
    %v6568 = vadd.f32 %v6528, %v6567
    %v6569 = vpop.f32.mrb[0].mxu0
    %v6570 = vpop.f32.mrb[0].mxu0
    %v6571 = vpop.f32.mrb[0].mxu0
    %6572 = vdwg.mxu0
    %v6573 = vadd.f32 %v6243, %v6245
    %6574 = vadd.xlane.f32.xlu0 %v6573
    %v6575 = vpop.xlane.xlu0 %6574
    %v6576 = vrcp.pop 256.0
    %v6577 = vmul.f32 %v6575, %v6576
    %v6578 = vsub.f32 %v6243, %v6577
    %v6579 = vsub.f32 %v6245, %v6577
    %v6580 = vmul.f32 %v6578, %v6578
    %v6581 = vmul.f32 %v6579, %v6579
    %v6582 = vadd.f32 %v6580, %v6581
    %6583 = vadd.xlane.f32.xlu0 %v6582
    %v6584 = vpop.xlane.xlu0 %6583
    %v6585 = vmul.f32 %v6584, %v6576
    %v6586 = vadd.f32 %v6585, 1e-05
    %v6587 = vrsqrt.pop %v6586
    %v6588 = vmul.f32 %v6578, %v6587
    %v6589 = vmul.f32 %v6579, %v6587
    %v6590 = vmax.f32 %v6588, 0.0
    %v6591 = vmax.f32 %v6589, 0.0
    %6592 = vadd.xlane.f32.xlu0 %v6407
    %v6593 = vpop.xlane.xlu0 %6592
    %v6594 = vrcp.pop 128.0
    %v6595 = vmul.f32 %v6593, %v6594
    %v6596 = vsub.f32 %v6407, %v6595
    %v6597 = vmul.f32 %v6596, %v6596
    %6598 = vadd.xlane.f32.xlu0 %v6597
    %v6599 = vpop.xlane.xlu0 %6598
    %v6600 = vmul.f32 %v6599, %v6594
    %v6601 = vadd.f32 %v6600, 1e-05
    %v6602 = vrsqrt.pop %v6601
    %v6603 = vmul.f32 %v6596, %v6602
    %v6604 = vmax.f32 %v6603, 0.0
    %v6605 = vadd.f32 %v6409, %v6568
    %6606 = vadd.xlane.f32.xlu0 %v6605
    %v6607 = vpop.xlane.xlu0 %6606
    %v6608 = vmul.f32 %v6607, %v6576
    %v6609 = vsub.f32 %v6409, %v6608
    %v6610 = vsub.f32 %v6568, %v6608
    %v6611 = vmul.f32 %v6609, %v6609
    %v6612 = vmul.f32 %v6610, %v6610
    %v6613 = vadd.f32 %v6611, %v6612
    %6614 = vadd.xlane.f32.xlu0 %v6613
    %v6615 = vpop.xlane.xlu0 %6614
    %v6616 = vmul.f32 %v6615, %v6576
    %v6617 = vadd.f32 %v6616, 1e-05
    %v6618 = vrsqrt.pop %v6617
    %v6619 = vmul.f32 %v6609, %v6618
    %v6620 = vmul.f32 %v6610, %v6618
    %v6621 = vmax.f32 %v6619, 0.0
    %v6622 = vmax.f32 %v6620, 0.0
    %v6623 = vpack.c.bf16 %v6590, %v6590
    %v6624 = vpack.c.bf16 %v6591, %v6591
    %v6625 = vld [vmem:[#allocation9] sm:$0xf]
    %v6626 = vld [vmem:[#allocation9 + $0x4] sm:$0xf]
    %v6627 = vld [vmem:[#allocation9 + $0x8] sm:$0xf]
    %v6628 = vld [vmem:[#allocation9 + $0xc] sm:$0xf]
    %v6629 = vld [vmem:[#allocation9 + $0x10] sm:$0xf]
    %v6630 = vld [vmem:[#allocation9 + $0x14] sm:$0xf]
    %v6631 = vld [vmem:[#allocation9 + $0x18] sm:$0xf]
    %v6632 = vld [vmem:[#allocation9 + $0x1c] sm:$0xf]
    %v6633 = vld [vmem:[#allocation9 + $0x20] sm:$0xf]
    %v6634 = vld [vmem:[#allocation9 + $0x24] sm:$0xf]
    %v6635 = vld [vmem:[#allocation9 + $0x28] sm:$0xf]
    %v6636 = vld [vmem:[#allocation9 + $0x2c] sm:$0xf]
    %v6637 = vld [vmem:[#allocation9 + $0x30] sm:$0xf]
    %v6638 = vld [vmem:[#allocation9 + $0x34] sm:$0xf]
    %v6639 = vld [vmem:[#allocation9 + $0x38] sm:$0xf]
    %v6640 = vld [vmem:[#allocation9 + $0x3c] sm:$0xf]
    %v6641 = vld [vmem:[#allocation9 + $0x40] sm:$0xf]
    %v6642 = vld [vmem:[#allocation9 + $0x44] sm:$0xf]
    %v6643 = vld [vmem:[#allocation9 + $0x48] sm:$0xf]
    %v6644 = vld [vmem:[#allocation9 + $0x4c] sm:$0xf]
    %v6645 = vld [vmem:[#allocation9 + $0x50] sm:$0xf]
    %v6646 = vld [vmem:[#allocation9 + $0x54] sm:$0xf]
    %v6647 = vld [vmem:[#allocation9 + $0x58] sm:$0xf]
    %v6648 = vld [vmem:[#allocation9 + $0x5c] sm:$0xf]
    %v6649 = vld [vmem:[#allocation9 + $0x60] sm:$0xf]
    %v6650 = vld [vmem:[#allocation9 + $0x64] sm:$0xf]
    %v6651 = vld [vmem:[#allocation9 + $0x68] sm:$0xf]
    %v6652 = vld [vmem:[#allocation9 + $0x6c] sm:$0xf]
    %v6653 = vld [vmem:[#allocation9 + $0x70] sm:$0xf]
    %v6654 = vld [vmem:[#allocation9 + $0x74] sm:$0xf]
    %v6655 = vld [vmem:[#allocation9 + $0x78] sm:$0xf]
    %v6656 = vld [vmem:[#allocation9 + $0x7c] sm:$0xf]
    %v6657 = vpack.c.bf16 %v6604, %v6604
    %v6658 = vld [vmem:[#allocation10] sm:$0xf]
    %v6659 = vld [vmem:[#allocation10 + $0x4] sm:$0xf]
    %v6660 = vld [vmem:[#allocation10 + $0x8] sm:$0xf]
    %v6661 = vld [vmem:[#allocation10 + $0xc] sm:$0xf]
    %v6662 = vld [vmem:[#allocation10 + $0x10] sm:$0xf]
    %v6663 = vld [vmem:[#allocation10 + $0x14] sm:$0xf]
    %v6664 = vld [vmem:[#allocation10 + $0x18] sm:$0xf]
    %v6665 = vld [vmem:[#allocation10 + $0x1c] sm:$0xf]
    %v6666 = vld [vmem:[#allocation10 + $0x20] sm:$0xf]
    %v6667 = vld [vmem:[#allocation10 + $0x24] sm:$0xf]
    %v6668 = vld [vmem:[#allocation10 + $0x28] sm:$0xf]
    %v6669 = vld [vmem:[#allocation10 + $0x2c] sm:$0xf]
    %v6670 = vld [vmem:[#allocation10 + $0x30] sm:$0xf]
    %v6671 = vld [vmem:[#allocation10 + $0x34] sm:$0xf]
    %v6672 = vld [vmem:[#allocation10 + $0x38] sm:$0xf]
    %v6673 = vld [vmem:[#allocation10 + $0x3c] sm:$0xf]
    %v6690 = vunpack.c.l.b16 %v6658
    %v6691 = vunpack.c.l.b16 %v6659
    %v6692 = vunpack.c.l.b16 %v6660
    %v6693 = vunpack.c.l.b16 %v6661
    %v6694 = vunpack.c.l.b16 %v6662
    %v6695 = vunpack.c.l.b16 %v6663
    %v6696 = vunpack.c.l.b16 %v6664
    %v6697 = vunpack.c.l.b16 %v6665
    %v6698 = vunpack.c.l.b16 %v6666
    %v6699 = vunpack.c.l.b16 %v6667
    %v6700 = vunpack.c.l.b16 %v6668
    %v6701 = vunpack.c.l.b16 %v6669
    %v6702 = vunpack.c.l.b16 %v6670
    %v6703 = vunpack.c.l.b16 %v6671
    %v6704 = vunpack.c.l.b16 %v6672
    %v6705 = vunpack.c.l.b16 %v6673
    %v6706 = vpack.c.b16 %v6691, %v6690
    %v6707 = vpack.c.b16 %v6693, %v6692
    %v6708 = vpack.c.b16 %v6695, %v6694
    %v6709 = vpack.c.b16 %v6697, %v6696
    %v6710 = vpack.c.b16 %v6699, %v6698
    %v6711 = vpack.c.b16 %v6701, %v6700
    %v6712 = vpack.c.b16 %v6703, %v6702
    %v6713 = vpack.c.b16 %v6705, %v6704
    %6722 = vmatprep.subr.bf16.mxu0 0
    %6723 = vmatpush1.bf16.msra.mxu0 %v6706
    %6724 = vmatprep.subr.bf16.mxu0 0
    %6725 = vmatpush1.bf16.msra.mxu0 %v6707
    %6726 = vmatprep.subr.bf16.mxu0 0
    %6727 = vmatpush1.bf16.msra.mxu0 %v6708
    %6728 = vmatprep.subr.bf16.mxu0 0
    %6729 = vmatpush1.bf16.msra.mxu0 %v6709
    %6730 = vmatprep.subr.bf16.mxu0 0
    %6731 = vmatpush1.bf16.msra.mxu0 %v6710
    %6732 = vmatprep.subr.bf16.mxu0 0
    %6733 = vmatpush1.bf16.msra.mxu0 %v6711
    %6734 = vmatprep.subr.bf16.mxu0 0
    %6735 = vmatpush1.bf16.msra.mxu0 %v6712
    %6736 = vmatprep.subr.bf16.mxu0 0
    %6737 = vmatpush1.bf16.msra.mxu0 %v6713
    %6738 = vmatprep.subr.bf16.mxu0 0
    %6739 = vmatpush1.bf16.msra.mxu0 0
    %6740 = vmatprep.subr.bf16.mxu0 0
    %6741 = vmatpush1.bf16.msra.mxu0 0
    %6742 = vmatprep.subr.bf16.mxu0 0
    %6743 = vmatpush1.bf16.msra.mxu0 0
    %6744 = vmatprep.subr.bf16.mxu0 0
    %6745 = vmatpush1.bf16.msra.mxu0 0
    %6746 = vmatprep.subr.bf16.mxu0 0
    %6747 = vmatpush1.bf16.msra.mxu0 0
    %6748 = vmatprep.subr.bf16.mxu0 0
    %6749 = vmatpush1.bf16.msra.mxu0 0
    %6750 = vmatprep.subr.bf16.mxu0 0
    %6751 = vmatpush1.bf16.msra.mxu0 0
    %6752 = vmatprep.subr.bf16.mxu0 0
    %6753 = vmatpush1.bf16.msra.mxu0 0
    %6754 = vmatprep.mubr.bf16.mxu0 0
    %6755 = vmatmul.mubr.bf16.gmra.mrb[0].mxu0 %v6657
    %v6756 = vpop.f32.mrb[0].mxu0
    %v6757 = vadd.f32 0.0, %v6756
    %v6758 = vpop.f32.mrb[0].mxu0
    %v6759 = vpop.f32.mrb[0].mxu0
    %v6760 = vpop.f32.mrb[0].mxu0
    %6761 = vdwg.mxu0
    %v6794 = vunpack.c.l.b16 %v6625
    %v6795 = vunpack.c.l.b16 %v6626
    %v6796 = vunpack.c.l.b16 %v6627
    %v6797 = vunpack.c.l.b16 %v6628
    %v6798 = vunpack.c.l.b16 %v6629
    %v6799 = vunpack.c.l.b16 %v6630
    %v6800 = vunpack.c.l.b16 %v6631
    %v6801 = vunpack.c.l.b16 %v6632
    %v6802 = vunpack.c.l.b16 %v6633
    %v6803 = vunpack.c.l.b16 %v6634
    %v6804 = vunpack.c.l.b16 %v6635
    %v6805 = vunpack.c.l.b16 %v6636
    %v6806 = vunpack.c.l.b16 %v6637
    %v6807 = vunpack.c.l.b16 %v6638
    %v6808 = vunpack.c.l.b16 %v6639
    %v6809 = vunpack.c.l.b16 %v6640
    %v6810 = vunpack.c.l.b16 %v6641
    %v6811 = vunpack.c.l.b16 %v6642
    %v6812 = vunpack.c.l.b16 %v6643
    %v6813 = vunpack.c.l.b16 %v6644
    %v6814 = vunpack.c.l.b16 %v6645
    %v6815 = vunpack.c.l.b16 %v6646
    %v6816 = vunpack.c.l.b16 %v6647
    %v6817 = vunpack.c.l.b16 %v6648
    %v6818 = vunpack.c.l.b16 %v6649
    %v6819 = vunpack.c.l.b16 %v6650
    %v6820 = vunpack.c.l.b16 %v6651
    %v6821 = vunpack.c.l.b16 %v6652
    %v6822 = vunpack.c.l.b16 %v6653
    %v6823 = vunpack.c.l.b16 %v6654
    %v6824 = vunpack.c.l.b16 %v6655
    %v6825 = vunpack.c.l.b16 %v6656
    %v6826 = vpack.c.b16 %v6795, %v6794
    %v6827 = vpack.c.b16 %v6797, %v6796
    %v6828 = vpack.c.b16 %v6799, %v6798
    %v6829 = vpack.c.b16 %v6801, %v6800
    %v6830 = vpack.c.b16 %v6803, %v6802
    %v6831 = vpack.c.b16 %v6805, %v6804
    %v6832 = vpack.c.b16 %v6807, %v6806
    %v6833 = vpack.c.b16 %v6809, %v6808
    %v6834 = vpack.c.b16 %v6811, %v6810
    %v6835 = vpack.c.b16 %v6813, %v6812
    %v6836 = vpack.c.b16 %v6815, %v6814
    %v6837 = vpack.c.b16 %v6817, %v6816
    %v6838 = vpack.c.b16 %v6819, %v6818
    %v6839 = vpack.c.b16 %v6821, %v6820
    %v6840 = vpack.c.b16 %v6823, %v6822
    %v6841 = vpack.c.b16 %v6825, %v6824
    %6858 = vmatprep.subr.bf16.mxu0 0
    %6859 = vmatpush1.bf16.msra.mxu0 %v6826
    %6860 = vmatprep.subr.bf16.mxu0 0
    %6861 = vmatpush1.bf16.msra.mxu0 %v6827
    %6862 = vmatprep.subr.bf16.mxu0 0
    %6863 = vmatpush1.bf16.msra.mxu0 %v6828
    %6864 = vmatprep.subr.bf16.mxu0 0
    %6865 = vmatpush1.bf16.msra.mxu0 %v6829
    %6866 = vmatprep.subr.bf16.mxu0 0
    %6867 = vmatpush1.bf16.msra.mxu0 %v6830
    %6868 = vmatprep.subr.bf16.mxu0 0
    %6869 = vmatpush1.bf16.msra.mxu0 %v6831
    %6870 = vmatprep.subr.bf16.mxu0 0
    %6871 = vmatpush1.bf16.msra.mxu0 %v6832
    %6872 = vmatprep.subr.bf16.mxu0 0
    %6873 = vmatpush1.bf16.msra.mxu0 %v6833
    %6874 = vmatprep.subr.bf16.mxu0 0
    %6875 = vmatpush1.bf16.msra.mxu0 %v6834
    %6876 = vmatprep.subr.bf16.mxu0 0
    %6877 = vmatpush1.bf16.msra.mxu0 %v6835
    %6878 = vmatprep.subr.bf16.mxu0 0
    %6879 = vmatpush1.bf16.msra.mxu0 %v6836
    %6880 = vmatprep.subr.bf16.mxu0 0
    %6881 = vmatpush1.bf16.msra.mxu0 %v6837
    %6882 = vmatprep.subr.bf16.mxu0 0
    %6883 = vmatpush1.bf16.msra.mxu0 %v6838
    %6884 = vmatprep.subr.bf16.mxu0 0
    %6885 = vmatpush1.bf16.msra.mxu0 %v6839
    %6886 = vmatprep.subr.bf16.mxu0 0
    %6887 = vmatpush1.bf16.msra.mxu0 %v6840
    %6888 = vmatprep.subr.bf16.mxu0 0
    %6889 = vmatpush1.bf16.msra.mxu0 %v6841
    %6890 = vmatprep.mubr.bf16.mxu0 %v6624
    %6891 = vmatmul.mubr.bf16.gmra.mrb[0].mxu0 %v6623
    %v6892 = vpop.f32.mrb[0].mxu0
    %v6893 = vadd.f32 %v6757, %v6892
    %v6894 = vpop.f32.mrb[0].mxu0
    %v6895 = vpop.f32.mrb[0].mxu0
    %v6896 = vpop.f32.mrb[0].mxu0
    %6897 = vdwg.mxu0
    %v6898 = vld [vmem:[#allocation12] sm:$0x1]
    %v6900 = vlaneseq
    %v6901 = vshrl.u32 %v6900, 7
    %v6902 = vsub.s32 0, %v6901
    %v6903 = vrot.slane %v6898, %v6902
    %v6905 = vadd.f32 %v6893, %v6903
    %6906 = vst [vmem:[%s12] sm:$0xff] %v6905
    %v6907 = vpack.c.bf16 %v6621, %v6621
    %v6908 = vpack.c.bf16 %v6622, %v6622
    %v6909 = vld [vmem:[#allocation13] sm:$0xf]
    %v6910 = vld [vmem:[#allocation13 + $0x4] sm:$0xf]
    %v6911 = vld [vmem:[#allocation13 + $0x8] sm:$0xf]
    %v6912 = vld [vmem:[#allocation13 + $0xc] sm:$0xf]
    %v6913 = vld [vmem:[#allocation13 + $0x10] sm:$0xf]
    %v6914 = vld [vmem:[#allocation13 + $0x14] sm:$0xf]
    %v6915 = vld [vmem:[#allocation13 + $0x18] sm:$0xf]
    %v6916 = vld [vmem:[#allocation13 + $0x1c] sm:$0xf]
    %v6917 = vld [vmem:[#allocation13 + $0x20] sm:$0xf]
    %v6918 = vld [vmem:[#allocation13 + $0x24] sm:$0xf]
    %v6919 = vld [vmem:[#allocation13 + $0x28] sm:$0xf]
    %v6920 = vld [vmem:[#allocation13 + $0x2c] sm:$0xf]
    %v6921 = vld [vmem:[#allocation13 + $0x30] sm:$0xf]
    %v6922 = vld [vmem:[#allocation13 + $0x34] sm:$0xf]
    %v6923 = vld [vmem:[#allocation13 + $0x38] sm:$0xf]
    %v6924 = vld [vmem:[#allocation13 + $0x3c] sm:$0xf]
    %v6925 = vld [vmem:[#allocation13 + $0x40] sm:$0xf]
    %v6926 = vld [vmem:[#allocation13 + $0x44] sm:$0xf]
    %v6927 = vld [vmem:[#allocation13 + $0x48] sm:$0xf]
    %v6928 = vld [vmem:[#allocation13 + $0x4c] sm:$0xf]
    %v6929 = vld [vmem:[#allocation13 + $0x50] sm:$0xf]
    %v6930 = vld [vmem:[#allocation13 + $0x54] sm:$0xf]
    %v6931 = vld [vmem:[#allocation13 + $0x58] sm:$0xf]
    %v6932 = vld [vmem:[#allocation13 + $0x5c] sm:$0xf]
    %v6933 = vld [vmem:[#allocation13 + $0x60] sm:$0xf]
    %v6934 = vld [vmem:[#allocation13 + $0x64] sm:$0xf]
    %v6935 = vld [vmem:[#allocation13 + $0x68] sm:$0xf]
    %v6936 = vld [vmem:[#allocation13 + $0x6c] sm:$0xf]
    %v6937 = vld [vmem:[#allocation13 + $0x70] sm:$0xf]
    %v6938 = vld [vmem:[#allocation13 + $0x74] sm:$0xf]
    %v6939 = vld [vmem:[#allocation13 + $0x78] sm:$0xf]
    %v6940 = vld [vmem:[#allocation13 + $0x7c] sm:$0xf]
    %v6941 = vld [vmem:[#allocation15] sm:$0x1]
    %v6943 = vlaneseq
    %v6944 = vshrl.u32 %v6943, 7
    %v6945 = vsub.s32 0, %v6944
    %v6946 = vrot.slane %v6941, %v6945
    %v6980 = vunpack.c.l.b16 %v6909
    %v6981 = vunpack.c.l.b16 %v6910
    %v6982 = vunpack.c.l.b16 %v6911
    %v6983 = vunpack.c.l.b16 %v6912
    %v6984 = vunpack.c.l.b16 %v6913
    %v6985 = vunpack.c.l.b16 %v6914
    %v6986 = vunpack.c.l.b16 %v6915
    %v6987 = vunpack.c.l.b16 %v6916
    %v6988 = vunpack.c.l.b16 %v6917
    %v6989 = vunpack.c.l.b16 %v6918
    %v6990 = vunpack.c.l.b16 %v6919
    %v6991 = vunpack.c.l.b16 %v6920
    %v6992 = vunpack.c.l.b16 %v6921
    %v6993 = vunpack.c.l.b16 %v6922
    %v6994 = vunpack.c.l.b16 %v6923
    %v6995 = vunpack.c.l.b16 %v6924
    %v6996 = vunpack.c.l.b16 %v6925
    %v6997 = vunpack.c.l.b16 %v6926
    %v6998 = vunpack.c.l.b16 %v6927
    %v6999 = vunpack.c.l.b16 %v6928
    %v7000 = vunpack.c.l.b16 %v6929
    %v7001 = vunpack.c.l.b16 %v6930
    %v7002 = vunpack.c.l.b16 %v6931
    %v7003 = vunpack.c.l.b16 %v6932
    %v7004 = vunpack.c.l.b16 %v6933
    %v7005 = vunpack.c.l.b16 %v6934
    %v7006 = vunpack.c.l.b16 %v6935
    %v7007 = vunpack.c.l.b16 %v6936
    %v7008 = vunpack.c.l.b16 %v6937
    %v7009 = vunpack.c.l.b16 %v6938
    %v7010 = vunpack.c.l.b16 %v6939
    %v7011 = vunpack.c.l.b16 %v6940
    %v7012 = vpack.c.b16 %v6981, %v6980
    %v7013 = vpack.c.b16 %v6983, %v6982
    %v7014 = vpack.c.b16 %v6985, %v6984
    %v7015 = vpack.c.b16 %v6987, %v6986
    %v7016 = vpack.c.b16 %v6989, %v6988
    %v7017 = vpack.c.b16 %v6991, %v6990
    %v7018 = vpack.c.b16 %v6993, %v6992
    %v7019 = vpack.c.b16 %v6995, %v6994
    %v7020 = vpack.c.b16 %v6997, %v6996
    %v7021 = vpack.c.b16 %v6999, %v6998
    %v7022 = vpack.c.b16 %v7001, %v7000
    %v7023 = vpack.c.b16 %v7003, %v7002
    %v7024 = vpack.c.b16 %v7005, %v7004
    %v7025 = vpack.c.b16 %v7007, %v7006
    %v7026 = vpack.c.b16 %v7009, %v7008
    %v7027 = vpack.c.b16 %v7011, %v7010
    %7044 = vmatprep.subr.bf16.mxu0 0
    %7045 = vmatpush1.bf16.msra.mxu0 %v7012
    %7046 = vmatprep.subr.bf16.mxu0 0
    %7047 = vmatpush1.bf16.msra.mxu0 %v7013
    %7048 = vmatprep.subr.bf16.mxu0 0
    %7049 = vmatpush1.bf16.msra.mxu0 %v7014
    %7050 = vmatprep.subr.bf16.mxu0 0
    %7051 = vmatpush1.bf16.msra.mxu0 %v7015
    %7052 = vmatprep.subr.bf16.mxu0 0
    %7053 = vmatpush1.bf16.msra.mxu0 %v7016
    %7054 = vmatprep.subr.bf16.mxu0 0
    %7055 = vmatpush1.bf16.msra.mxu0 %v7017
    %7056 = vmatprep.subr.bf16.mxu0 0
    %7057 = vmatpush1.bf16.msra.mxu0 %v7018
    %7058 = vmatprep.subr.bf16.mxu0 0
    %7059 = vmatpush1.bf16.msra.mxu0 %v7019
    %7060 = vmatprep.subr.bf16.mxu0 0
    %7061 = vmatpush1.bf16.msra.mxu0 %v7020
    %7062 = vmatprep.subr.bf16.mxu0 0
    %7063 = vmatpush1.bf16.msra.mxu0 %v7021
    %7064 = vmatprep.subr.bf16.mxu0 0
    %7065 = vmatpush1.bf16.msra.mxu0 %v7022
    %7066 = vmatprep.subr.bf16.mxu0 0
    %7067 = vmatpush1.bf16.msra.mxu0 %v7023
    %7068 = vmatprep.subr.bf16.mxu0 0
    %7069 = vmatpush1.bf16.msra.mxu0 %v7024
    %7070 = vmatprep.subr.bf16.mxu0 0
    %7071 = vmatpush1.bf16.msra.mxu0 %v7025
    %7072 = vmatprep.subr.bf16.mxu0 0
    %7073 = vmatpush1.bf16.msra.mxu0 %v7026
    %7074 = vmatprep.subr.bf16.mxu0 0
    %7075 = vmatpush1.bf16.msra.mxu0 %v7027
    %7076 = vmatprep.mubr.bf16.mxu0 %v6908
    %7077 = vmatmul.mubr.bf16.gmra.mrb[0].mxu0 %v6907
    %v7078 = vpop.f32.mrb[0].mxu0
    %v7079 = vadd.f32 %v6946, %v7078
    %v7080 = vpop.f32.mrb[0].mxu0
    %v7081 = vpop.f32.mrb[0].mxu0
    %v7082 = vpop.f32.mrb[0].mxu0
    %7083 = vdwg.mxu0
    %7084 = vadd.xlane.f32.xlu0 %v7079
    %v7085 = vpop.xlane.xlu0 %7084
    %v7086 = vmul.f32 %v7085, %v6594
    %v7087 = vsub.f32 %v7079, %v7086
    %v7088 = vmul.f32 %v7087, %v7087
    %7089 = vadd.xlane.f32.xlu0 %v7088
    %v7090 = vpop.xlane.xlu0 %7089
    %v7091 = vmul.f32 %v7090, %v6594
    %v7092 = vadd.f32 %v7091, 1e-05
    %v7093 = vrsqrt.pop %v7092
    %v7094 = vmul.f32 %v7087, %v7093
    %v7095 = vmul.f32 %v7094, %v7094
    %7096 = vadd.xlane.f32.xlu0 %v7095
    %v7097 = vpop.xlane.xlu0 %7096
    %v7098 = vrsqrt.pop %v7097
    %v7099 = vmul.f32 %v7097, %v7098
    %vm7100 = vcmp.eq.f32.partialorder %v7097, inf
    %v7101 = vsel %vm7100, %v7097, %v7099
    %vm7102 = vcmp.eq.f32.partialorder %v7097, 0.0
    %v7103 = vand.u32 %v7097, 2147483648
    %v7104 = vsel %vm7102, %v7103, %v7101
    %v7105 = vmax.f32 %v7104, 1e-12
    %v7106 = vrcp.pop %v7105
    %v7107 = vmul.f32 %v7094, %v7106
    %7108 = vst [vmem:[%s11] sm:$0xff] %v7107
    // Predicated region
    $region78: #{enhanced_style_classifier_head.1} parent=1 // pred_check
      _
    $region79: #{enhanced_style_classifier_head.1} parent=1 // pred_check_branch
      %7110 = sbr.rel (0) target = $region81
    $region80: #{enhanced_style_classifier_head.1} parent=1 // pred_region
      _
    $region81: #{enhanced_style_classifier_head.1} parent=1 // pred_fallthru
      _
    // Predicated region
    $region82: #{enhanced_style_classifier_head.1} parent=1 // pred_check
      _
    $region83: #{enhanced_style_classifier_head.1} parent=1 // pred_check_branch
      %7112 = sbr.rel (0) target = $region85
    $region84: #{enhanced_style_classifier_head.1} parent=1 // pred_region
      _
    $region85: #{enhanced_style_classifier_head.1} parent=1 // pred_fallthru
      _
    // Predicated region
    $region86: #{enhanced_style_classifier_head.1} parent=1 // pred_check
      _
    $region87: #{enhanced_style_classifier_head.1} parent=1 // pred_check_branch
      %7114 = sbr.rel (0) target = $region89
    $region88: #{enhanced_style_classifier_head.1} parent=1 // pred_region
      _
    $region89: #{enhanced_style_classifier_head.1} parent=1 // pred_fallthru
      _
    // Predicated region
    $region90: #{enhanced_style_classifier_head.1} parent=1 // pred_check
      _
    $region91: #{enhanced_style_classifier_head.1} parent=1 // pred_check_branch
      %7116 = sbr.rel (0) target = $region93
    $region92: #{enhanced_style_classifier_head.1} parent=1 // pred_region
      _
    $region93: #{enhanced_style_classifier_head.1} parent=1 // pred_fallthru
      _
    // Predicated region
    $region94: #{enhanced_style_classifier_head.1} parent=1 // pred_check
      _
    $region95: #{enhanced_style_classifier_head.1} parent=1 // pred_check_branch
      %7118 = sbr.rel (0) target = $region97
    $region96: #{enhanced_style_classifier_head.1} parent=1 // pred_region
      _
    $region97: #{enhanced_style_classifier_head.1} parent=1 // pred_fallthru
      _
    // Predicated region
    $region98: #{enhanced_style_classifier_head.1} parent=1 // pred_check
      _
    $region99: #{enhanced_style_classifier_head.1} parent=1 // pred_check_branch
      %7120 = sbr.rel (0) target = $region101
    $region100: #{enhanced_style_classifier_head.1} parent=1 // pred_region
      _
    $region101: #{enhanced_style_classifier_head.1} parent=1 // pred_fallthru
      _
    %7121 = vsyncpa [#allocation3], 1
    %7122 = vsyncpa [#allocation5], 1
    %7123 = vsyncpa [#allocation8], 1
    %7124 = vsyncpa [#allocation11], 1
    %7125 = vsyncpa [#allocation14], 1

</llo_original>
